<compile_context>
chip_gen: v7x
topology: tpu7x:2x2x1
jax: 0.10.0
libtpu: 0.0.40
codegen_flags: <defaults>
</compile_context>

<pallas_src>
import jax
import jax.numpy as jnp
from jax import lax
from jax.experimental import pallas as pl
from jax.experimental.pallas import tpu as pltpu

VOCAB, EMB = 26, 50
SEQ0, SEQ1 = 5, 26
POS = SEQ0 * SEQ1                 # 130 embedding positions per example
K = POS * VOCAB                   # 3380 folded contraction depth
FLAT = POS * EMB                  # 6500 (original Linear1 input width)
HID, OUT = 100, 7
HIDP = 128                        # hidden padded to one full lane register

MAX_TB = 256                      # batch rows per grid step


def fused_kernel(idx_ref, e_ref, voc_ref, wc_ref, b1_ref, w2_ref, b2_ref, out_ref):
    """Embedding + Linear1 + ReLU + Linear2 + Softmax for one batch tile.

    idx_ref: (TB, 130)  bf16  integer indices (exact in bf16, values < 26)
    e_ref:   (130, 3380) bf16 constant expansion matrix, E[p, p*26+v] = 1
    voc_ref: (1, 3380)  f32   constant vocab iota, voc[0, p*26+v] = v
    wc_ref:  (3380, 128) f32  folded (table @ W1-slice) weights, HID zero-padded
    b1_ref:  (1, 128)   f32   b1 zero-padded
    w2_ref:  (128, 7)   f32   W2 with zero-padded extra rows
    b2_ref:  (1, 7)     f32
    out_ref: (TB, 7)    f32   softmax probabilities
    """
    # Replicate idx[b, p] across the 26 vocab lanes of position p (tiny MXU matmul,
    # K=130), then compare against the vocab iota -> flattened one-hot (TB, 3380).
    idx_exp = jnp.dot(idx_ref[...], e_ref[...], preferred_element_type=jnp.float32)
    onehot = (idx_exp == voc_ref[...]).astype(jnp.float32)

    # Folded embedding + Linear1 (+ bias, ReLU).
    h = jnp.dot(onehot, wc_ref[...], preferred_element_type=jnp.float32) + b1_ref[...]
    h = jnp.maximum(h, 0.0)

    # Linear2 + softmax. Exact divide kept so results match the f32 reference to 1e-5.
    logits = jnp.dot(h, w2_ref[...], preferred_element_type=jnp.float32) + b2_ref[...]
    m = jnp.max(logits, axis=-1, keepdims=True)
    e = jnp.exp(logits - m)
    out_ref[...] = e / jnp.sum(e, axis=-1, keepdims=True)


def fold_params(params):
    """Fold the embedding table into W1, pad HID to 128, build constant kernel operands."""
    table, w1, b1, w2, b2 = params
    hp = jax.lax.Precision.HIGHEST
    w1_3 = w1.reshape(POS, EMB, HID)                                     # (130, 50, 100)
    wc = jnp.einsum("ve,peh->pvh", table, w1_3, precision=hp)            # (130, 26, 100)
    wc = wc.reshape(K, HID)
    wc = jnp.pad(wc, ((0, 0), (0, HIDP - HID)))                          # (3380, 128)
    b1p = jnp.pad(b1, (0, HIDP - HID)).reshape(1, HIDP)                  # (1, 128)
    w2p = jnp.pad(w2, ((0, HIDP - HID), (0, 0)))                         # (128, 7)
    b2p = b2.reshape(1, OUT)                                             # (1, 7)
    # Constant operands for the in-kernel one-hot construction.
    expand = jnp.repeat(jnp.eye(POS, dtype=jnp.float32), VOCAB, axis=1)  # (130, 3380)
    expand = expand.astype(jnp.bfloat16)
    voc = jnp.tile(jnp.arange(VOCAB, dtype=jnp.float32), POS).reshape(1, K)
    return expand, voc, wc, b1p, w2p, b2p


@jax.jit
def model_forward(idx, folded):
    expand, voc, wc, b1p, w2p, b2p = folded
    B = idx.shape[0]
    idx_flat = idx.reshape(B, POS).astype(jnp.bfloat16)   # values < 26 -> exact in bf16

    tb = B if B <= MAX_TB else MAX_TB
    grid = (pl.cdiv(B, tb),)

    cost = pl.CostEstimate(
        flops=2 * B * (POS * K + K * HIDP + HIDP * OUT),
        transcendentals=B * OUT,
        bytes_accessed=(idx_flat.size * 2 + expand.size * 2
                        + (voc.size + wc.size + b1p.size + w2p.size + b2p.size) * 4
                        + B * OUT * 4),
    )

    return pl.pallas_call(
        fused_kernel,
        out_shape=jax.ShapeDtypeStruct((B, OUT), jnp.float32),
        grid_spec=pltpu.PrefetchScalarGridSpec(
            num_scalar_prefetch=0,
            grid=grid,
            in_specs=[
                pl.BlockSpec((tb, POS), lambda i: (i, 0)),    # idx: streamed per batch tile
                pl.BlockSpec((POS, K), lambda i: (0, 0)),     # E: VMEM-resident constant
                pl.BlockSpec((1, K), lambda i: (0, 0)),       # vocab iota: resident
                pl.BlockSpec((K, HIDP), lambda i: (0, 0)),    # Wc: resident weights
                pl.BlockSpec((1, HIDP), lambda i: (0, 0)),    # b1
                pl.BlockSpec((HIDP, OUT), lambda i: (0, 0)),  # W2
                pl.BlockSpec((1, OUT), lambda i: (0, 0)),     # b2
            ],
            out_specs=pl.BlockSpec((tb, OUT), lambda i: (i, 0)),
        ),
        compiler_params=pltpu.CompilerParams(
            dimension_semantics=("parallel",),
            vmem_limit_bytes=48 * 1024 * 1024,
        ),
        cost_estimate=cost,
    )(idx_flat, expand, voc, wc, b1p, w2p, b2p)


def init_params(key):
    k_emb, k_w1, k_b1, k_w2, k_b2 = jax.random.split(key, 5)
    table = jax.random.normal(k_emb, (VOCAB, EMB), jnp.float32)          # nn.Embedding weight
    # nn.Linear stores (out, in); we keep the transposed (in, out) layout for x @ W.
    lim1 = 1.0 / (FLAT ** 0.5)
    w1 = jax.random.uniform(k_w1, (FLAT, HID), jnp.float32, -lim1, lim1)
    b1 = jax.random.uniform(k_b1, (HID,), jnp.float32, -lim1, lim1)
    lim2 = 1.0 / (HID ** 0.5)
    w2 = jax.random.uniform(k_w2, (HID, OUT), jnp.float32, -lim2, lim2)
    b2 = jax.random.uniform(k_b2, (OUT,), jnp.float32, -lim2, lim2)
    return table, w1, b1, w2, b2


def reference_forward(idx, params):
    table, w1, b1, w2, b2 = params
    hp = jax.lax.Precision.HIGHEST
    B = idx.shape[0]
    emb = table[idx]                        # (B, 5, 26, 50)
    x = emb.reshape(B, FLAT)
    h = jnp.maximum(jnp.dot(x, w1, precision=hp) + b1, 0.0)
    logits = jnp.dot(h, w2, precision=hp) + b2
    return jax.nn.softmax(logits, axis=-1)


if __name__ == "__main__":
    key = jax.random.PRNGKey(0)
    k_idx, k_param = jax.random.split(key)
    params = init_params(k_param)
    folded = fold_params(params)            # one-time offline weight fold

    B = 2
    idx = jax.random.randint(k_idx, (B, SEQ0, SEQ1), 0, VOCAB, dtype=jnp.int32)

    out = model_forward(idx, folded)
    out = jax.block_until_ready(out)

    ref = reference_forward(idx, params)
    assert out.shape == (B, OUT) and out.dtype == jnp.float32
    assert jnp.allclose(out, ref, rtol=1e-5, atol=1e-5), "mismatch vs JAX reference"
    assert jnp.allclose(jnp.sum(out, axis=-1), 1.0, atol=1e-5)

    print("KERNEL_OK")
</pallas_src>

<mosaic_0001>
module attributes {stable_mosaic.version = 11 : i64} {
  func.func @fused_kernel(%arg0: i32, %arg1: memref<2x130xbf16, #tpu.memory_space<vmem>>, %arg2: memref<130x3380xbf16, #tpu.memory_space<vmem>>, %arg3: memref<1x3380xf32, #tpu.memory_space<vmem>>, %arg4: memref<3380x128xf32, #tpu.memory_space<vmem>>, %arg5: memref<1x128xf32, #tpu.memory_space<vmem>>, %arg6: memref<128x7xf32, #tpu.memory_space<vmem>>, %arg7: memref<1x7xf32, #tpu.memory_space<vmem>>, %arg8: memref<2x7xf32, #tpu.memory_space<vmem>>) attributes {dimension_semantics = [#tpu.dimension_semantics<parallel>], iteration_bounds = array<i64: 1>, scalar_prefetch = 0 : i64, scratch_operands = 0 : i64, tpu.core_type = #tpu.core_type<tc>, window_params = [{transform_indices = @transform_0, window_bounds = array<i64: 2, 130>}, {pipeline_mode = #tpu.pipeline_mode<synchronous>, transform_indices = @transform_1, window_bounds = array<i64: 130, 3380>}, {pipeline_mode = #tpu.pipeline_mode<synchronous>, transform_indices = @transform_2, window_bounds = array<i64: 1, 3380>}, {pipeline_mode = #tpu.pipeline_mode<synchronous>, transform_indices = @transform_3, window_bounds = array<i64: 3380, 128>}, {pipeline_mode = #tpu.pipeline_mode<synchronous>, transform_indices = @transform_4, window_bounds = array<i64: 1, 128>}, {pipeline_mode = #tpu.pipeline_mode<synchronous>, transform_indices = @transform_5, window_bounds = array<i64: 128, 7>}, {pipeline_mode = #tpu.pipeline_mode<synchronous>, transform_indices = @transform_6, window_bounds = array<i64: 1, 7>}, {transform_indices = @transform_7, window_bounds = array<i64: 2, 7>}]} {
    %c0 = arith.constant 0 : index
    %c0_0 = arith.constant 0 : index
    %0 = vector.load %arg1[%c0, %c0_0] : memref<2x130xbf16, #tpu.memory_space<vmem>>, vector<2x130xbf16>
    %c0_1 = arith.constant 0 : index
    %c0_2 = arith.constant 0 : index
    %1 = vector.load %arg2[%c0_1, %c0_2] : memref<130x3380xbf16, #tpu.memory_space<vmem>>, vector<130x3380xbf16>
    %cst = arith.constant dense<0.000000e+00> : vector<2x3380xf32>
    %2 = tpu.matmul %0, %1, %cst {dimension_numbers = #tpu.dot_dimension_numbers<[1], [0], [0], [1], [0, 0, 1, 1], [], []>} : vector<2x130xbf16>, vector<130x3380xbf16>, vector<2x3380xf32> -> vector<2x3380xf32>
    %c0_3 = arith.constant 0 : index
    %c0_4 = arith.constant 0 : index
    %3 = vector.load %arg3[%c0_3, %c0_4] : memref<1x3380xf32, #tpu.memory_space<vmem>>, vector<1x3380xf32>
    %4 = vector.broadcast %3 : vector<1x3380xf32> to vector<2x3380xf32>
    %5 = arith.cmpf oeq, %2, %4 : vector<2x3380xf32>
    %6 = arith.extui %5 : vector<2x3380xi1> to vector<2x3380xi32>
    %7 = arith.sitofp %6 : vector<2x3380xi32> to vector<2x3380xf32>
    %c0_5 = arith.constant 0 : index
    %c0_6 = arith.constant 0 : index
    %8 = vector.load %arg4[%c0_5, %c0_6] : memref<3380x128xf32, #tpu.memory_space<vmem>>, vector<3380x128xf32>
    %cst_7 = arith.constant dense<0.000000e+00> : vector<2x128xf32>
    %9 = tpu.matmul %7, %8, %cst_7 {dimension_numbers = #tpu.dot_dimension_numbers<[1], [0], [0], [1], [0, 0, 1, 1], [], []>} : vector<2x3380xf32>, vector<3380x128xf32>, vector<2x128xf32> -> vector<2x128xf32>
    %c0_8 = arith.constant 0 : index
    %c0_9 = arith.constant 0 : index
    %10 = vector.load %arg5[%c0_8, %c0_9] : memref<1x128xf32, #tpu.memory_space<vmem>>, vector<1x128xf32>
    %11 = vector.broadcast %10 : vector<1x128xf32> to vector<2x128xf32>
    %12 = arith.addf %9, %11 : vector<2x128xf32>
    %cst_10 = arith.constant 0.000000e+00 : f32
    %13 = vector.broadcast %cst_10 : f32 to vector<2x128xf32>
    %14 = arith.maximumf %12, %13 : vector<2x128xf32>
    %c0_11 = arith.constant 0 : index
    %c0_12 = arith.constant 0 : index
    %15 = vector.load %arg6[%c0_11, %c0_12] : memref<128x7xf32, #tpu.memory_space<vmem>>, vector<128x7xf32>
    %cst_13 = arith.constant dense<0.000000e+00> : vector<2x7xf32>
    %16 = tpu.matmul %14, %15, %cst_13 {dimension_numbers = #tpu.dot_dimension_numbers<[1], [0], [0], [1], [0, 0, 1, 1], [], []>} : vector<2x128xf32>, vector<128x7xf32>, vector<2x7xf32> -> vector<2x7xf32>
    %c0_14 = arith.constant 0 : index
    %c0_15 = arith.constant 0 : index
    %17 = vector.load %arg7[%c0_14, %c0_15] : memref<1x7xf32, #tpu.memory_space<vmem>>, vector<1x7xf32>
    %18 = vector.broadcast %17 : vector<1x7xf32> to vector<2x7xf32>
    %19 = arith.addf %16, %18 : vector<2x7xf32>
    %cst_16 = arith.constant dense<0xFF800000> : vector<2xf32>
    %20 = vector.multi_reduction <maximumf>, %19, %cst_16 [1] : vector<2x7xf32> to vector<2xf32>
    %21 = vector.shape_cast %20 : vector<2xf32> to vector<2x1xf32>
    %22 = vector.broadcast %21 : vector<2x1xf32> to vector<2x7xf32>
    %23 = arith.subf %19, %22 : vector<2x7xf32>
    %24 = math.exp %23 : vector<2x7xf32>
    %cst_17 = arith.constant dense<0.000000e+00> : vector<2xf32>
    %25 = vector.multi_reduction <add>, %24, %cst_17 [1] : vector<2x7xf32> to vector<2xf32>
    %26 = vector.shape_cast %25 : vector<2xf32> to vector<2x1xf32>
    %27 = vector.broadcast %26 : vector<2x1xf32> to vector<2x7xf32>
    %28 = arith.divf %24, %27 : vector<2x7xf32>
    %c0_18 = arith.constant 0 : index
    %c0_19 = arith.constant 0 : index
    %29 = vector.load %arg8[%c0_18, %c0_19] : memref<2x7xf32, #tpu.memory_space<vmem>>, vector<2x7xf32>
    tpu.vector_store %arg8[%c0_18, %c0_19], %28 {strides = array<i32>} : memref<2x7xf32, #tpu.memory_space<vmem>>, vector<2x7xf32>,
    return
  }
  func.func @transform_0(%arg0: i32) -> (i32, i32) {
    %c0_i32 = arith.constant 0 : i32
    %c0_i32_0 = arith.constant 0 : i32
    return %arg0, %c0_i32 : i32, i32
  }
  func.func @transform_1(%arg0: i32) -> (i32, i32) {
    %c0_i32 = arith.constant 0 : i32
    %c0_i32_0 = arith.constant 0 : i32
    %c0_i32_1 = arith.constant 0 : i32
    return %c0_i32, %c0_i32_0 : i32, i32
  }
  func.func @transform_2(%arg0: i32) -> (i32, i32) {
    %c0_i32 = arith.constant 0 : i32
    %c0_i32_0 = arith.constant 0 : i32
    %c0_i32_1 = arith.constant 0 : i32
    return %c0_i32, %c0_i32_0 : i32, i32
  }
  func.func @transform_3(%arg0: i32) -> (i32, i32) {
    %c0_i32 = arith.constant 0 : i32
    %c0_i32_0 = arith.constant 0 : i32
    %c0_i32_1 = arith.constant 0 : i32
    return %c0_i32, %c0_i32_0 : i32, i32
  }
  func.func @transform_4(%arg0: i32) -> (i32, i32) {
    %c0_i32 = arith.constant 0 : i32
    %c0_i32_0 = arith.constant 0 : i32
    %c0_i32_1 = arith.constant 0 : i32
    return %c0_i32, %c0_i32_0 : i32, i32
  }
  func.func @transform_5(%arg0: i32) -> (i32, i32) {
    %c0_i32 = arith.constant 0 : i32
    %c0_i32_0 = arith.constant 0 : i32
    %c0_i32_1 = arith.constant 0 : i32
    return %c0_i32, %c0_i32_0 : i32, i32
  }
  func.func @transform_6(%arg0: i32) -> (i32, i32) {
    %c0_i32 = arith.constant 0 : i32
    %c0_i32_0 = arith.constant 0 : i32
    %c0_i32_1 = arith.constant 0 : i32
    return %c0_i32, %c0_i32_0 : i32, i32
  }
  func.func @transform_7(%arg0: i32) -> (i32, i32) {
    %c0_i32 = arith.constant 0 : i32
    %c0_i32_0 = arith.constant 0 : i32
    return %arg0, %c0_i32 : i32, i32
  }
}

</mosaic_0001>

<llo_original>
// kernel: model_forward.1
$region0: #{model_forward.1}
  #allocation0 [shape = 'u32[]', space=smem, size = 0x4, offset = 0x4, fixed_abs, tag = 'smem constant byte address 0x4 - core index']
  #allocation1 [shape = 'u32[144,128]{1,0:T(1,128)}', space=vmem, size = 0x12000, scoped, tag = 'internal scratch']
  %s0 = inlined_call_operand.vmem [shape: bf16[2,130], index: 0, kind: input, shape index: {}]
  %s1 = inlined_call_operand.hbm [shape: bf16[130,3380], index: 1, kind: input, shape index: {}]
  %s2 = inlined_call_operand.hbm [shape: f32[1,3380], index: 2, kind: input, shape index: {}]
  %s3 = inlined_call_operand.hbm [shape: f32[3380,128], index: 3, kind: input, shape index: {}]
  %s4 = inlined_call_operand.hbm [shape: f32[1,128], index: 4, kind: input, shape index: {}]
  %s5 = inlined_call_operand.vmem [shape: f32[128,7], index: 5, kind: input, shape index: {}]
  %s6 = inlined_call_operand.hbm [shape: f32[1,7], index: 6, kind: input, shape index: {}]
  %s7 = inlined_call_operand.hbm [shape: f32[2,7], index: 7, kind: output, shape index: {}]
  %s8 = sld [smem:[#allocation0]]
  $region58: #{model_forward.1} parent=0
    _
  %s10 = ssub.s32 1, %s8
  %s11 = scalar_select 0, %s10, %s8
  $region1: #{model_forward.1} parent=0
    #allocation2 [shape = 'u8[940032]{0}', space=vmem, size = 0xe5800, scoped, tag = 'input window, operand 1, single buffered']
    #allocation3 [shape = 's32[1]{0}', space=sflag, size = 0x4, scoped, tag = 'scoped memory for model_forward.1']
    #allocation4 [shape = 's32[1]{0}', space=sflag, size = 0x4, scoped, tag = 'scoped memory for model_forward.1']
    #allocation5 [shape = 'u8[13824]{0}', space=vmem, size = 0x3800, scoped, tag = 'input window, operand 2, single buffered']
    #allocation6 [shape = 's32[1]{0}', space=sflag, size = 0x4, scoped, tag = 'scoped memory for model_forward.1']
    #allocation7 [shape = 'u8[1732608]{0}', space=vmem, size = 0x1a7000, scoped, tag = 'input window, operand 3, single buffered']
    #allocation8 [shape = 'u8[512]{0}', space=vmem, size = 0x400, scoped, tag = 'input window, operand 4, single buffered']
    #allocation9 [shape = 's32[1]{0}', space=sflag, size = 0x4, scoped, tag = 'scoped memory for model_forward.1']
    #allocation10 [shape = 'u8[512]{0}', space=vmem, size = 0x400, scoped, tag = 'input window, operand 6, single buffered']
    #allocation11 [shape = 'u8[1024]{0}', space=vmem, size = 0x400, scoped, tag = 'output window, operand 0, single buffered']
    %12 = vsyncpa [#allocation3], 0
    %13 = vsyncpa [#allocation6], 0
    %14 = vsyncpa [#allocation9], 0
    %15 = vsyncpa [#allocation4], 0
    // Predicated region
    $region2: #{model_forward.1} parent=1 // pred_check
      _
    $region3: #{model_forward.1} parent=1 // pred_check_branch
      %17 = sbr.rel (0) target = $region5
    $region4: #{model_forward.1} parent=1 // pred_region
      _
    $region5: #{model_forward.1} parent=1 // pred_fallthru
      _
    // Predicated region
    $region6: #{model_forward.1} parent=1 // pred_check
      _
    $region7: #{model_forward.1} parent=1 // pred_check_branch
      %19 = sbr.rel (0) target = $region9
    $region8: #{model_forward.1} parent=1 // pred_region
      %s21 = ssub.s32 29376, 29376
      %22 = vsyncadd [#allocation3], %s21
      %s23 = sshll.u32 [#allocation2], 4
      %s24 = int_to_ptr.vmem [resolvable:$true] %s23
      %29 = dma.hbm_to_vmem [thread:$0]  %s1, 29376, %s24, [#allocation3], 1728, 1728, 108
    $region9: #{model_forward.1} parent=1 // pred_fallthru
      _
    // Predicated region
    $region10: #{model_forward.1} parent=1 // pred_check
      _
    $region11: #{model_forward.1} parent=1 // pred_check_branch
      %31 = sbr.rel (0) target = $region13
    $region12: #{model_forward.1} parent=1 // pred_region
      %s33 = ssub.s32 432, 432
      %34 = vsyncadd [#allocation6], %s33
      %s36 = sshll.u32 [#allocation5], 4
      %s37 = int_to_ptr.vmem [resolvable:$true] %s36
      %39 = dma.hbm_to_vmem [thread:$0]  %s2, 432, %s37, [#allocation6]
    $region13: #{model_forward.1} parent=1 // pred_fallthru
      _
    // Predicated region
    $region14: #{model_forward.1} parent=1 // pred_check
      _
    $region15: #{model_forward.1} parent=1 // pred_check_branch
      %41 = sbr.rel (0) target = $region17
    $region16: #{model_forward.1} parent=1 // pred_region
      %s43 = ssub.s32 54144, 54144
      %44 = vsyncadd [#allocation6], %s43
      %s45 = sshll.u32 [#allocation7], 4
      %s46 = int_to_ptr.vmem [resolvable:$true] %s45
      %51 = dma.hbm_to_vmem [thread:$0]  %s3, 54144, %s46, [#allocation6], 128, 128, 8
    $region17: #{model_forward.1} parent=1 // pred_fallthru
      _
    // Predicated region
    $region18: #{model_forward.1} parent=1 // pred_check
      _
    $region19: #{model_forward.1} parent=1 // pred_check_branch
      %53 = sbr.rel (0) target = $region21
    $region20: #{model_forward.1} parent=1 // pred_region
      %s55 = ssub.s32 16, 16
      %56 = vsyncadd [#allocation9], %s55
      %s58 = sshll.u32 [#allocation8], 4
      %s59 = int_to_ptr.vmem [resolvable:$true] %s58
      %61 = dma.hbm_to_vmem [thread:$0]  %s4, 16, %s59, [#allocation9]
    $region21: #{model_forward.1} parent=1 // pred_fallthru
      _
    // Predicated region
    $region22: #{model_forward.1} parent=1 // pred_check
      _
    $region23: #{model_forward.1} parent=1 // pred_check_branch
      %63 = sbr.rel (0) target = $region25
    $region24: #{model_forward.1} parent=1 // pred_region
      _
    $region25: #{model_forward.1} parent=1 // pred_fallthru
      _
    // Predicated region
    $region26: #{model_forward.1} parent=1 // pred_check
      _
    $region27: #{model_forward.1} parent=1 // pred_check_branch
      %65 = sbr.rel (0) target = $region29
    $region28: #{model_forward.1} parent=1 // pred_region
      %s67 = ssub.s32 16, 16
      %68 = vsyncadd [#allocation9], %s67
      %s70 = sshll.u32 [#allocation10], 4
      %s71 = int_to_ptr.vmem [resolvable:$true] %s70
      %73 = dma.hbm_to_vmem [thread:$0]  %s6, 16, %s71, [#allocation9]
    $region29: #{model_forward.1} parent=1 // pred_fallthru
      _
    // Predicated region
    $region30: #{model_forward.1} parent=1 // pred_check
      _
    $region31: #{model_forward.1} parent=1 // pred_check_branch
      %75 = sbr.rel (0) target = $region33
    $region32: #{model_forward.1} parent=1 // pred_region
      %76 = dma.done [#allocation3], 29376
    $region33: #{model_forward.1} parent=1 // pred_fallthru
      _
    // Predicated region
    $region34: #{model_forward.1} parent=1 // pred_check
      _
    $region35: #{model_forward.1} parent=1 // pred_check_branch
      %78 = sbr.rel (0) target = $region37
    $region36: #{model_forward.1} parent=1 // pred_region
      %79 = dma.done [#allocation6], 432
    $region37: #{model_forward.1} parent=1 // pred_fallthru
      _
    // Predicated region
    $region38: #{model_forward.1} parent=1 // pred_check
      _
    $region39: #{model_forward.1} parent=1 // pred_check_branch
      %81 = sbr.rel (0) target = $region41
    $region40: #{model_forward.1} parent=1 // pred_region
      %82 = dma.done [#allocation6], 54144
    $region41: #{model_forward.1} parent=1 // pred_fallthru
      _
    // Predicated region
    $region42: #{model_forward.1} parent=1 // pred_check
      _
    $region43: #{model_forward.1} parent=1 // pred_check_branch
      %84 = sbr.rel (0) target = $region45
    $region44: #{model_forward.1} parent=1 // pred_region
      %85 = dma.done [#allocation9], 16
    $region45: #{model_forward.1} parent=1 // pred_fallthru
      _
    // Predicated region
    $region46: #{model_forward.1} parent=1 // pred_check
      _
    $region47: #{model_forward.1} parent=1 // pred_check_branch
      %87 = sbr.rel (0) target = $region49
    $region48: #{model_forward.1} parent=1 // pred_region
      %88 = dma.done [#allocation9], 16
    $region49: #{model_forward.1} parent=1 // pred_fallthru
      _
    %v90 = vld [vmem:[%s0] sm:$0x3]
    %v91 = vld [vmem:[#allocation2] sm:$0xff]
    %v92 = vld [vmem:[#allocation2 + $0x8] sm:$0xff]
    %v93 = vld [vmem:[#allocation2 + $0x10] sm:$0xff]
    %v94 = vld [vmem:[#allocation2 + $0x18] sm:$0xff]
    %v95 = vld [vmem:[#allocation2 + $0x20] sm:$0xff]
    %v96 = vld [vmem:[#allocation2 + $0x28] sm:$0xff]
    %v97 = vld [vmem:[#allocation2 + $0x30] sm:$0xff]
    %v98 = vld [vmem:[#allocation2 + $0x38] sm:$0xff]
    %v99 = vld [vmem:[#allocation2 + $0x40] sm:$0xff]
    %v100 = vld [vmem:[#allocation2 + $0x48] sm:$0xff]
    %v101 = vld [vmem:[#allocation2 + $0x50] sm:$0xff]
    %v102 = vld [vmem:[#allocation2 + $0x58] sm:$0xff]
    %v103 = vld [vmem:[#allocation2 + $0x60] sm:$0xff]
    %v104 = vld [vmem:[#allocation2 + $0x68] sm:$0xf]
    %v105 = vld [vmem:[#allocation2 + $0x6c] sm:$0xff]
    %v106 = vld [vmem:[#allocation2 + $0x74] sm:$0xff]
    %v107 = vld [vmem:[#allocation2 + $0x7c] sm:$0xff]
    %v108 = vld [vmem:[#allocation2 + $0x84] sm:$0xff]
    %v109 = vld [vmem:[#allocation2 + $0x8c] sm:$0xff]
    %v110 = vld [vmem:[#allocation2 + $0x94] sm:$0xff]
    %v111 = vld [vmem:[#allocation2 + $0x9c] sm:$0xff]
    %v112 = vld [vmem:[#allocation2 + $0xa4] sm:$0xff]
    %v113 = vld [vmem:[#allocation2 + $0xac] sm:$0xff]
    %v114 = vld [vmem:[#allocation2 + $0xb4] sm:$0xff]
    %v115 = vld [vmem:[#allocation2 + $0xbc] sm:$0xff]
    %v116 = vld [vmem:[#allocation2 + $0xc4] sm:$0xff]
    %v117 = vld [vmem:[#allocation2 + $0xcc] sm:$0xff]
    %v118 = vld [vmem:[#allocation2 + $0xd4] sm:$0xf]
    %v119 = vld [vmem:[#allocation2 + $0xd8] sm:$0xff]
    %v120 = vld [vmem:[#allocation2 + $0xe0] sm:$0xff]
    %v121 = vld [vmem:[#allocation2 + $0xe8] sm:$0xff]
    %v122 = vld [vmem:[#allocation2 + $0xf0] sm:$0xff]
    %v123 = vld [vmem:[#allocation2 + $0xf8] sm:$0xff]
    %v124 = vld [vmem:[#allocation2 + $0x100] sm:$0xff]
    %v125 = vld [vmem:[#allocation2 + $0x108] sm:$0xff]
    %v126 = vld [vmem:[#allocation2 + $0x110] sm:$0xff]
    %v127 = vld [vmem:[#allocation2 + $0x118] sm:$0xff]
    %v128 = vld [vmem:[#allocation2 + $0x120] sm:$0xff]
    %v129 = vld [vmem:[#allocation2 + $0x128] sm:$0xff]
    %v130 = vld [vmem:[#allocation2 + $0x130] sm:$0xff]
    %v131 = vld [vmem:[#allocation2 + $0x138] sm:$0xff]
    %v132 = vld [vmem:[#allocation2 + $0x140] sm:$0xf]
    %v133 = vld [vmem:[#allocation2 + $0x144] sm:$0xff]
    %v134 = vld [vmem:[#allocation2 + $0x14c] sm:$0xff]
    %v135 = vld [vmem:[#allocation2 + $0x154] sm:$0xff]
    %v136 = vld [vmem:[#allocation2 + $0x15c] sm:$0xff]
    %v137 = vld [vmem:[#allocation2 + $0x164] sm:$0xff]
    %v138 = vld [vmem:[#allocation2 + $0x16c] sm:$0xff]
    %v139 = vld [vmem:[#allocation2 + $0x174] sm:$0xff]
    %v140 = vld [vmem:[#allocation2 + $0x17c] sm:$0xff]
    %v141 = vld [vmem:[#allocation2 + $0x184] sm:$0xff]
    %v142 = vld [vmem:[#allocation2 + $0x18c] sm:$0xff]
    %v143 = vld [vmem:[#allocation2 + $0x194] sm:$0xff]
    %v144 = vld [vmem:[#allocation2 + $0x19c] sm:$0xff]
    %v145 = vld [vmem:[#allocation2 + $0x1a4] sm:$0xff]
    %v146 = vld [vmem:[#allocation2 + $0x1ac] sm:$0xf]
    %v147 = vld [vmem:[#allocation2 + $0x1b0] sm:$0xff]
    %v148 = vld [vmem:[#allocation2 + $0x1b8] sm:$0xff]
    %v149 = vld [vmem:[#allocation2 + $0x1c0] sm:$0xff]
    %v150 = vld [vmem:[#allocation2 + $0x1c8] sm:$0xff]
    %v151 = vld [vmem:[#allocation2 + $0x1d0] sm:$0xff]
    %v152 = vld [vmem:[#allocation2 + $0x1d8] sm:$0xff]
    %v153 = vld [vmem:[#allocation2 + $0x1e0] sm:$0xff]
    %v154 = vld [vmem:[#allocation2 + $0x1e8] sm:$0xff]
    %v155 = vld [vmem:[#allocation2 + $0x1f0] sm:$0xff]
    %v156 = vld [vmem:[#allocation2 + $0x1f8] sm:$0xff]
    %v157 = vld [vmem:[#allocation2 + $0x200] sm:$0xff]
    %v158 = vld [vmem:[#allocation2 + $0x208] sm:$0xff]
    %v159 = vld [vmem:[#allocation2 + $0x210] sm:$0xff]
    %v160 = vld [vmem:[#allocation2 + $0x218] sm:$0xf]
    %v161 = vld [vmem:[#allocation2 + $0x21c] sm:$0xff]
    %v162 = vld [vmem:[#allocation2 + $0x224] sm:$0xff]
    %v163 = vld [vmem:[#allocation2 + $0x22c] sm:$0xff]
    %v164 = vld [vmem:[#allocation2 + $0x234] sm:$0xff]
    %v165 = vld [vmem:[#allocation2 + $0x23c] sm:$0xff]
    %v166 = vld [vmem:[#allocation2 + $0x244] sm:$0xff]
    %v167 = vld [vmem:[#allocation2 + $0x24c] sm:$0xff]
    %v168 = vld [vmem:[#allocation2 + $0x254] sm:$0xff]
    %v169 = vld [vmem:[#allocation2 + $0x25c] sm:$0xff]
    %v170 = vld [vmem:[#allocation2 + $0x264] sm:$0xff]
    %v171 = vld [vmem:[#allocation2 + $0x26c] sm:$0xff]
    %v172 = vld [vmem:[#allocation2 + $0x274] sm:$0xff]
    %v173 = vld [vmem:[#allocation2 + $0x27c] sm:$0xff]
    %v174 = vld [vmem:[#allocation2 + $0x284] sm:$0xf]
    %v175 = vld [vmem:[#allocation2 + $0x288] sm:$0xff]
    %v176 = vld [vmem:[#allocation2 + $0x290] sm:$0xff]
    %v177 = vld [vmem:[#allocation2 + $0x298] sm:$0xff]
    %v178 = vld [vmem:[#allocation2 + $0x2a0] sm:$0xff]
    %v179 = vld [vmem:[#allocation2 + $0x2a8] sm:$0xff]
    %v180 = vld [vmem:[#allocation2 + $0x2b0] sm:$0xff]
    %v181 = vld [vmem:[#allocation2 + $0x2b8] sm:$0xff]
    %v182 = vld [vmem:[#allocation2 + $0x2c0] sm:$0xff]
    %v183 = vld [vmem:[#allocation2 + $0x2c8] sm:$0xff]
    %v184 = vld [vmem:[#allocation2 + $0x2d0] sm:$0xff]
    %v185 = vld [vmem:[#allocation2 + $0x2d8] sm:$0xff]
    %v186 = vld [vmem:[#allocation2 + $0x2e0] sm:$0xff]
    %v187 = vld [vmem:[#allocation2 + $0x2e8] sm:$0xff]
    %v188 = vld [vmem:[#allocation2 + $0x2f0] sm:$0xf]
    %v189 = vld [vmem:[#allocation2 + $0x2f4] sm:$0xff]
    %v190 = vld [vmem:[#allocation2 + $0x2fc] sm:$0xff]
    %v191 = vld [vmem:[#allocation2 + $0x304] sm:$0xff]
    %v192 = vld [vmem:[#allocation2 + $0x30c] sm:$0xff]
    %v193 = vld [vmem:[#allocation2 + $0x314] sm:$0xff]
    %v194 = vld [vmem:[#allocation2 + $0x31c] sm:$0xff]
    %v195 = vld [vmem:[#allocation2 + $0x324] sm:$0xff]
    %v196 = vld [vmem:[#allocation2 + $0x32c] sm:$0xff]
    %v197 = vld [vmem:[#allocation2 + $0x334] sm:$0xff]
    %v198 = vld [vmem:[#allocation2 + $0x33c] sm:$0xff]
    %v199 = vld [vmem:[#allocation2 + $0x344] sm:$0xff]
    %v200 = vld [vmem:[#allocation2 + $0x34c] sm:$0xff]
    %v201 = vld [vmem:[#allocation2 + $0x354] sm:$0xff]
    %v202 = vld [vmem:[#allocation2 + $0x35c] sm:$0xf]
    %v203 = vld [vmem:[#allocation2 + $0x360] sm:$0xff]
    %v204 = vld [vmem:[#allocation2 + $0x368] sm:$0xff]
    %v205 = vld [vmem:[#allocation2 + $0x370] sm:$0xff]
    %v206 = vld [vmem:[#allocation2 + $0x378] sm:$0xff]
    %v207 = vld [vmem:[#allocation2 + $0x380] sm:$0xff]
    %v208 = vld [vmem:[#allocation2 + $0x388] sm:$0xff]
    %v209 = vld [vmem:[#allocation2 + $0x390] sm:$0xff]
    %v210 = vld [vmem:[#allocation2 + $0x398] sm:$0xff]
    %v211 = vld [vmem:[#allocation2 + $0x3a0] sm:$0xff]
    %v212 = vld [vmem:[#allocation2 + $0x3a8] sm:$0xff]
    %v213 = vld [vmem:[#allocation2 + $0x3b0] sm:$0xff]
    %v214 = vld [vmem:[#allocation2 + $0x3b8] sm:$0xff]
    %v215 = vld [vmem:[#allocation2 + $0x3c0] sm:$0xff]
    %v216 = vld [vmem:[#allocation2 + $0x3c8] sm:$0xf]
    %v217 = vld [vmem:[#allocation2 + $0x3cc] sm:$0xff]
    %v218 = vld [vmem:[#allocation2 + $0x3d4] sm:$0xff]
    %v219 = vld [vmem:[#allocation2 + $0x3dc] sm:$0xff]
    %v220 = vld [vmem:[#allocation2 + $0x3e4] sm:$0xff]
    %v221 = vld [vmem:[#allocation2 + $0x3ec] sm:$0xff]
    %v222 = vld [vmem:[#allocation2 + $0x3f4] sm:$0xff]
    %v223 = vld [vmem:[#allocation2 + $0x3fc] sm:$0xff]
    %v224 = vld [vmem:[#allocation2 + $0x404] sm:$0xff]
    %v225 = vld [vmem:[#allocation2 + $0x40c] sm:$0xff]
    %v226 = vld [vmem:[#allocation2 + $0x414] sm:$0xff]
    %v227 = vld [vmem:[#allocation2 + $0x41c] sm:$0xff]
    %v228 = vld [vmem:[#allocation2 + $0x424] sm:$0xff]
    %v229 = vld [vmem:[#allocation2 + $0x42c] sm:$0xff]
    %v230 = vld [vmem:[#allocation2 + $0x434] sm:$0xf]
    %v231 = vld [vmem:[#allocation2 + $0x438] sm:$0xff]
    %v232 = vld [vmem:[#allocation2 + $0x440] sm:$0xff]
    %v233 = vld [vmem:[#allocation2 + $0x448] sm:$0xff]
    %v234 = vld [vmem:[#allocation2 + $0x450] sm:$0xff]
    %v235 = vld [vmem:[#allocation2 + $0x458] sm:$0xff]
    %v236 = vld [vmem:[#allocation2 + $0x460] sm:$0xff]
    %v237 = vld [vmem:[#allocation2 + $0x468] sm:$0xff]
    %v238 = vld [vmem:[#allocation2 + $0x470] sm:$0xff]
    %v239 = vld [vmem:[#allocation2 + $0x478] sm:$0xff]
    %v240 = vld [vmem:[#allocation2 + $0x480] sm:$0xff]
    %v241 = vld [vmem:[#allocation2 + $0x488] sm:$0xff]
    %v242 = vld [vmem:[#allocation2 + $0x490] sm:$0xff]
    %v243 = vld [vmem:[#allocation2 + $0x498] sm:$0xff]
    %v244 = vld [vmem:[#allocation2 + $0x4a0] sm:$0xf]
    %v245 = vld [vmem:[#allocation2 + $0x4a4] sm:$0xff]
    %v246 = vld [vmem:[#allocation2 + $0x4ac] sm:$0xff]
    %v247 = vld [vmem:[#allocation2 + $0x4b4] sm:$0xff]
    %v248 = vld [vmem:[#allocation2 + $0x4bc] sm:$0xff]
    %v249 = vld [vmem:[#allocation2 + $0x4c4] sm:$0xff]
    %v250 = vld [vmem:[#allocation2 + $0x4cc] sm:$0xff]
    %v251 = vld [vmem:[#allocation2 + $0x4d4] sm:$0xff]
    %v252 = vld [vmem:[#allocation2 + $0x4dc] sm:$0xff]
    %v253 = vld [vmem:[#allocation2 + $0x4e4] sm:$0xff]
    %v254 = vld [vmem:[#allocation2 + $0x4ec] sm:$0xff]
    %v255 = vld [vmem:[#allocation2 + $0x4f4] sm:$0xff]
    %v256 = vld [vmem:[#allocation2 + $0x4fc] sm:$0xff]
    %v257 = vld [vmem:[#allocation2 + $0x504] sm:$0xff]
    %v258 = vld [vmem:[#allocation2 + $0x50c] sm:$0xf]
    %v259 = vld [vmem:[#allocation2 + $0x510] sm:$0xff]
    %v260 = vld [vmem:[#allocation2 + $0x518] sm:$0xff]
    %v261 = vld [vmem:[#allocation2 + $0x520] sm:$0xff]
    %v262 = vld [vmem:[#allocation2 + $0x528] sm:$0xff]
    %v263 = vld [vmem:[#allocation2 + $0x530] sm:$0xff]
    %v264 = vld [vmem:[#allocation2 + $0x538] sm:$0xff]
    %v265 = vld [vmem:[#allocation2 + $0x540] sm:$0xff]
    %v266 = vld [vmem:[#allocation2 + $0x548] sm:$0xff]
    %v267 = vld [vmem:[#allocation2 + $0x550] sm:$0xff]
    %v268 = vld [vmem:[#allocation2 + $0x558] sm:$0xff]
    %v269 = vld [vmem:[#allocation2 + $0x560] sm:$0xff]
    %v270 = vld [vmem:[#allocation2 + $0x568] sm:$0xff]
    %v271 = vld [vmem:[#allocation2 + $0x570] sm:$0xff]
    %v272 = vld [vmem:[#allocation2 + $0x578] sm:$0xf]
    %v273 = vld [vmem:[#allocation2 + $0x57c] sm:$0xff]
    %v274 = vld [vmem:[#allocation2 + $0x584] sm:$0xff]
    %v275 = vld [vmem:[#allocation2 + $0x58c] sm:$0xff]
    %v276 = vld [vmem:[#allocation2 + $0x594] sm:$0xff]
    %v277 = vld [vmem:[#allocation2 + $0x59c] sm:$0xff]
    %v278 = vld [vmem:[#allocation2 + $0x5a4] sm:$0xff]
    %v279 = vld [vmem:[#allocation2 + $0x5ac] sm:$0xff]
    %v280 = vld [vmem:[#allocation2 + $0x5b4] sm:$0xff]
    %v281 = vld [vmem:[#allocation2 + $0x5bc] sm:$0xff]
    %v282 = vld [vmem:[#allocation2 + $0x5c4] sm:$0xff]
    %v283 = vld [vmem:[#allocation2 + $0x5cc] sm:$0xff]
    %v284 = vld [vmem:[#allocation2 + $0x5d4] sm:$0xff]
    %v285 = vld [vmem:[#allocation2 + $0x5dc] sm:$0xff]
    %v286 = vld [vmem:[#allocation2 + $0x5e4] sm:$0xf]
    %v287 = vld [vmem:[#allocation2 + $0x5e8] sm:$0xff]
    %v288 = vld [vmem:[#allocation2 + $0x5f0] sm:$0xff]
    %v289 = vld [vmem:[#allocation2 + $0x5f8] sm:$0xff]
    %v290 = vld [vmem:[#allocation2 + $0x600] sm:$0xff]
    %v291 = vld [vmem:[#allocation2 + $0x608] sm:$0xff]
    %v292 = vld [vmem:[#allocation2 + $0x610] sm:$0xff]
    %v293 = vld [vmem:[#allocation2 + $0x618] sm:$0xff]
    %v294 = vld [vmem:[#allocation2 + $0x620] sm:$0xff]
    %v295 = vld [vmem:[#allocation2 + $0x628] sm:$0xff]
    %v296 = vld [vmem:[#allocation2 + $0x630] sm:$0xff]
    %v297 = vld [vmem:[#allocation2 + $0x638] sm:$0xff]
    %v298 = vld [vmem:[#allocation2 + $0x640] sm:$0xff]
    %v299 = vld [vmem:[#allocation2 + $0x648] sm:$0xff]
    %v300 = vld [vmem:[#allocation2 + $0x650] sm:$0xf]
    %v301 = vld [vmem:[#allocation2 + $0x654] sm:$0xff]
    %v302 = vld [vmem:[#allocation2 + $0x65c] sm:$0xff]
    %v303 = vld [vmem:[#allocation2 + $0x664] sm:$0xff]
    %v304 = vld [vmem:[#allocation2 + $0x66c] sm:$0xff]
    %v305 = vld [vmem:[#allocation2 + $0x674] sm:$0xff]
    %v306 = vld [vmem:[#allocation2 + $0x67c] sm:$0xff]
    %v307 = vld [vmem:[#allocation2 + $0x684] sm:$0xff]
    %v308 = vld [vmem:[#allocation2 + $0x68c] sm:$0xff]
    %v309 = vld [vmem:[#allocation2 + $0x694] sm:$0xff]
    %v310 = vld [vmem:[#allocation2 + $0x69c] sm:$0xff]
    %v311 = vld [vmem:[#allocation2 + $0x6a4] sm:$0xff]
    %v312 = vld [vmem:[#allocation2 + $0x6ac] sm:$0xff]
    %v313 = vld [vmem:[#allocation2 + $0x6b4] sm:$0xff]
    %v314 = vld [vmem:[#allocation2 + $0x6bc] sm:$0xf]
    %v315 = vld [vmem:[#allocation2 + $0x6c0] sm:$0x11]
    %v316 = vld [vmem:[#allocation2 + $0x6c8] sm:$0x11]
    %v317 = vld [vmem:[#allocation2 + $0x6d0] sm:$0x11]
    %v318 = vld [vmem:[#allocation2 + $0x6d8] sm:$0x11]
    %v319 = vld [vmem:[#allocation2 + $0x6e0] sm:$0x11]
    %v320 = vld [vmem:[#allocation2 + $0x6e8] sm:$0x11]
    %v321 = vld [vmem:[#allocation2 + $0x6f0] sm:$0x11]
    %v322 = vld [vmem:[#allocation2 + $0x6f8] sm:$0x11]
    %v323 = vld [vmem:[#allocation2 + $0x700] sm:$0x11]
    %v324 = vld [vmem:[#allocation2 + $0x708] sm:$0x11]
    %v325 = vld [vmem:[#allocation2 + $0x710] sm:$0x11]
    %v326 = vld [vmem:[#allocation2 + $0x718] sm:$0x11]
    %v327 = vld [vmem:[#allocation2 + $0x720] sm:$0x11]
    %v328 = vld [vmem:[#allocation2 + $0x728] sm:$0x1]
    %v331 = vunpack.c.l.s4 1966171168
    %v332 = vunpack.c.0.s8 %v331
    %v333 = vlaneseq
    %v334 = vshrl.u32 %v333, 7
    %v335 = vsub.s32 %v332, %v334
    %v336 = vrot.slane %v90, %v335
    %v337 = vcombine.high %v336, %v336
    %v339 = vunpack.c.l.s4 1966171168
    %v340 = vunpack.c.0.s8 %v339
    %v341 = vlaneseq
    %v342 = vshrl.u32 %v341, 7
    %v343 = vsub.s32 %v340, %v342
    %v344 = vrot.slane %v336, %v343
    %v346 = vunpack.c.l.s4 1966171168
    %v347 = vunpack.c.0.s8 %v346
    %v348 = vlaneseq
    %v349 = vshrl.u32 %v348, 7
    %v350 = vsub.s32 %v347, %v349
    %v351 = vrot.slane %v337, %v350
    %v591 = vunpack.c.l.b16 %v91
    %v592 = vunpack.c.h.b16 %v91
    %v593 = vunpack.c.l.b16 %v92
    %v594 = vunpack.c.h.b16 %v92
    %v595 = vunpack.c.l.b16 %v93
    %v596 = vunpack.c.h.b16 %v93
    %v597 = vunpack.c.l.b16 %v94
    %v598 = vunpack.c.h.b16 %v94
    %v599 = vunpack.c.l.b16 %v95
    %v600 = vunpack.c.h.b16 %v95
    %v601 = vunpack.c.l.b16 %v96
    %v602 = vunpack.c.h.b16 %v96
    %v603 = vunpack.c.l.b16 %v97
    %v604 = vunpack.c.h.b16 %v97
    %v605 = vunpack.c.l.b16 %v98
    %v606 = vunpack.c.h.b16 %v98
    %v607 = vunpack.c.l.b16 %v99
    %v608 = vunpack.c.h.b16 %v99
    %v609 = vunpack.c.l.b16 %v100
    %v610 = vunpack.c.h.b16 %v100
    %v611 = vunpack.c.l.b16 %v101
    %v612 = vunpack.c.h.b16 %v101
    %v613 = vunpack.c.l.b16 %v102
    %v614 = vunpack.c.h.b16 %v102
    %v615 = vunpack.c.l.b16 %v103
    %v616 = vunpack.c.h.b16 %v103
    %v617 = vunpack.c.l.b16 %v104
    %v618 = vunpack.c.l.b16 %v105
    %v619 = vunpack.c.h.b16 %v105
    %v620 = vunpack.c.l.b16 %v106
    %v621 = vunpack.c.h.b16 %v106
    %v622 = vunpack.c.l.b16 %v107
    %v623 = vunpack.c.h.b16 %v107
    %v624 = vunpack.c.l.b16 %v108
    %v625 = vunpack.c.h.b16 %v108
    %v626 = vunpack.c.l.b16 %v109
    %v627 = vunpack.c.h.b16 %v109
    %v628 = vunpack.c.l.b16 %v110
    %v629 = vunpack.c.h.b16 %v110
    %v630 = vunpack.c.l.b16 %v111
    %v631 = vunpack.c.h.b16 %v111
    %v632 = vunpack.c.l.b16 %v112
    %v633 = vunpack.c.h.b16 %v112
    %v634 = vunpack.c.l.b16 %v113
    %v635 = vunpack.c.h.b16 %v113
    %v636 = vunpack.c.l.b16 %v114
    %v637 = vunpack.c.h.b16 %v114
    %v638 = vunpack.c.l.b16 %v115
    %v639 = vunpack.c.h.b16 %v115
    %v640 = vunpack.c.l.b16 %v116
    %v641 = vunpack.c.h.b16 %v116
    %v642 = vunpack.c.l.b16 %v117
    %v643 = vunpack.c.h.b16 %v117
    %v644 = vunpack.c.l.b16 %v118
    %v645 = vunpack.c.l.b16 %v119
    %v646 = vunpack.c.h.b16 %v119
    %v647 = vunpack.c.l.b16 %v120
    %v648 = vunpack.c.h.b16 %v120
    %v649 = vunpack.c.l.b16 %v121
    %v650 = vunpack.c.h.b16 %v121
    %v651 = vunpack.c.l.b16 %v122
    %v652 = vunpack.c.h.b16 %v122
    %v653 = vunpack.c.l.b16 %v123
    %v654 = vunpack.c.h.b16 %v123
    %v655 = vunpack.c.l.b16 %v124
    %v656 = vunpack.c.h.b16 %v124
    %v657 = vunpack.c.l.b16 %v125
    %v658 = vunpack.c.h.b16 %v125
    %v659 = vunpack.c.l.b16 %v126
    %v660 = vunpack.c.h.b16 %v126
    %v661 = vunpack.c.l.b16 %v127
    %v662 = vunpack.c.h.b16 %v127
    %v663 = vunpack.c.l.b16 %v128
    %v664 = vunpack.c.h.b16 %v128
    %v665 = vunpack.c.l.b16 %v129
    %v666 = vunpack.c.h.b16 %v129
    %v667 = vunpack.c.l.b16 %v130
    %v668 = vunpack.c.h.b16 %v130
    %v669 = vunpack.c.l.b16 %v131
    %v670 = vunpack.c.h.b16 %v131
    %v671 = vunpack.c.l.b16 %v132
    %v672 = vunpack.c.l.b16 %v133
    %v673 = vunpack.c.h.b16 %v133
    %v674 = vunpack.c.l.b16 %v134
    %v675 = vunpack.c.h.b16 %v134
    %v676 = vunpack.c.l.b16 %v135
    %v677 = vunpack.c.h.b16 %v135
    %v678 = vunpack.c.l.b16 %v136
    %v679 = vunpack.c.h.b16 %v136
    %v680 = vunpack.c.l.b16 %v137
    %v681 = vunpack.c.h.b16 %v137
    %v682 = vunpack.c.l.b16 %v138
    %v683 = vunpack.c.h.b16 %v138
    %v684 = vunpack.c.l.b16 %v139
    %v685 = vunpack.c.h.b16 %v139
    %v686 = vunpack.c.l.b16 %v140
    %v687 = vunpack.c.h.b16 %v140
    %v688 = vunpack.c.l.b16 %v141
    %v689 = vunpack.c.h.b16 %v141
    %v690 = vunpack.c.l.b16 %v142
    %v691 = vunpack.c.h.b16 %v142
    %v692 = vunpack.c.l.b16 %v143
    %v693 = vunpack.c.h.b16 %v143
    %v694 = vunpack.c.l.b16 %v144
    %v695 = vunpack.c.h.b16 %v144
    %v696 = vunpack.c.l.b16 %v145
    %v697 = vunpack.c.h.b16 %v145
    %v698 = vunpack.c.l.b16 %v146
    %v699 = vunpack.c.l.b16 %v147
    %v700 = vunpack.c.h.b16 %v147
    %v701 = vunpack.c.l.b16 %v148
    %v702 = vunpack.c.h.b16 %v148
    %v703 = vunpack.c.l.b16 %v149
    %v704 = vunpack.c.h.b16 %v149
    %v705 = vunpack.c.l.b16 %v150
    %v706 = vunpack.c.h.b16 %v150
    %v707 = vunpack.c.l.b16 %v151
    %v708 = vunpack.c.h.b16 %v151
    %v709 = vunpack.c.l.b16 %v152
    %v710 = vunpack.c.h.b16 %v152
    %v711 = vunpack.c.l.b16 %v153
    %v712 = vunpack.c.h.b16 %v153
    %v713 = vunpack.c.l.b16 %v154
    %v714 = vunpack.c.h.b16 %v154
    %v715 = vunpack.c.l.b16 %v155
    %v716 = vunpack.c.h.b16 %v155
    %v717 = vunpack.c.l.b16 %v156
    %v718 = vunpack.c.h.b16 %v156
    %v719 = vunpack.c.l.b16 %v157
    %v720 = vunpack.c.h.b16 %v157
    %v721 = vunpack.c.l.b16 %v158
    %v722 = vunpack.c.h.b16 %v158
    %v723 = vunpack.c.l.b16 %v159
    %v724 = vunpack.c.h.b16 %v159
    %v725 = vunpack.c.l.b16 %v160
    %v726 = vunpack.c.l.b16 %v161
    %v727 = vunpack.c.h.b16 %v161
    %v728 = vunpack.c.l.b16 %v162
    %v729 = vunpack.c.h.b16 %v162
    %v730 = vunpack.c.l.b16 %v163
    %v731 = vunpack.c.h.b16 %v163
    %v732 = vunpack.c.l.b16 %v164
    %v733 = vunpack.c.h.b16 %v164
    %v734 = vunpack.c.l.b16 %v165
    %v735 = vunpack.c.h.b16 %v165
    %v736 = vunpack.c.l.b16 %v166
    %v737 = vunpack.c.h.b16 %v166
    %v738 = vunpack.c.l.b16 %v167
    %v739 = vunpack.c.h.b16 %v167
    %v740 = vunpack.c.l.b16 %v168
    %v741 = vunpack.c.h.b16 %v168
    %v742 = vunpack.c.l.b16 %v169
    %v743 = vunpack.c.h.b16 %v169
    %v744 = vunpack.c.l.b16 %v170
    %v745 = vunpack.c.h.b16 %v170
    %v746 = vunpack.c.l.b16 %v171
    %v747 = vunpack.c.h.b16 %v171
    %v748 = vunpack.c.l.b16 %v172
    %v749 = vunpack.c.h.b16 %v172
    %v750 = vunpack.c.l.b16 %v173
    %v751 = vunpack.c.h.b16 %v173
    %v752 = vunpack.c.l.b16 %v174
    %v753 = vunpack.c.l.b16 %v175
    %v754 = vunpack.c.h.b16 %v175
    %v755 = vunpack.c.l.b16 %v176
    %v756 = vunpack.c.h.b16 %v176
    %v757 = vunpack.c.l.b16 %v177
    %v758 = vunpack.c.h.b16 %v177
    %v759 = vunpack.c.l.b16 %v178
    %v760 = vunpack.c.h.b16 %v178
    %v761 = vunpack.c.l.b16 %v179
    %v762 = vunpack.c.h.b16 %v179
    %v763 = vunpack.c.l.b16 %v180
    %v764 = vunpack.c.h.b16 %v180
    %v765 = vunpack.c.l.b16 %v181
    %v766 = vunpack.c.h.b16 %v181
    %v767 = vunpack.c.l.b16 %v182
    %v768 = vunpack.c.h.b16 %v182
    %v769 = vunpack.c.l.b16 %v183
    %v770 = vunpack.c.h.b16 %v183
    %v771 = vunpack.c.l.b16 %v184
    %v772 = vunpack.c.h.b16 %v184
    %v773 = vunpack.c.l.b16 %v185
    %v774 = vunpack.c.h.b16 %v185
    %v775 = vunpack.c.l.b16 %v186
    %v776 = vunpack.c.h.b16 %v186
    %v777 = vunpack.c.l.b16 %v187
    %v778 = vunpack.c.h.b16 %v187
    %v779 = vunpack.c.l.b16 %v188
    %v780 = vunpack.c.l.b16 %v189
    %v781 = vunpack.c.h.b16 %v189
    %v782 = vunpack.c.l.b16 %v190
    %v783 = vunpack.c.h.b16 %v190
    %v784 = vunpack.c.l.b16 %v191
    %v785 = vunpack.c.h.b16 %v191
    %v786 = vunpack.c.l.b16 %v192
    %v787 = vunpack.c.h.b16 %v192
    %v788 = vunpack.c.l.b16 %v193
    %v789 = vunpack.c.h.b16 %v193
    %v790 = vunpack.c.l.b16 %v194
    %v791 = vunpack.c.h.b16 %v194
    %v792 = vunpack.c.l.b16 %v195
    %v793 = vunpack.c.h.b16 %v195
    %v794 = vunpack.c.l.b16 %v196
    %v795 = vunpack.c.h.b16 %v196
    %v796 = vunpack.c.l.b16 %v197
    %v797 = vunpack.c.h.b16 %v197
    %v798 = vunpack.c.l.b16 %v198
    %v799 = vunpack.c.h.b16 %v198
    %v800 = vunpack.c.l.b16 %v199
    %v801 = vunpack.c.h.b16 %v199
    %v802 = vunpack.c.l.b16 %v200
    %v803 = vunpack.c.h.b16 %v200
    %v804 = vunpack.c.l.b16 %v201
    %v805 = vunpack.c.h.b16 %v201
    %v806 = vunpack.c.l.b16 %v202
    %v807 = vunpack.c.l.b16 %v203
    %v808 = vunpack.c.h.b16 %v203
    %v809 = vunpack.c.l.b16 %v204
    %v810 = vunpack.c.h.b16 %v204
    %v811 = vunpack.c.l.b16 %v205
    %v812 = vunpack.c.h.b16 %v205
    %v813 = vunpack.c.l.b16 %v206
    %v814 = vunpack.c.h.b16 %v206
    %v815 = vunpack.c.l.b16 %v207
    %v816 = vunpack.c.h.b16 %v207
    %v817 = vunpack.c.l.b16 %v208
    %v818 = vunpack.c.h.b16 %v208
    %v819 = vunpack.c.l.b16 %v209
    %v820 = vunpack.c.h.b16 %v209
    %v821 = vunpack.c.l.b16 %v210
    %v822 = vunpack.c.h.b16 %v210
    %v823 = vunpack.c.l.b16 %v211
    %v824 = vunpack.c.h.b16 %v211
    %v825 = vunpack.c.l.b16 %v212
    %v826 = vunpack.c.h.b16 %v212
    %v827 = vunpack.c.l.b16 %v213
    %v828 = vunpack.c.h.b16 %v213
    %v829 = vunpack.c.l.b16 %v214
    %v830 = vunpack.c.h.b16 %v214
    %v831 = vunpack.c.l.b16 %v215
    %v832 = vunpack.c.h.b16 %v215
    %v833 = vunpack.c.l.b16 %v216
    %v834 = vunpack.c.l.b16 %v217
    %v835 = vunpack.c.h.b16 %v217
    %v836 = vunpack.c.l.b16 %v218
    %v837 = vunpack.c.h.b16 %v218
    %v838 = vunpack.c.l.b16 %v219
    %v839 = vunpack.c.h.b16 %v219
    %v840 = vunpack.c.l.b16 %v220
    %v841 = vunpack.c.h.b16 %v220
    %v842 = vunpack.c.l.b16 %v221
    %v843 = vunpack.c.h.b16 %v221
    %v844 = vunpack.c.l.b16 %v222
    %v845 = vunpack.c.h.b16 %v222
    %v846 = vunpack.c.l.b16 %v223
    %v847 = vunpack.c.h.b16 %v223
    %v848 = vunpack.c.l.b16 %v224
    %v849 = vunpack.c.h.b16 %v224
    %v850 = vunpack.c.l.b16 %v225
    %v851 = vunpack.c.h.b16 %v225
    %v852 = vunpack.c.l.b16 %v226
    %v853 = vunpack.c.h.b16 %v226
    %v854 = vunpack.c.l.b16 %v227
    %v855 = vunpack.c.h.b16 %v227
    %v856 = vunpack.c.l.b16 %v228
    %v857 = vunpack.c.h.b16 %v228
    %v858 = vunpack.c.l.b16 %v229
    %v859 = vunpack.c.h.b16 %v229
    %v860 = vunpack.c.l.b16 %v230
    %v861 = vunpack.c.l.b16 %v231
    %v862 = vunpack.c.h.b16 %v231
    %v863 = vunpack.c.l.b16 %v232
    %v864 = vunpack.c.h.b16 %v232
    %v865 = vunpack.c.l.b16 %v233
    %v866 = vunpack.c.h.b16 %v233
    %v867 = vunpack.c.l.b16 %v234
    %v868 = vunpack.c.h.b16 %v234
    %v869 = vunpack.c.l.b16 %v235
    %v870 = vunpack.c.h.b16 %v235
    %v871 = vunpack.c.l.b16 %v236
    %v872 = vunpack.c.h.b16 %v236
    %v873 = vunpack.c.l.b16 %v237
    %v874 = vunpack.c.h.b16 %v237
    %v875 = vunpack.c.l.b16 %v238
    %v876 = vunpack.c.h.b16 %v238
    %v877 = vunpack.c.l.b16 %v239
    %v878 = vunpack.c.h.b16 %v239
    %v879 = vunpack.c.l.b16 %v240
    %v880 = vunpack.c.h.b16 %v240
    %v881 = vunpack.c.l.b16 %v241
    %v882 = vunpack.c.h.b16 %v241
    %v883 = vunpack.c.l.b16 %v242
    %v884 = vunpack.c.h.b16 %v242
    %v885 = vunpack.c.l.b16 %v243
    %v886 = vunpack.c.h.b16 %v243
    %v887 = vunpack.c.l.b16 %v244
    %v888 = vunpack.c.l.b16 %v245
    %v889 = vunpack.c.h.b16 %v245
    %v890 = vunpack.c.l.b16 %v246
    %v891 = vunpack.c.h.b16 %v246
    %v892 = vunpack.c.l.b16 %v247
    %v893 = vunpack.c.h.b16 %v247
    %v894 = vunpack.c.l.b16 %v248
    %v895 = vunpack.c.h.b16 %v248
    %v896 = vunpack.c.l.b16 %v249
    %v897 = vunpack.c.h.b16 %v249
    %v898 = vunpack.c.l.b16 %v250
    %v899 = vunpack.c.h.b16 %v250
    %v900 = vunpack.c.l.b16 %v251
    %v901 = vunpack.c.h.b16 %v251
    %v902 = vunpack.c.l.b16 %v252
    %v903 = vunpack.c.h.b16 %v252
    %v904 = vunpack.c.l.b16 %v253
    %v905 = vunpack.c.h.b16 %v253
    %v906 = vunpack.c.l.b16 %v254
    %v907 = vunpack.c.h.b16 %v254
    %v908 = vunpack.c.l.b16 %v255
    %v909 = vunpack.c.h.b16 %v255
    %v910 = vunpack.c.l.b16 %v256
    %v911 = vunpack.c.h.b16 %v256
    %v912 = vunpack.c.l.b16 %v257
    %v913 = vunpack.c.h.b16 %v257
    %v914 = vunpack.c.l.b16 %v258
    %v915 = vunpack.c.l.b16 %v259
    %v916 = vunpack.c.h.b16 %v259
    %v917 = vunpack.c.l.b16 %v260
    %v918 = vunpack.c.h.b16 %v260
    %v919 = vunpack.c.l.b16 %v261
    %v920 = vunpack.c.h.b16 %v261
    %v921 = vunpack.c.l.b16 %v262
    %v922 = vunpack.c.h.b16 %v262
    %v923 = vunpack.c.l.b16 %v263
    %v924 = vunpack.c.h.b16 %v263
    %v925 = vunpack.c.l.b16 %v264
    %v926 = vunpack.c.h.b16 %v264
    %v927 = vunpack.c.l.b16 %v265
    %v928 = vunpack.c.h.b16 %v265
    %v929 = vunpack.c.l.b16 %v266
    %v930 = vunpack.c.h.b16 %v266
    %v931 = vunpack.c.l.b16 %v267
    %v932 = vunpack.c.h.b16 %v267
    %v933 = vunpack.c.l.b16 %v268
    %v934 = vunpack.c.h.b16 %v268
    %v935 = vunpack.c.l.b16 %v269
    %v936 = vunpack.c.h.b16 %v269
    %v937 = vunpack.c.l.b16 %v270
    %v938 = vunpack.c.h.b16 %v270
    %v939 = vunpack.c.l.b16 %v271
    %v940 = vunpack.c.h.b16 %v271
    %v941 = vunpack.c.l.b16 %v272
    %v942 = vunpack.c.l.b16 %v273
    %v943 = vunpack.c.h.b16 %v273
    %v944 = vunpack.c.l.b16 %v274
    %v945 = vunpack.c.h.b16 %v274
    %v946 = vunpack.c.l.b16 %v275
    %v947 = vunpack.c.h.b16 %v275
    %v948 = vunpack.c.l.b16 %v276
    %v949 = vunpack.c.h.b16 %v276
    %v950 = vunpack.c.l.b16 %v277
    %v951 = vunpack.c.h.b16 %v277
    %v952 = vunpack.c.l.b16 %v278
    %v953 = vunpack.c.h.b16 %v278
    %v954 = vunpack.c.l.b16 %v279
    %v955 = vunpack.c.h.b16 %v279
    %v956 = vunpack.c.l.b16 %v280
    %v957 = vunpack.c.h.b16 %v280
    %v958 = vunpack.c.l.b16 %v281
    %v959 = vunpack.c.h.b16 %v281
    %v960 = vunpack.c.l.b16 %v282
    %v961 = vunpack.c.h.b16 %v282
    %v962 = vunpack.c.l.b16 %v283
    %v963 = vunpack.c.h.b16 %v283
    %v964 = vunpack.c.l.b16 %v284
    %v965 = vunpack.c.h.b16 %v284
    %v966 = vunpack.c.l.b16 %v285
    %v967 = vunpack.c.h.b16 %v285
    %v968 = vunpack.c.l.b16 %v286
    %v969 = vunpack.c.l.b16 %v287
    %v970 = vunpack.c.h.b16 %v287
    %v971 = vunpack.c.l.b16 %v288
    %v972 = vunpack.c.h.b16 %v288
    %v973 = vunpack.c.l.b16 %v289
    %v974 = vunpack.c.h.b16 %v289
    %v975 = vunpack.c.l.b16 %v290
    %v976 = vunpack.c.h.b16 %v290
    %v977 = vunpack.c.l.b16 %v291
    %v978 = vunpack.c.h.b16 %v291
    %v979 = vunpack.c.l.b16 %v292
    %v980 = vunpack.c.h.b16 %v292
    %v981 = vunpack.c.l.b16 %v293
    %v982 = vunpack.c.h.b16 %v293
    %v983 = vunpack.c.l.b16 %v294
    %v984 = vunpack.c.h.b16 %v294
    %v985 = vunpack.c.l.b16 %v295
    %v986 = vunpack.c.h.b16 %v295
    %v987 = vunpack.c.l.b16 %v296
    %v988 = vunpack.c.h.b16 %v296
    %v989 = vunpack.c.l.b16 %v297
    %v990 = vunpack.c.h.b16 %v297
    %v991 = vunpack.c.l.b16 %v298
    %v992 = vunpack.c.h.b16 %v298
    %v993 = vunpack.c.l.b16 %v299
    %v994 = vunpack.c.h.b16 %v299
    %v995 = vunpack.c.l.b16 %v300
    %v996 = vunpack.c.l.b16 %v301
    %v997 = vunpack.c.h.b16 %v301
    %v998 = vunpack.c.l.b16 %v302
    %v999 = vunpack.c.h.b16 %v302
    %v1000 = vunpack.c.l.b16 %v303
    %v1001 = vunpack.c.h.b16 %v303
    %v1002 = vunpack.c.l.b16 %v304
    %v1003 = vunpack.c.h.b16 %v304
    %v1004 = vunpack.c.l.b16 %v305
    %v1005 = vunpack.c.h.b16 %v305
    %v1006 = vunpack.c.l.b16 %v306
    %v1007 = vunpack.c.h.b16 %v306
    %v1008 = vunpack.c.l.b16 %v307
    %v1009 = vunpack.c.h.b16 %v307
    %v1010 = vunpack.c.l.b16 %v308
    %v1011 = vunpack.c.h.b16 %v308
    %v1012 = vunpack.c.l.b16 %v309
    %v1013 = vunpack.c.h.b16 %v309
    %v1014 = vunpack.c.l.b16 %v310
    %v1015 = vunpack.c.h.b16 %v310
    %v1016 = vunpack.c.l.b16 %v311
    %v1017 = vunpack.c.h.b16 %v311
    %v1018 = vunpack.c.l.b16 %v312
    %v1019 = vunpack.c.h.b16 %v312
    %v1020 = vunpack.c.l.b16 %v313
    %v1021 = vunpack.c.h.b16 %v313
    %v1022 = vunpack.c.l.b16 %v314
    %v1023 = vunpack.c.l.b16 %v315
    %v1024 = vunpack.c.h.b16 %v315
    %v1025 = vunpack.c.l.b16 %v316
    %v1026 = vunpack.c.h.b16 %v316
    %v1027 = vunpack.c.l.b16 %v317
    %v1028 = vunpack.c.h.b16 %v317
    %v1029 = vunpack.c.l.b16 %v318
    %v1030 = vunpack.c.h.b16 %v318
    %v1031 = vunpack.c.l.b16 %v319
    %v1032 = vunpack.c.h.b16 %v319
    %v1033 = vunpack.c.l.b16 %v320
    %v1034 = vunpack.c.h.b16 %v320
    %v1035 = vunpack.c.l.b16 %v321
    %v1036 = vunpack.c.h.b16 %v321
    %v1037 = vunpack.c.l.b16 %v322
    %v1038 = vunpack.c.h.b16 %v322
    %v1039 = vunpack.c.l.b16 %v323
    %v1040 = vunpack.c.h.b16 %v323
    %v1041 = vunpack.c.l.b16 %v324
    %v1042 = vunpack.c.h.b16 %v324
    %v1043 = vunpack.c.l.b16 %v325
    %v1044 = vunpack.c.h.b16 %v325
    %v1045 = vunpack.c.l.b16 %v326
    %v1046 = vunpack.c.h.b16 %v326
    %v1047 = vunpack.c.l.b16 %v327
    %v1048 = vunpack.c.h.b16 %v327
    %v1049 = vunpack.c.l.b16 %v328
    %v1050 = vpack.c.b16 %v618, %v591
    %v1051 = vpack.c.b16 %v619, %v592
    %v1052 = vpack.c.b16 %v620, %v593
    %v1053 = vpack.c.b16 %v621, %v594
    %v1054 = vpack.c.b16 %v622, %v595
    %v1055 = vpack.c.b16 %v623, %v596
    %v1056 = vpack.c.b16 %v624, %v597
    %v1057 = vpack.c.b16 %v625, %v598
    %v1058 = vpack.c.b16 %v626, %v599
    %v1059 = vpack.c.b16 %v627, %v600
    %v1060 = vpack.c.b16 %v628, %v601
    %v1061 = vpack.c.b16 %v629, %v602
    %v1062 = vpack.c.b16 %v630, %v603
    %v1063 = vpack.c.b16 %v631, %v604
    %v1064 = vpack.c.b16 %v632, %v605
    %v1065 = vpack.c.b16 %v633, %v606
    %v1066 = vpack.c.b16 %v634, %v607
    %v1067 = vpack.c.b16 %v635, %v608
    %v1068 = vpack.c.b16 %v636, %v609
    %v1069 = vpack.c.b16 %v637, %v610
    %v1070 = vpack.c.b16 %v638, %v611
    %v1071 = vpack.c.b16 %v639, %v612
    %v1072 = vpack.c.b16 %v640, %v613
    %v1073 = vpack.c.b16 %v641, %v614
    %v1074 = vpack.c.b16 %v642, %v615
    %v1075 = vpack.c.b16 %v643, %v616
    %v1076 = vpack.c.b16 %v644, %v617
    %v1077 = vpack.c.b16 %v672, %v645
    %v1078 = vpack.c.b16 %v673, %v646
    %v1079 = vpack.c.b16 %v674, %v647
    %v1080 = vpack.c.b16 %v675, %v648
    %v1081 = vpack.c.b16 %v676, %v649
    %v1082 = vpack.c.b16 %v677, %v650
    %v1083 = vpack.c.b16 %v678, %v651
    %v1084 = vpack.c.b16 %v679, %v652
    %v1085 = vpack.c.b16 %v680, %v653
    %v1086 = vpack.c.b16 %v681, %v654
    %v1087 = vpack.c.b16 %v682, %v655
    %v1088 = vpack.c.b16 %v683, %v656
    %v1089 = vpack.c.b16 %v684, %v657
    %v1090 = vpack.c.b16 %v685, %v658
    %v1091 = vpack.c.b16 %v686, %v659
    %v1092 = vpack.c.b16 %v687, %v660
    %v1093 = vpack.c.b16 %v688, %v661
    %v1094 = vpack.c.b16 %v689, %v662
    %v1095 = vpack.c.b16 %v690, %v663
    %v1096 = vpack.c.b16 %v691, %v664
    %v1097 = vpack.c.b16 %v692, %v665
    %v1098 = vpack.c.b16 %v693, %v666
    %v1099 = vpack.c.b16 %v694, %v667
    %v1100 = vpack.c.b16 %v695, %v668
    %v1101 = vpack.c.b16 %v696, %v669
    %v1102 = vpack.c.b16 %v697, %v670
    %v1103 = vpack.c.b16 %v698, %v671
    %v1104 = vpack.c.b16 %v726, %v699
    %v1105 = vpack.c.b16 %v727, %v700
    %v1106 = vpack.c.b16 %v728, %v701
    %v1107 = vpack.c.b16 %v729, %v702
    %v1108 = vpack.c.b16 %v730, %v703
    %v1109 = vpack.c.b16 %v731, %v704
    %v1110 = vpack.c.b16 %v732, %v705
    %v1111 = vpack.c.b16 %v733, %v706
    %v1112 = vpack.c.b16 %v734, %v707
    %v1113 = vpack.c.b16 %v735, %v708
    %v1114 = vpack.c.b16 %v736, %v709
    %v1115 = vpack.c.b16 %v737, %v710
    %v1116 = vpack.c.b16 %v738, %v711
    %v1117 = vpack.c.b16 %v739, %v712
    %v1118 = vpack.c.b16 %v740, %v713
    %v1119 = vpack.c.b16 %v741, %v714
    %v1120 = vpack.c.b16 %v742, %v715
    %v1121 = vpack.c.b16 %v743, %v716
    %v1122 = vpack.c.b16 %v744, %v717
    %v1123 = vpack.c.b16 %v745, %v718
    %v1124 = vpack.c.b16 %v746, %v719
    %v1125 = vpack.c.b16 %v747, %v720
    %v1126 = vpack.c.b16 %v748, %v721
    %v1127 = vpack.c.b16 %v749, %v722
    %v1128 = vpack.c.b16 %v750, %v723
    %v1129 = vpack.c.b16 %v751, %v724
    %v1130 = vpack.c.b16 %v752, %v725
    %v1131 = vpack.c.b16 %v780, %v753
    %v1132 = vpack.c.b16 %v781, %v754
    %v1133 = vpack.c.b16 %v782, %v755
    %v1134 = vpack.c.b16 %v783, %v756
    %v1135 = vpack.c.b16 %v784, %v757
    %v1136 = vpack.c.b16 %v785, %v758
    %v1137 = vpack.c.b16 %v786, %v759
    %v1138 = vpack.c.b16 %v787, %v760
    %v1139 = vpack.c.b16 %v788, %v761
    %v1140 = vpack.c.b16 %v789, %v762
    %v1141 = vpack.c.b16 %v790, %v763
    %v1142 = vpack.c.b16 %v791, %v764
    %v1143 = vpack.c.b16 %v792, %v765
    %v1144 = vpack.c.b16 %v793, %v766
    %v1145 = vpack.c.b16 %v794, %v767
    %v1146 = vpack.c.b16 %v795, %v768
    %v1147 = vpack.c.b16 %v796, %v769
    %v1148 = vpack.c.b16 %v797, %v770
    %v1149 = vpack.c.b16 %v798, %v771
    %v1150 = vpack.c.b16 %v799, %v772
    %v1151 = vpack.c.b16 %v800, %v773
    %v1152 = vpack.c.b16 %v801, %v774
    %v1153 = vpack.c.b16 %v802, %v775
    %v1154 = vpack.c.b16 %v803, %v776
    %v1155 = vpack.c.b16 %v804, %v777
    %v1156 = vpack.c.b16 %v805, %v778
    %v1157 = vpack.c.b16 %v806, %v779
    %v1158 = vpack.c.b16 %v834, %v807
    %v1159 = vpack.c.b16 %v835, %v808
    %v1160 = vpack.c.b16 %v836, %v809
    %v1161 = vpack.c.b16 %v837, %v810
    %v1162 = vpack.c.b16 %v838, %v811
    %v1163 = vpack.c.b16 %v839, %v812
    %v1164 = vpack.c.b16 %v840, %v813
    %v1165 = vpack.c.b16 %v841, %v814
    %v1166 = vpack.c.b16 %v842, %v815
    %v1167 = vpack.c.b16 %v843, %v816
    %v1168 = vpack.c.b16 %v844, %v817
    %v1169 = vpack.c.b16 %v845, %v818
    %v1170 = vpack.c.b16 %v846, %v819
    %v1171 = vpack.c.b16 %v847, %v820
    %v1172 = vpack.c.b16 %v848, %v821
    %v1173 = vpack.c.b16 %v849, %v822
    %v1174 = vpack.c.b16 %v850, %v823
    %v1175 = vpack.c.b16 %v851, %v824
    %v1176 = vpack.c.b16 %v852, %v825
    %v1177 = vpack.c.b16 %v853, %v826
    %v1178 = vpack.c.b16 %v854, %v827
    %v1179 = vpack.c.b16 %v855, %v828
    %v1180 = vpack.c.b16 %v856, %v829
    %v1181 = vpack.c.b16 %v857, %v830
    %v1182 = vpack.c.b16 %v858, %v831
    %v1183 = vpack.c.b16 %v859, %v832
    %v1184 = vpack.c.b16 %v860, %v833
    %v1185 = vpack.c.b16 %v888, %v861
    %v1186 = vpack.c.b16 %v889, %v862
    %v1187 = vpack.c.b16 %v890, %v863
    %v1188 = vpack.c.b16 %v891, %v864
    %v1189 = vpack.c.b16 %v892, %v865
    %v1190 = vpack.c.b16 %v893, %v866
    %v1191 = vpack.c.b16 %v894, %v867
    %v1192 = vpack.c.b16 %v895, %v868
    %v1193 = vpack.c.b16 %v896, %v869
    %v1194 = vpack.c.b16 %v897, %v870
    %v1195 = vpack.c.b16 %v898, %v871
    %v1196 = vpack.c.b16 %v899, %v872
    %v1197 = vpack.c.b16 %v900, %v873
    %v1198 = vpack.c.b16 %v901, %v874
    %v1199 = vpack.c.b16 %v902, %v875
    %v1200 = vpack.c.b16 %v903, %v876
    %v1201 = vpack.c.b16 %v904, %v877
    %v1202 = vpack.c.b16 %v905, %v878
    %v1203 = vpack.c.b16 %v906, %v879
    %v1204 = vpack.c.b16 %v907, %v880
    %v1205 = vpack.c.b16 %v908, %v881
    %v1206 = vpack.c.b16 %v909, %v882
    %v1207 = vpack.c.b16 %v910, %v883
    %v1208 = vpack.c.b16 %v911, %v884
    %v1209 = vpack.c.b16 %v912, %v885
    %v1210 = vpack.c.b16 %v913, %v886
    %v1211 = vpack.c.b16 %v914, %v887
    %v1212 = vpack.c.b16 %v942, %v915
    %v1213 = vpack.c.b16 %v943, %v916
    %v1214 = vpack.c.b16 %v944, %v917
    %v1215 = vpack.c.b16 %v945, %v918
    %v1216 = vpack.c.b16 %v946, %v919
    %v1217 = vpack.c.b16 %v947, %v920
    %v1218 = vpack.c.b16 %v948, %v921
    %v1219 = vpack.c.b16 %v949, %v922
    %v1220 = vpack.c.b16 %v950, %v923
    %v1221 = vpack.c.b16 %v951, %v924
    %v1222 = vpack.c.b16 %v952, %v925
    %v1223 = vpack.c.b16 %v953, %v926
    %v1224 = vpack.c.b16 %v954, %v927
    %v1225 = vpack.c.b16 %v955, %v928
    %v1226 = vpack.c.b16 %v956, %v929
    %v1227 = vpack.c.b16 %v957, %v930
    %v1228 = vpack.c.b16 %v958, %v931
    %v1229 = vpack.c.b16 %v959, %v932
    %v1230 = vpack.c.b16 %v960, %v933
    %v1231 = vpack.c.b16 %v961, %v934
    %v1232 = vpack.c.b16 %v962, %v935
    %v1233 = vpack.c.b16 %v963, %v936
    %v1234 = vpack.c.b16 %v964, %v937
    %v1235 = vpack.c.b16 %v965, %v938
    %v1236 = vpack.c.b16 %v966, %v939
    %v1237 = vpack.c.b16 %v967, %v940
    %v1238 = vpack.c.b16 %v968, %v941
    %v1239 = vpack.c.b16 %v996, %v969
    %v1240 = vpack.c.b16 %v997, %v970
    %v1241 = vpack.c.b16 %v998, %v971
    %v1242 = vpack.c.b16 %v999, %v972
    %v1243 = vpack.c.b16 %v1000, %v973
    %v1244 = vpack.c.b16 %v1001, %v974
    %v1245 = vpack.c.b16 %v1002, %v975
    %v1246 = vpack.c.b16 %v1003, %v976
    %v1247 = vpack.c.b16 %v1004, %v977
    %v1248 = vpack.c.b16 %v1005, %v978
    %v1249 = vpack.c.b16 %v1006, %v979
    %v1250 = vpack.c.b16 %v1007, %v980
    %v1251 = vpack.c.b16 %v1008, %v981
    %v1252 = vpack.c.b16 %v1009, %v982
    %v1253 = vpack.c.b16 %v1010, %v983
    %v1254 = vpack.c.b16 %v1011, %v984
    %v1255 = vpack.c.b16 %v1012, %v985
    %v1256 = vpack.c.b16 %v1013, %v986
    %v1257 = vpack.c.b16 %v1014, %v987
    %v1258 = vpack.c.b16 %v1015, %v988
    %v1259 = vpack.c.b16 %v1016, %v989
    %v1260 = vpack.c.b16 %v1017, %v990
    %v1261 = vpack.c.b16 %v1018, %v991
    %v1262 = vpack.c.b16 %v1019, %v992
    %v1263 = vpack.c.b16 %v1020, %v993
    %v1264 = vpack.c.b16 %v1021, %v994
    %v1265 = vpack.c.b16 %v1022, %v995
    %v1266 = vpack.c.b16 %v1023, %v1023
    %v1267 = vpack.c.b16 %v1024, %v1024
    %v1268 = vpack.c.b16 %v1025, %v1025
    %v1269 = vpack.c.b16 %v1026, %v1026
    %v1270 = vpack.c.b16 %v1027, %v1027
    %v1271 = vpack.c.b16 %v1028, %v1028
    %v1272 = vpack.c.b16 %v1029, %v1029
    %v1273 = vpack.c.b16 %v1030, %v1030
    %v1274 = vpack.c.b16 %v1031, %v1031
    %v1275 = vpack.c.b16 %v1032, %v1032
    %v1276 = vpack.c.b16 %v1033, %v1033
    %v1277 = vpack.c.b16 %v1034, %v1034
    %v1278 = vpack.c.b16 %v1035, %v1035
    %v1279 = vpack.c.b16 %v1036, %v1036
    %v1280 = vpack.c.b16 %v1037, %v1037
    %v1281 = vpack.c.b16 %v1038, %v1038
    %v1282 = vpack.c.b16 %v1039, %v1039
    %v1283 = vpack.c.b16 %v1040, %v1040
    %v1284 = vpack.c.b16 %v1041, %v1041
    %v1285 = vpack.c.b16 %v1042, %v1042
    %v1286 = vpack.c.b16 %v1043, %v1043
    %v1287 = vpack.c.b16 %v1044, %v1044
    %v1288 = vpack.c.b16 %v1045, %v1045
    %v1289 = vpack.c.b16 %v1046, %v1046
    %v1290 = vpack.c.b16 %v1047, %v1047
    %v1291 = vpack.c.b16 %v1048, %v1048
    %v1292 = vpack.c.b16 %v1049, %v1049
    %vm1509 = vcmask 15360
    %v1511 = vsel %vm1509, %v351, 0
    %vm1513 = vcmask 1040384
    %v1515 = vsel %vm1513, %v1266, 0
    %v1518 = vsel %vm1513, %v1267, 0
    %v1521 = vsel %vm1513, %v1268, 0
    %v1524 = vsel %vm1513, %v1269, 0
    %v1527 = vsel %vm1513, %v1270, 0
    %v1530 = vsel %vm1513, %v1271, 0
    %v1533 = vsel %vm1513, %v1272, 0
    %v1536 = vsel %vm1513, %v1273, 0
    %v1539 = vsel %vm1513, %v1274, 0
    %v1542 = vsel %vm1513, %v1275, 0
    %v1545 = vsel %vm1513, %v1276, 0
    %v1548 = vsel %vm1513, %v1277, 0
    %v1551 = vsel %vm1513, %v1278, 0
    %v1554 = vsel %vm1513, %v1279, 0
    %v1557 = vsel %vm1513, %v1280, 0
    %v1560 = vsel %vm1513, %v1281, 0
    %v1563 = vsel %vm1513, %v1282, 0
    %v1566 = vsel %vm1513, %v1283, 0
    %v1569 = vsel %vm1513, %v1284, 0
    %v1572 = vsel %vm1513, %v1285, 0
    %v1575 = vsel %vm1513, %v1286, 0
    %v1578 = vsel %vm1513, %v1287, 0
    %v1581 = vsel %vm1513, %v1288, 0
    %v1584 = vsel %vm1513, %v1289, 0
    %v1587 = vsel %vm1513, %v1290, 0
    %v1590 = vsel %vm1513, %v1291, 0
    %v1593 = vsel %vm1513, %v1292, 0
    %1595 = vmatprep.subr.bf16.mxu0 %v1051
    %1596 = vmatpush1.bf16.msra.mxu0 %v1050
    %1597 = vmatprep.subr.bf16.mxu0 %v1078
    %1598 = vmatpush1.bf16.msra.mxu0 %v1077
    %1599 = vmatprep.subr.bf16.mxu0 %v1105
    %1600 = vmatpush1.bf16.msra.mxu0 %v1104
    %1601 = vmatprep.subr.bf16.mxu0 %v1132
    %1602 = vmatpush1.bf16.msra.mxu0 %v1131
    %1603 = vmatprep.subr.bf16.mxu0 %v1159
    %1604 = vmatpush1.bf16.msra.mxu0 %v1158
    %1605 = vmatprep.subr.bf16.mxu0 %v1186
    %1606 = vmatpush1.bf16.msra.mxu0 %v1185
    %1607 = vmatprep.subr.bf16.mxu0 %v1213
    %1608 = vmatpush1.bf16.msra.mxu0 %v1212
    %1609 = vmatprep.subr.bf16.mxu0 %v1240
    %1610 = vmatpush1.bf16.msra.mxu0 %v1239
    %1611 = vmatprep.subr.bf16.mxu0 %v1518
    %1612 = vmatpush1.bf16.msra.mxu0 %v1515
    %1613 = vmatprep.subr.bf16.mxu0 0
    %1614 = vmatpush1.bf16.msra.mxu0 0
    %1615 = vmatprep.subr.bf16.mxu0 0
    %1616 = vmatpush1.bf16.msra.mxu0 0
    %1617 = vmatprep.subr.bf16.mxu0 0
    %1618 = vmatpush1.bf16.msra.mxu0 0
    %1619 = vmatprep.subr.bf16.mxu0 0
    %1620 = vmatpush1.bf16.msra.mxu0 0
    %1621 = vmatprep.subr.bf16.mxu0 0
    %1622 = vmatpush1.bf16.msra.mxu0 0
    %1623 = vmatprep.subr.bf16.mxu0 0
    %1624 = vmatpush1.bf16.msra.mxu0 0
    %1625 = vmatprep.subr.bf16.mxu0 0
    %1626 = vmatpush1.bf16.msra.mxu0 0
    %1627 = vmatprep.mubr.bf16.mxu0 %v1511
    %1628 = vmatmul.mubr.bf16.gmra.mrb[0].mxu0 %v344
    %v1629 = vpop.f32.mrb[0].mxu0
    %v1630 = vadd.f32 0.0, %v1629
    %v1631 = vpop.f32.mrb[0].mxu0
    %v1632 = vadd.f32 0.0, %v1631
    %v1633 = vpop.f32.mrb[0].mxu0
    %v1634 = vpop.f32.mrb[0].mxu0
    %1635 = vdwg.mxu0
    %1636 = vmatprep.subr.bf16.mxu0 %v1053
    %1637 = vmatpush1.bf16.msra.mxu0 %v1052
    %1638 = vmatprep.subr.bf16.mxu0 %v1080
    %1639 = vmatpush1.bf16.msra.mxu0 %v1079
    %1640 = vmatprep.subr.bf16.mxu0 %v1107
    %1641 = vmatpush1.bf16.msra.mxu0 %v1106
    %1642 = vmatprep.subr.bf16.mxu0 %v1134
    %1643 = vmatpush1.bf16.msra.mxu0 %v1133
    %1644 = vmatprep.subr.bf16.mxu0 %v1161
    %1645 = vmatpush1.bf16.msra.mxu0 %v1160
    %1646 = vmatprep.subr.bf16.mxu0 %v1188
    %1647 = vmatpush1.bf16.msra.mxu0 %v1187
    %1648 = vmatprep.subr.bf16.mxu0 %v1215
    %1649 = vmatpush1.bf16.msra.mxu0 %v1214
    %1650 = vmatprep.subr.bf16.mxu0 %v1242
    %1651 = vmatpush1.bf16.msra.mxu0 %v1241
    %1652 = vmatprep.subr.bf16.mxu0 %v1524
    %1653 = vmatpush1.bf16.msra.mxu0 %v1521
    %1654 = vmatprep.subr.bf16.mxu0 0
    %1655 = vmatpush1.bf16.msra.mxu0 0
    %1656 = vmatprep.subr.bf16.mxu0 0
    %1657 = vmatpush1.bf16.msra.mxu0 0
    %1658 = vmatprep.subr.bf16.mxu0 0
    %1659 = vmatpush1.bf16.msra.mxu0 0
    %1660 = vmatprep.subr.bf16.mxu0 0
    %1661 = vmatpush1.bf16.msra.mxu0 0
    %1662 = vmatprep.subr.bf16.mxu0 0
    %1663 = vmatpush1.bf16.msra.mxu0 0
    %1664 = vmatprep.subr.bf16.mxu0 0
    %1665 = vmatpush1.bf16.msra.mxu0 0
    %1666 = vmatprep.subr.bf16.mxu0 0
    %1667 = vmatpush1.bf16.msra.mxu0 0
    %1668 = vmatprep.mubr.bf16.mxu0 %v1511
    %1669 = vmatmul.mubr.bf16.gmra.mrb[0].mxu0 %v344
    %v1670 = vpop.f32.mrb[0].mxu0
    %v1671 = vadd.f32 0.0, %v1670
    %v1672 = vpop.f32.mrb[0].mxu0
    %v1673 = vadd.f32 0.0, %v1672
    %v1674 = vpop.f32.mrb[0].mxu0
    %v1675 = vpop.f32.mrb[0].mxu0
    %1676 = vdwg.mxu0
    %1677 = vmatprep.subr.bf16.mxu0 %v1055
    %1678 = vmatpush1.bf16.msra.mxu0 %v1054
    %1679 = vmatprep.subr.bf16.mxu0 %v1082
    %1680 = vmatpush1.bf16.msra.mxu0 %v1081
    %1681 = vmatprep.subr.bf16.mxu0 %v1109
    %1682 = vmatpush1.bf16.msra.mxu0 %v1108
    %1683 = vmatprep.subr.bf16.mxu0 %v1136
    %1684 = vmatpush1.bf16.msra.mxu0 %v1135
    %1685 = vmatprep.subr.bf16.mxu0 %v1163
    %1686 = vmatpush1.bf16.msra.mxu0 %v1162
    %1687 = vmatprep.subr.bf16.mxu0 %v1190
    %1688 = vmatpush1.bf16.msra.mxu0 %v1189
    %1689 = vmatprep.subr.bf16.mxu0 %v1217
    %1690 = vmatpush1.bf16.msra.mxu0 %v1216
    %1691 = vmatprep.subr.bf16.mxu0 %v1244
    %1692 = vmatpush1.bf16.msra.mxu0 %v1243
    %1693 = vmatprep.subr.bf16.mxu0 %v1530
    %1694 = vmatpush1.bf16.msra.mxu0 %v1527
    %1695 = vmatprep.subr.bf16.mxu0 0
    %1696 = vmatpush1.bf16.msra.mxu0 0
    %1697 = vmatprep.subr.bf16.mxu0 0
    %1698 = vmatpush1.bf16.msra.mxu0 0
    %1699 = vmatprep.subr.bf16.mxu0 0
    %1700 = vmatpush1.bf16.msra.mxu0 0
    %1701 = vmatprep.subr.bf16.mxu0 0
    %1702 = vmatpush1.bf16.msra.mxu0 0
    %1703 = vmatprep.subr.bf16.mxu0 0
    %1704 = vmatpush1.bf16.msra.mxu0 0
    %1705 = vmatprep.subr.bf16.mxu0 0
    %1706 = vmatpush1.bf16.msra.mxu0 0
    %1707 = vmatprep.subr.bf16.mxu0 0
    %1708 = vmatpush1.bf16.msra.mxu0 0
    %1709 = vmatprep.mubr.bf16.mxu0 %v1511
    %1710 = vmatmul.mubr.bf16.gmra.mrb[0].mxu0 %v344
    %v1711 = vpop.f32.mrb[0].mxu0
    %v1712 = vadd.f32 0.0, %v1711
    %v1713 = vpop.f32.mrb[0].mxu0
    %v1714 = vadd.f32 0.0, %v1713
    %v1715 = vpop.f32.mrb[0].mxu0
    %v1716 = vpop.f32.mrb[0].mxu0
    %1717 = vdwg.mxu0
    %1718 = vmatprep.subr.bf16.mxu0 %v1057
    %1719 = vmatpush1.bf16.msra.mxu0 %v1056
    %1720 = vmatprep.subr.bf16.mxu0 %v1084
    %1721 = vmatpush1.bf16.msra.mxu0 %v1083
    %1722 = vmatprep.subr.bf16.mxu0 %v1111
    %1723 = vmatpush1.bf16.msra.mxu0 %v1110
    %1724 = vmatprep.subr.bf16.mxu0 %v1138
    %1725 = vmatpush1.bf16.msra.mxu0 %v1137
    %1726 = vmatprep.subr.bf16.mxu0 %v1165
    %1727 = vmatpush1.bf16.msra.mxu0 %v1164
    %1728 = vmatprep.subr.bf16.mxu0 %v1192
    %1729 = vmatpush1.bf16.msra.mxu0 %v1191
    %1730 = vmatprep.subr.bf16.mxu0 %v1219
    %1731 = vmatpush1.bf16.msra.mxu0 %v1218
    %1732 = vmatprep.subr.bf16.mxu0 %v1246
    %1733 = vmatpush1.bf16.msra.mxu0 %v1245
    %1734 = vmatprep.subr.bf16.mxu0 %v1536
    %1735 = vmatpush1.bf16.msra.mxu0 %v1533
    %1736 = vmatprep.subr.bf16.mxu0 0
    %1737 = vmatpush1.bf16.msra.mxu0 0
    %1738 = vmatprep.subr.bf16.mxu0 0
    %1739 = vmatpush1.bf16.msra.mxu0 0
    %1740 = vmatprep.subr.bf16.mxu0 0
    %1741 = vmatpush1.bf16.msra.mxu0 0
    %1742 = vmatprep.subr.bf16.mxu0 0
    %1743 = vmatpush1.bf16.msra.mxu0 0
    %1744 = vmatprep.subr.bf16.mxu0 0
    %1745 = vmatpush1.bf16.msra.mxu0 0
    %1746 = vmatprep.subr.bf16.mxu0 0
    %1747 = vmatpush1.bf16.msra.mxu0 0
    %1748 = vmatprep.subr.bf16.mxu0 0
    %1749 = vmatpush1.bf16.msra.mxu0 0
    %1750 = vmatprep.mubr.bf16.mxu0 %v1511
    %1751 = vmatmul.mubr.bf16.gmra.mrb[0].mxu0 %v344
    %v1752 = vpop.f32.mrb[0].mxu0
    %v1753 = vadd.f32 0.0, %v1752
    %v1754 = vpop.f32.mrb[0].mxu0
    %v1755 = vadd.f32 0.0, %v1754
    %v1756 = vpop.f32.mrb[0].mxu0
    %v1757 = vpop.f32.mrb[0].mxu0
    %1758 = vdwg.mxu0
    %1759 = vmatprep.subr.bf16.mxu0 %v1059
    %1760 = vmatpush1.bf16.msra.mxu0 %v1058
    %1761 = vmatprep.subr.bf16.mxu0 %v1086
    %1762 = vmatpush1.bf16.msra.mxu0 %v1085
    %1763 = vmatprep.subr.bf16.mxu0 %v1113
    %1764 = vmatpush1.bf16.msra.mxu0 %v1112
    %1765 = vmatprep.subr.bf16.mxu0 %v1140
    %1766 = vmatpush1.bf16.msra.mxu0 %v1139
    %1767 = vmatprep.subr.bf16.mxu0 %v1167
    %1768 = vmatpush1.bf16.msra.mxu0 %v1166
    %1769 = vmatprep.subr.bf16.mxu0 %v1194
    %1770 = vmatpush1.bf16.msra.mxu0 %v1193
    %1771 = vmatprep.subr.bf16.mxu0 %v1221
    %1772 = vmatpush1.bf16.msra.mxu0 %v1220
    %1773 = vmatprep.subr.bf16.mxu0 %v1248
    %1774 = vmatpush1.bf16.msra.mxu0 %v1247
    %1775 = vmatprep.subr.bf16.mxu0 %v1542
    %1776 = vmatpush1.bf16.msra.mxu0 %v1539
    %1777 = vmatprep.subr.bf16.mxu0 0
    %1778 = vmatpush1.bf16.msra.mxu0 0
    %1779 = vmatprep.subr.bf16.mxu0 0
    %1780 = vmatpush1.bf16.msra.mxu0 0
    %1781 = vmatprep.subr.bf16.mxu0 0
    %1782 = vmatpush1.bf16.msra.mxu0 0
    %1783 = vmatprep.subr.bf16.mxu0 0
    %1784 = vmatpush1.bf16.msra.mxu0 0
    %1785 = vmatprep.subr.bf16.mxu0 0
    %1786 = vmatpush1.bf16.msra.mxu0 0
    %1787 = vmatprep.subr.bf16.mxu0 0
    %1788 = vmatpush1.bf16.msra.mxu0 0
    %1789 = vmatprep.subr.bf16.mxu0 0
    %1790 = vmatpush1.bf16.msra.mxu0 0
    %1791 = vmatprep.mubr.bf16.mxu0 %v1511
    %1792 = vmatmul.mubr.bf16.gmra.mrb[0].mxu0 %v344
    %v1793 = vpop.f32.mrb[0].mxu0
    %v1794 = vadd.f32 0.0, %v1793
    %v1795 = vpop.f32.mrb[0].mxu0
    %v1796 = vadd.f32 0.0, %v1795
    %v1797 = vpop.f32.mrb[0].mxu0
    %v1798 = vpop.f32.mrb[0].mxu0
    %1799 = vdwg.mxu0
    %1800 = vmatprep.subr.bf16.mxu0 %v1061
    %1801 = vmatpush1.bf16.msra.mxu0 %v1060
    %1802 = vmatprep.subr.bf16.mxu0 %v1088
    %1803 = vmatpush1.bf16.msra.mxu0 %v1087
    %1804 = vmatprep.subr.bf16.mxu0 %v1115
    %1805 = vmatpush1.bf16.msra.mxu0 %v1114
    %1806 = vmatprep.subr.bf16.mxu0 %v1142
    %1807 = vmatpush1.bf16.msra.mxu0 %v1141
    %1808 = vmatprep.subr.bf16.mxu0 %v1169
    %1809 = vmatpush1.bf16.msra.mxu0 %v1168
    %1810 = vmatprep.subr.bf16.mxu0 %v1196
    %1811 = vmatpush1.bf16.msra.mxu0 %v1195
    %1812 = vmatprep.subr.bf16.mxu0 %v1223
    %1813 = vmatpush1.bf16.msra.mxu0 %v1222
    %1814 = vmatprep.subr.bf16.mxu0 %v1250
    %1815 = vmatpush1.bf16.msra.mxu0 %v1249
    %1816 = vmatprep.subr.bf16.mxu0 %v1548
    %1817 = vmatpush1.bf16.msra.mxu0 %v1545
    %1818 = vmatprep.subr.bf16.mxu0 0
    %1819 = vmatpush1.bf16.msra.mxu0 0
    %1820 = vmatprep.subr.bf16.mxu0 0
    %1821 = vmatpush1.bf16.msra.mxu0 0
    %1822 = vmatprep.subr.bf16.mxu0 0
    %1823 = vmatpush1.bf16.msra.mxu0 0
    %1824 = vmatprep.subr.bf16.mxu0 0
    %1825 = vmatpush1.bf16.msra.mxu0 0
    %1826 = vmatprep.subr.bf16.mxu0 0
    %1827 = vmatpush1.bf16.msra.mxu0 0
    %1828 = vmatprep.subr.bf16.mxu0 0
    %1829 = vmatpush1.bf16.msra.mxu0 0
    %1830 = vmatprep.subr.bf16.mxu0 0
    %1831 = vmatpush1.bf16.msra.mxu0 0
    %1832 = vmatprep.mubr.bf16.mxu0 %v1511
    %1833 = vmatmul.mubr.bf16.gmra.mrb[0].mxu0 %v344
    %v1834 = vpop.f32.mrb[0].mxu0
    %v1835 = vadd.f32 0.0, %v1834
    %v1836 = vpop.f32.mrb[0].mxu0
    %v1837 = vadd.f32 0.0, %v1836
    %v1838 = vpop.f32.mrb[0].mxu0
    %v1839 = vpop.f32.mrb[0].mxu0
    %1840 = vdwg.mxu0
    %1841 = vmatprep.subr.bf16.mxu0 %v1063
    %1842 = vmatpush1.bf16.msra.mxu0 %v1062
    %1843 = vmatprep.subr.bf16.mxu0 %v1090
    %1844 = vmatpush1.bf16.msra.mxu0 %v1089
    %1845 = vmatprep.subr.bf16.mxu0 %v1117
    %1846 = vmatpush1.bf16.msra.mxu0 %v1116
    %1847 = vmatprep.subr.bf16.mxu0 %v1144
    %1848 = vmatpush1.bf16.msra.mxu0 %v1143
    %1849 = vmatprep.subr.bf16.mxu0 %v1171
    %1850 = vmatpush1.bf16.msra.mxu0 %v1170
    %1851 = vmatprep.subr.bf16.mxu0 %v1198
    %1852 = vmatpush1.bf16.msra.mxu0 %v1197
    %1853 = vmatprep.subr.bf16.mxu0 %v1225
    %1854 = vmatpush1.bf16.msra.mxu0 %v1224
    %1855 = vmatprep.subr.bf16.mxu0 %v1252
    %1856 = vmatpush1.bf16.msra.mxu0 %v1251
    %1857 = vmatprep.subr.bf16.mxu0 %v1554
    %1858 = vmatpush1.bf16.msra.mxu0 %v1551
    %1859 = vmatprep.subr.bf16.mxu0 0
    %1860 = vmatpush1.bf16.msra.mxu0 0
    %1861 = vmatprep.subr.bf16.mxu0 0
    %1862 = vmatpush1.bf16.msra.mxu0 0
    %1863 = vmatprep.subr.bf16.mxu0 0
    %1864 = vmatpush1.bf16.msra.mxu0 0
    %1865 = vmatprep.subr.bf16.mxu0 0
    %1866 = vmatpush1.bf16.msra.mxu0 0
    %1867 = vmatprep.subr.bf16.mxu0 0
    %1868 = vmatpush1.bf16.msra.mxu0 0
    %1869 = vmatprep.subr.bf16.mxu0 0
    %1870 = vmatpush1.bf16.msra.mxu0 0
    %1871 = vmatprep.subr.bf16.mxu0 0
    %1872 = vmatpush1.bf16.msra.mxu0 0
    %1873 = vmatprep.mubr.bf16.mxu0 %v1511
    %1874 = vmatmul.mubr.bf16.gmra.mrb[0].mxu0 %v344
    %v1875 = vpop.f32.mrb[0].mxu0
    %v1876 = vadd.f32 0.0, %v1875
    %v1877 = vpop.f32.mrb[0].mxu0
    %v1878 = vadd.f32 0.0, %v1877
    %v1879 = vpop.f32.mrb[0].mxu0
    %v1880 = vpop.f32.mrb[0].mxu0
    %1881 = vdwg.mxu0
    %1882 = vmatprep.subr.bf16.mxu0 %v1065
    %1883 = vmatpush1.bf16.msra.mxu0 %v1064
    %1884 = vmatprep.subr.bf16.mxu0 %v1092
    %1885 = vmatpush1.bf16.msra.mxu0 %v1091
    %1886 = vmatprep.subr.bf16.mxu0 %v1119
    %1887 = vmatpush1.bf16.msra.mxu0 %v1118
    %1888 = vmatprep.subr.bf16.mxu0 %v1146
    %1889 = vmatpush1.bf16.msra.mxu0 %v1145
    %1890 = vmatprep.subr.bf16.mxu0 %v1173
    %1891 = vmatpush1.bf16.msra.mxu0 %v1172
    %1892 = vmatprep.subr.bf16.mxu0 %v1200
    %1893 = vmatpush1.bf16.msra.mxu0 %v1199
    %1894 = vmatprep.subr.bf16.mxu0 %v1227
    %1895 = vmatpush1.bf16.msra.mxu0 %v1226
    %1896 = vmatprep.subr.bf16.mxu0 %v1254
    %1897 = vmatpush1.bf16.msra.mxu0 %v1253
    %1898 = vmatprep.subr.bf16.mxu0 %v1560
    %1899 = vmatpush1.bf16.msra.mxu0 %v1557
    %1900 = vmatprep.subr.bf16.mxu0 0
    %1901 = vmatpush1.bf16.msra.mxu0 0
    %1902 = vmatprep.subr.bf16.mxu0 0
    %1903 = vmatpush1.bf16.msra.mxu0 0
    %1904 = vmatprep.subr.bf16.mxu0 0
    %1905 = vmatpush1.bf16.msra.mxu0 0
    %1906 = vmatprep.subr.bf16.mxu0 0
    %1907 = vmatpush1.bf16.msra.mxu0 0
    %1908 = vmatprep.subr.bf16.mxu0 0
    %1909 = vmatpush1.bf16.msra.mxu0 0
    %1910 = vmatprep.subr.bf16.mxu0 0
    %1911 = vmatpush1.bf16.msra.mxu0 0
    %1912 = vmatprep.subr.bf16.mxu0 0
    %1913 = vmatpush1.bf16.msra.mxu0 0
    %1914 = vmatprep.mubr.bf16.mxu0 %v1511
    %1915 = vmatmul.mubr.bf16.gmra.mrb[0].mxu0 %v344
    %v1916 = vpop.f32.mrb[0].mxu0
    %v1917 = vadd.f32 0.0, %v1916
    %v1918 = vpop.f32.mrb[0].mxu0
    %v1919 = vadd.f32 0.0, %v1918
    %v1920 = vpop.f32.mrb[0].mxu0
    %v1921 = vpop.f32.mrb[0].mxu0
    %1922 = vdwg.mxu0
    %1923 = vmatprep.subr.bf16.mxu0 %v1067
    %1924 = vmatpush1.bf16.msra.mxu0 %v1066
    %1925 = vmatprep.subr.bf16.mxu0 %v1094
    %1926 = vmatpush1.bf16.msra.mxu0 %v1093
    %1927 = vmatprep.subr.bf16.mxu0 %v1121
    %1928 = vmatpush1.bf16.msra.mxu0 %v1120
    %1929 = vmatprep.subr.bf16.mxu0 %v1148
    %1930 = vmatpush1.bf16.msra.mxu0 %v1147
    %1931 = vmatprep.subr.bf16.mxu0 %v1175
    %1932 = vmatpush1.bf16.msra.mxu0 %v1174
    %1933 = vmatprep.subr.bf16.mxu0 %v1202
    %1934 = vmatpush1.bf16.msra.mxu0 %v1201
    %1935 = vmatprep.subr.bf16.mxu0 %v1229
    %1936 = vmatpush1.bf16.msra.mxu0 %v1228
    %1937 = vmatprep.subr.bf16.mxu0 %v1256
    %1938 = vmatpush1.bf16.msra.mxu0 %v1255
    %1939 = vmatprep.subr.bf16.mxu0 %v1566
    %1940 = vmatpush1.bf16.msra.mxu0 %v1563
    %1941 = vmatprep.subr.bf16.mxu0 0
    %1942 = vmatpush1.bf16.msra.mxu0 0
    %1943 = vmatprep.subr.bf16.mxu0 0
    %1944 = vmatpush1.bf16.msra.mxu0 0
    %1945 = vmatprep.subr.bf16.mxu0 0
    %1946 = vmatpush1.bf16.msra.mxu0 0
    %1947 = vmatprep.subr.bf16.mxu0 0
    %1948 = vmatpush1.bf16.msra.mxu0 0
    %1949 = vmatprep.subr.bf16.mxu0 0
    %1950 = vmatpush1.bf16.msra.mxu0 0
    %1951 = vmatprep.subr.bf16.mxu0 0
    %1952 = vmatpush1.bf16.msra.mxu0 0
    %1953 = vmatprep.subr.bf16.mxu0 0
    %1954 = vmatpush1.bf16.msra.mxu0 0
    %1955 = vmatprep.mubr.bf16.mxu0 %v1511
    %1956 = vmatmul.mubr.bf16.gmra.mrb[0].mxu0 %v344
    %v1957 = vpop.f32.mrb[0].mxu0
    %v1958 = vadd.f32 0.0, %v1957
    %v1959 = vpop.f32.mrb[0].mxu0
    %v1960 = vadd.f32 0.0, %v1959
    %v1961 = vpop.f32.mrb[0].mxu0
    %v1962 = vpop.f32.mrb[0].mxu0
    %1963 = vdwg.mxu0
    %1964 = vmatprep.subr.bf16.mxu0 %v1069
    %1965 = vmatpush1.bf16.msra.mxu0 %v1068
    %1966 = vmatprep.subr.bf16.mxu0 %v1096
    %1967 = vmatpush1.bf16.msra.mxu0 %v1095
    %1968 = vmatprep.subr.bf16.mxu0 %v1123
    %1969 = vmatpush1.bf16.msra.mxu0 %v1122
    %1970 = vmatprep.subr.bf16.mxu0 %v1150
    %1971 = vmatpush1.bf16.msra.mxu0 %v1149
    %1972 = vmatprep.subr.bf16.mxu0 %v1177
    %1973 = vmatpush1.bf16.msra.mxu0 %v1176
    %1974 = vmatprep.subr.bf16.mxu0 %v1204
    %1975 = vmatpush1.bf16.msra.mxu0 %v1203
    %1976 = vmatprep.subr.bf16.mxu0 %v1231
    %1977 = vmatpush1.bf16.msra.mxu0 %v1230
    %1978 = vmatprep.subr.bf16.mxu0 %v1258
    %1979 = vmatpush1.bf16.msra.mxu0 %v1257
    %1980 = vmatprep.subr.bf16.mxu0 %v1572
    %1981 = vmatpush1.bf16.msra.mxu0 %v1569
    %1982 = vmatprep.subr.bf16.mxu0 0
    %1983 = vmatpush1.bf16.msra.mxu0 0
    %1984 = vmatprep.subr.bf16.mxu0 0
    %1985 = vmatpush1.bf16.msra.mxu0 0
    %1986 = vmatprep.subr.bf16.mxu0 0
    %1987 = vmatpush1.bf16.msra.mxu0 0
    %1988 = vmatprep.subr.bf16.mxu0 0
    %1989 = vmatpush1.bf16.msra.mxu0 0
    %1990 = vmatprep.subr.bf16.mxu0 0
    %1991 = vmatpush1.bf16.msra.mxu0 0
    %1992 = vmatprep.subr.bf16.mxu0 0
    %1993 = vmatpush1.bf16.msra.mxu0 0
    %1994 = vmatprep.subr.bf16.mxu0 0
    %1995 = vmatpush1.bf16.msra.mxu0 0
    %1996 = vmatprep.mubr.bf16.mxu0 %v1511
    %1997 = vmatmul.mubr.bf16.gmra.mrb[0].mxu0 %v344
    %v1998 = vpop.f32.mrb[0].mxu0
    %v1999 = vadd.f32 0.0, %v1998
    %v2000 = vpop.f32.mrb[0].mxu0
    %v2001 = vadd.f32 0.0, %v2000
    %v2002 = vpop.f32.mrb[0].mxu0
    %v2003 = vpop.f32.mrb[0].mxu0
    %2004 = vdwg.mxu0
    %2005 = vmatprep.subr.bf16.mxu0 %v1071
    %2006 = vmatpush1.bf16.msra.mxu0 %v1070
    %2007 = vmatprep.subr.bf16.mxu0 %v1098
    %2008 = vmatpush1.bf16.msra.mxu0 %v1097
    %2009 = vmatprep.subr.bf16.mxu0 %v1125
    %2010 = vmatpush1.bf16.msra.mxu0 %v1124
    %2011 = vmatprep.subr.bf16.mxu0 %v1152
    %2012 = vmatpush1.bf16.msra.mxu0 %v1151
    %2013 = vmatprep.subr.bf16.mxu0 %v1179
    %2014 = vmatpush1.bf16.msra.mxu0 %v1178
    %2015 = vmatprep.subr.bf16.mxu0 %v1206
    %2016 = vmatpush1.bf16.msra.mxu0 %v1205
    %2017 = vmatprep.subr.bf16.mxu0 %v1233
    %2018 = vmatpush1.bf16.msra.mxu0 %v1232
    %2019 = vmatprep.subr.bf16.mxu0 %v1260
    %2020 = vmatpush1.bf16.msra.mxu0 %v1259
    %2021 = vmatprep.subr.bf16.mxu0 %v1578
    %2022 = vmatpush1.bf16.msra.mxu0 %v1575
    %2023 = vmatprep.subr.bf16.mxu0 0
    %2024 = vmatpush1.bf16.msra.mxu0 0
    %2025 = vmatprep.subr.bf16.mxu0 0
    %2026 = vmatpush1.bf16.msra.mxu0 0
    %2027 = vmatprep.subr.bf16.mxu0 0
    %2028 = vmatpush1.bf16.msra.mxu0 0
    %2029 = vmatprep.subr.bf16.mxu0 0
    %2030 = vmatpush1.bf16.msra.mxu0 0
    %2031 = vmatprep.subr.bf16.mxu0 0
    %2032 = vmatpush1.bf16.msra.mxu0 0
    %2033 = vmatprep.subr.bf16.mxu0 0
    %2034 = vmatpush1.bf16.msra.mxu0 0
    %2035 = vmatprep.subr.bf16.mxu0 0
    %2036 = vmatpush1.bf16.msra.mxu0 0
    %2037 = vmatprep.mubr.bf16.mxu0 %v1511
    %2038 = vmatmul.mubr.bf16.gmra.mrb[0].mxu0 %v344
    %v2039 = vpop.f32.mrb[0].mxu0
    %v2040 = vadd.f32 0.0, %v2039
    %v2041 = vpop.f32.mrb[0].mxu0
    %v2042 = vadd.f32 0.0, %v2041
    %v2043 = vpop.f32.mrb[0].mxu0
    %v2044 = vpop.f32.mrb[0].mxu0
    %2045 = vdwg.mxu0
    %2046 = vmatprep.subr.bf16.mxu0 %v1073
    %2047 = vmatpush1.bf16.msra.mxu0 %v1072
    %2048 = vmatprep.subr.bf16.mxu0 %v1100
    %2049 = vmatpush1.bf16.msra.mxu0 %v1099
    %2050 = vmatprep.subr.bf16.mxu0 %v1127
    %2051 = vmatpush1.bf16.msra.mxu0 %v1126
    %2052 = vmatprep.subr.bf16.mxu0 %v1154
    %2053 = vmatpush1.bf16.msra.mxu0 %v1153
    %2054 = vmatprep.subr.bf16.mxu0 %v1181
    %2055 = vmatpush1.bf16.msra.mxu0 %v1180
    %2056 = vmatprep.subr.bf16.mxu0 %v1208
    %2057 = vmatpush1.bf16.msra.mxu0 %v1207
    %2058 = vmatprep.subr.bf16.mxu0 %v1235
    %2059 = vmatpush1.bf16.msra.mxu0 %v1234
    %2060 = vmatprep.subr.bf16.mxu0 %v1262
    %2061 = vmatpush1.bf16.msra.mxu0 %v1261
    %2062 = vmatprep.subr.bf16.mxu0 %v1584
    %2063 = vmatpush1.bf16.msra.mxu0 %v1581
    %2064 = vmatprep.subr.bf16.mxu0 0
    %2065 = vmatpush1.bf16.msra.mxu0 0
    %2066 = vmatprep.subr.bf16.mxu0 0
    %2067 = vmatpush1.bf16.msra.mxu0 0
    %2068 = vmatprep.subr.bf16.mxu0 0
    %2069 = vmatpush1.bf16.msra.mxu0 0
    %2070 = vmatprep.subr.bf16.mxu0 0
    %2071 = vmatpush1.bf16.msra.mxu0 0
    %2072 = vmatprep.subr.bf16.mxu0 0
    %2073 = vmatpush1.bf16.msra.mxu0 0
    %2074 = vmatprep.subr.bf16.mxu0 0
    %2075 = vmatpush1.bf16.msra.mxu0 0
    %2076 = vmatprep.subr.bf16.mxu0 0
    %2077 = vmatpush1.bf16.msra.mxu0 0
    %2078 = vmatprep.mubr.bf16.mxu0 %v1511
    %2079 = vmatmul.mubr.bf16.gmra.mrb[0].mxu0 %v344
    %v2080 = vpop.f32.mrb[0].mxu0
    %v2081 = vadd.f32 0.0, %v2080
    %v2082 = vpop.f32.mrb[0].mxu0
    %v2083 = vadd.f32 0.0, %v2082
    %v2084 = vpop.f32.mrb[0].mxu0
    %v2085 = vpop.f32.mrb[0].mxu0
    %2086 = vdwg.mxu0
    %2087 = vmatprep.subr.bf16.mxu0 %v1075
    %2088 = vmatpush1.bf16.msra.mxu0 %v1074
    %2089 = vmatprep.subr.bf16.mxu0 %v1102
    %2090 = vmatpush1.bf16.msra.mxu0 %v1101
    %2091 = vmatprep.subr.bf16.mxu0 %v1129
    %2092 = vmatpush1.bf16.msra.mxu0 %v1128
    %2093 = vmatprep.subr.bf16.mxu0 %v1156
    %2094 = vmatpush1.bf16.msra.mxu0 %v1155
    %2095 = vmatprep.subr.bf16.mxu0 %v1183
    %2096 = vmatpush1.bf16.msra.mxu0 %v1182
    %2097 = vmatprep.subr.bf16.mxu0 %v1210
    %2098 = vmatpush1.bf16.msra.mxu0 %v1209
    %2099 = vmatprep.subr.bf16.mxu0 %v1237
    %2100 = vmatpush1.bf16.msra.mxu0 %v1236
    %2101 = vmatprep.subr.bf16.mxu0 %v1264
    %2102 = vmatpush1.bf16.msra.mxu0 %v1263
    %2103 = vmatprep.subr.bf16.mxu0 %v1590
    %2104 = vmatpush1.bf16.msra.mxu0 %v1587
    %2105 = vmatprep.subr.bf16.mxu0 0
    %2106 = vmatpush1.bf16.msra.mxu0 0
    %2107 = vmatprep.subr.bf16.mxu0 0
    %2108 = vmatpush1.bf16.msra.mxu0 0
    %2109 = vmatprep.subr.bf16.mxu0 0
    %2110 = vmatpush1.bf16.msra.mxu0 0
    %2111 = vmatprep.subr.bf16.mxu0 0
    %2112 = vmatpush1.bf16.msra.mxu0 0
    %2113 = vmatprep.subr.bf16.mxu0 0
    %2114 = vmatpush1.bf16.msra.mxu0 0
    %2115 = vmatprep.subr.bf16.mxu0 0
    %2116 = vmatpush1.bf16.msra.mxu0 0
    %2117 = vmatprep.subr.bf16.mxu0 0
    %2118 = vmatpush1.bf16.msra.mxu0 0
    %2119 = vmatprep.mubr.bf16.mxu0 %v1511
    %2120 = vmatmul.mubr.bf16.gmra.mrb[0].mxu0 %v344
    %v2121 = vpop.f32.mrb[0].mxu0
    %v2122 = vadd.f32 0.0, %v2121
    %v2123 = vpop.f32.mrb[0].mxu0
    %v2124 = vadd.f32 0.0, %v2123
    %v2125 = vpop.f32.mrb[0].mxu0
    %v2126 = vpop.f32.mrb[0].mxu0
    %2127 = vdwg.mxu0
    %2128 = vmatprep.subr.bf16.mxu0 0
    %2129 = vmatpush1.bf16.msra.mxu0 %v1076
    %2130 = vmatprep.subr.bf16.mxu0 0
    %2131 = vmatpush1.bf16.msra.mxu0 %v1103
    %2132 = vmatprep.subr.bf16.mxu0 0
    %2133 = vmatpush1.bf16.msra.mxu0 %v1130
    %2134 = vmatprep.subr.bf16.mxu0 0
    %2135 = vmatpush1.bf16.msra.mxu0 %v1157
    %2136 = vmatprep.subr.bf16.mxu0 0
    %2137 = vmatpush1.bf16.msra.mxu0 %v1184
    %2138 = vmatprep.subr.bf16.mxu0 0
    %2139 = vmatpush1.bf16.msra.mxu0 %v1211
    %2140 = vmatprep.subr.bf16.mxu0 0
    %2141 = vmatpush1.bf16.msra.mxu0 %v1238
    %2142 = vmatprep.subr.bf16.mxu0 0
    %2143 = vmatpush1.bf16.msra.mxu0 %v1265
    %2144 = vmatprep.subr.bf16.mxu0 0
    %2145 = vmatpush1.bf16.msra.mxu0 %v1593
    %2146 = vmatprep.subr.bf16.mxu0 0
    %2147 = vmatpush1.bf16.msra.mxu0 0
    %2148 = vmatprep.subr.bf16.mxu0 0
    %2149 = vmatpush1.bf16.msra.mxu0 0
    %2150 = vmatprep.subr.bf16.mxu0 0
    %2151 = vmatpush1.bf16.msra.mxu0 0
    %2152 = vmatprep.subr.bf16.mxu0 0
    %2153 = vmatpush1.bf16.msra.mxu0 0
    %2154 = vmatprep.subr.bf16.mxu0 0
    %2155 = vmatpush1.bf16.msra.mxu0 0
    %2156 = vmatprep.subr.bf16.mxu0 0
    %2157 = vmatpush1.bf16.msra.mxu0 0
    %2158 = vmatprep.subr.bf16.mxu0 0
    %2159 = vmatpush1.bf16.msra.mxu0 0
    %2160 = vmatprep.mubr.bf16.mxu0 %v1511
    %2161 = vmatmul.mubr.bf16.gmra.mrb[0].mxu0 %v344
    %v2162 = vpop.f32.mrb[0].mxu0
    %v2163 = vadd.f32 0.0, %v2162
    %v2164 = vpop.f32.mrb[0].mxu0
    %v2165 = vpop.f32.mrb[0].mxu0
    %v2166 = vpop.f32.mrb[0].mxu0
    %2167 = vdwg.mxu0
    %v2168 = vld [vmem:[#allocation5] sm:$0xff]
    %v2169 = vld [vmem:[#allocation5 + $0x8] sm:$0xff]
    %v2170 = vld [vmem:[#allocation5 + $0x10] sm:$0xff]
    %v2171 = vld [vmem:[#allocation5 + $0x18] sm:$0x7]
    %v2176 = vlaneseq
    %v2177 = vshrl.u32 %v2176, 7
    %v2178 = vsub.s32 0, %v2177
    %v2179 = vrot.slane %v2168, %v2178
    %v2180 = vlaneseq
    %v2181 = vshrl.u32 %v2180, 7
    %v2182 = vsub.s32 1, %v2181
    %v2183 = vrot.slane %v2168, %v2182
    %v2184 = vlaneseq
    %v2185 = vshrl.u32 %v2184, 7
    %v2186 = vsub.s32 2, %v2185
    %v2187 = vrot.slane %v2168, %v2186
    %v2188 = vlaneseq
    %v2189 = vshrl.u32 %v2188, 7
    %v2190 = vsub.s32 3, %v2189
    %v2191 = vrot.slane %v2168, %v2190
    %v2192 = vlaneseq
    %v2193 = vshrl.u32 %v2192, 7
    %v2194 = vsub.s32 4, %v2193
    %v2195 = vrot.slane %v2168, %v2194
    %v2196 = vlaneseq
    %v2197 = vshrl.u32 %v2196, 7
    %v2198 = vsub.s32 5, %v2197
    %v2199 = vrot.slane %v2168, %v2198
    %v2200 = vlaneseq
    %v2201 = vshrl.u32 %v2200, 7
    %v2202 = vsub.s32 6, %v2201
    %v2203 = vrot.slane %v2168, %v2202
    %v2204 = vlaneseq
    %v2205 = vshrl.u32 %v2204, 7
    %v2206 = vsub.s32 7, %v2205
    %v2207 = vrot.slane %v2168, %v2206
    %v2208 = vlaneseq
    %v2209 = vshrl.u32 %v2208, 7
    %v2210 = vsub.s32 0, %v2209
    %v2211 = vrot.slane %v2169, %v2210
    %v2212 = vlaneseq
    %v2213 = vshrl.u32 %v2212, 7
    %v2214 = vsub.s32 1, %v2213
    %v2215 = vrot.slane %v2169, %v2214
    %v2216 = vlaneseq
    %v2217 = vshrl.u32 %v2216, 7
    %v2218 = vsub.s32 2, %v2217
    %v2219 = vrot.slane %v2169, %v2218
    %v2220 = vlaneseq
    %v2221 = vshrl.u32 %v2220, 7
    %v2222 = vsub.s32 3, %v2221
    %v2223 = vrot.slane %v2169, %v2222
    %v2224 = vlaneseq
    %v2225 = vshrl.u32 %v2224, 7
    %v2226 = vsub.s32 4, %v2225
    %v2227 = vrot.slane %v2169, %v2226
    %v2228 = vlaneseq
    %v2229 = vshrl.u32 %v2228, 7
    %v2230 = vsub.s32 5, %v2229
    %v2231 = vrot.slane %v2169, %v2230
    %v2232 = vlaneseq
    %v2233 = vshrl.u32 %v2232, 7
    %v2234 = vsub.s32 6, %v2233
    %v2235 = vrot.slane %v2169, %v2234
    %v2236 = vlaneseq
    %v2237 = vshrl.u32 %v2236, 7
    %v2238 = vsub.s32 7, %v2237
    %v2239 = vrot.slane %v2169, %v2238
    %v2240 = vlaneseq
    %v2241 = vshrl.u32 %v2240, 7
    %v2242 = vsub.s32 0, %v2241
    %v2243 = vrot.slane %v2170, %v2242
    %v2244 = vlaneseq
    %v2245 = vshrl.u32 %v2244, 7
    %v2246 = vsub.s32 1, %v2245
    %v2247 = vrot.slane %v2170, %v2246
    %v2248 = vlaneseq
    %v2249 = vshrl.u32 %v2248, 7
    %v2250 = vsub.s32 2, %v2249
    %v2251 = vrot.slane %v2170, %v2250
    %v2252 = vlaneseq
    %v2253 = vshrl.u32 %v2252, 7
    %v2254 = vsub.s32 3, %v2253
    %v2255 = vrot.slane %v2170, %v2254
    %v2256 = vlaneseq
    %v2257 = vshrl.u32 %v2256, 7
    %v2258 = vsub.s32 4, %v2257
    %v2259 = vrot.slane %v2170, %v2258
    %v2260 = vlaneseq
    %v2261 = vshrl.u32 %v2260, 7
    %v2262 = vsub.s32 5, %v2261
    %v2263 = vrot.slane %v2170, %v2262
    %v2264 = vlaneseq
    %v2265 = vshrl.u32 %v2264, 7
    %v2266 = vsub.s32 6, %v2265
    %v2267 = vrot.slane %v2170, %v2266
    %v2268 = vlaneseq
    %v2269 = vshrl.u32 %v2268, 7
    %v2270 = vsub.s32 7, %v2269
    %v2271 = vrot.slane %v2170, %v2270
    %v2272 = vlaneseq
    %v2273 = vshrl.u32 %v2272, 7
    %v2274 = vsub.s32 0, %v2273
    %v2275 = vrot.slane %v2171, %v2274
    %v2276 = vlaneseq
    %v2277 = vshrl.u32 %v2276, 7
    %v2278 = vsub.s32 1, %v2277
    %v2279 = vrot.slane %v2171, %v2278
    %v2280 = vlaneseq
    %v2281 = vshrl.u32 %v2280, 7
    %v2282 = vsub.s32 2, %v2281
    %v2283 = vrot.slane %v2171, %v2282
    %vm2311 = vcmp.eq.f32.partialorder %v1630, %v2179
    %vm2312 = vcmp.eq.f32.partialorder %v1632, %v2183
    %vm2313 = vcmp.eq.f32.partialorder %v1671, %v2187
    %vm2314 = vcmp.eq.f32.partialorder %v1673, %v2191
    %vm2315 = vcmp.eq.f32.partialorder %v1712, %v2195
    %vm2316 = vcmp.eq.f32.partialorder %v1714, %v2199
    %vm2317 = vcmp.eq.f32.partialorder %v1753, %v2203
    %vm2318 = vcmp.eq.f32.partialorder %v1755, %v2207
    %vm2319 = vcmp.eq.f32.partialorder %v1794, %v2211
    %vm2320 = vcmp.eq.f32.partialorder %v1796, %v2215
    %vm2321 = vcmp.eq.f32.partialorder %v1835, %v2219
    %vm2322 = vcmp.eq.f32.partialorder %v1837, %v2223
    %vm2323 = vcmp.eq.f32.partialorder %v1876, %v2227
    %vm2324 = vcmp.eq.f32.partialorder %v1878, %v2231
    %vm2325 = vcmp.eq.f32.partialorder %v1917, %v2235
    %vm2326 = vcmp.eq.f32.partialorder %v1919, %v2239
    %vm2327 = vcmp.eq.f32.partialorder %v1958, %v2243
    %vm2328 = vcmp.eq.f32.partialorder %v1960, %v2247
    %vm2329 = vcmp.eq.f32.partialorder %v1999, %v2251
    %vm2330 = vcmp.eq.f32.partialorder %v2001, %v2255
    %vm2331 = vcmp.eq.f32.partialorder %v2040, %v2259
    %vm2332 = vcmp.eq.f32.partialorder %v2042, %v2263
    %vm2333 = vcmp.eq.f32.partialorder %v2081, %v2267
    %vm2334 = vcmp.eq.f32.partialorder %v2083, %v2271
    %vm2335 = vcmp.eq.f32.partialorder %v2122, %v2275
    %vm2336 = vcmp.eq.f32.partialorder %v2124, %v2279
    %vm2337 = vcmp.eq.f32.partialorder %v2163, %v2283
    %v2338 = vsel %vm2311, 1, 0
    %v2339 = vsel %vm2312, 1, 0
    %v2340 = vsel %vm2313, 1, 0
    %v2341 = vsel %vm2314, 1, 0
    %v2342 = vsel %vm2315, 1, 0
    %v2343 = vsel %vm2316, 1, 0
    %v2344 = vsel %vm2317, 1, 0
    %v2345 = vsel %vm2318, 1, 0
    %v2346 = vsel %vm2319, 1, 0
    %v2347 = vsel %vm2320, 1, 0
    %v2348 = vsel %vm2321, 1, 0
    %v2349 = vsel %vm2322, 1, 0
    %v2350 = vsel %vm2323, 1, 0
    %v2351 = vsel %vm2324, 1, 0
    %v2352 = vsel %vm2325, 1, 0
    %v2353 = vsel %vm2326, 1, 0
    %v2354 = vsel %vm2327, 1, 0
    %v2355 = vsel %vm2328, 1, 0
    %v2356 = vsel %vm2329, 1, 0
    %v2357 = vsel %vm2330, 1, 0
    %v2358 = vsel %vm2331, 1, 0
    %v2359 = vsel %vm2332, 1, 0
    %v2360 = vsel %vm2333, 1, 0
    %v2361 = vsel %vm2334, 1, 0
    %v2362 = vsel %vm2335, 1, 0
    %v2363 = vsel %vm2336, 1, 0
    %v2364 = vsel %vm2337, 1, 0
    %v2365 = vcvt.s32.f32 %v2338
    %v2366 = vcvt.s32.f32 %v2339
    %v2367 = vcvt.s32.f32 %v2340
    %v2368 = vcvt.s32.f32 %v2341
    %v2369 = vcvt.s32.f32 %v2342
    %v2370 = vcvt.s32.f32 %v2343
    %v2371 = vcvt.s32.f32 %v2344
    %v2372 = vcvt.s32.f32 %v2345
    %v2373 = vcvt.s32.f32 %v2346
    %v2374 = vcvt.s32.f32 %v2347
    %v2375 = vcvt.s32.f32 %v2348
    %v2376 = vcvt.s32.f32 %v2349
    %v2377 = vcvt.s32.f32 %v2350
    %v2378 = vcvt.s32.f32 %v2351
    %v2379 = vcvt.s32.f32 %v2352
    %v2380 = vcvt.s32.f32 %v2353
    %v2381 = vcvt.s32.f32 %v2354
    %v2382 = vcvt.s32.f32 %v2355
    %v2383 = vcvt.s32.f32 %v2356
    %v2384 = vcvt.s32.f32 %v2357
    %v2385 = vcvt.s32.f32 %v2358
    %v2386 = vcvt.s32.f32 %v2359
    %v2387 = vcvt.s32.f32 %v2360
    %v2388 = vcvt.s32.f32 %v2361
    %v2389 = vcvt.s32.f32 %v2362
    %v2390 = vcvt.s32.f32 %v2363
    %v2391 = vcvt.s32.f32 %v2364
    %v2392 = vld [vmem:[#allocation7] sm:$0xff]
    %v2393 = vld [vmem:[#allocation7 + $0x8] sm:$0xff]
    %v2394 = vld [vmem:[#allocation7 + $0x10] sm:$0xff]
    %v2395 = vld [vmem:[#allocation7 + $0x18] sm:$0xff]
    %v2396 = vld [vmem:[#allocation7 + $0x20] sm:$0xff]
    %v2397 = vld [vmem:[#allocation7 + $0x28] sm:$0xff]
    %v2398 = vld [vmem:[#allocation7 + $0x30] sm:$0xff]
    %v2399 = vld [vmem:[#allocation7 + $0x38] sm:$0xff]
    %v2400 = vld [vmem:[#allocation7 + $0x40] sm:$0xff]
    %v2401 = vld [vmem:[#allocation7 + $0x48] sm:$0xff]
    %v2402 = vld [vmem:[#allocation7 + $0x50] sm:$0xff]
    %v2403 = vld [vmem:[#allocation7 + $0x58] sm:$0xff]
    %v2404 = vld [vmem:[#allocation7 + $0x60] sm:$0xff]
    %v2405 = vld [vmem:[#allocation7 + $0x68] sm:$0xff]
    %v2406 = vld [vmem:[#allocation7 + $0x70] sm:$0xff]
    %v2407 = vld [vmem:[#allocation7 + $0x78] sm:$0xff]
    %v2408 = vld [vmem:[#allocation7 + $0x80] sm:$0xff]
    %v2409 = vld [vmem:[#allocation7 + $0x88] sm:$0xff]
    %v2410 = vld [vmem:[#allocation7 + $0x90] sm:$0xff]
    %v2411 = vld [vmem:[#allocation7 + $0x98] sm:$0xff]
    %v2412 = vld [vmem:[#allocation7 + $0xa0] sm:$0xff]
    %v2413 = vld [vmem:[#allocation7 + $0xa8] sm:$0xff]
    %v2414 = vld [vmem:[#allocation7 + $0xb0] sm:$0xff]
    %v2415 = vld [vmem:[#allocation7 + $0xb8] sm:$0xff]
    %v2416 = vld [vmem:[#allocation7 + $0xc0] sm:$0xff]
    %v2417 = vld [vmem:[#allocation7 + $0xc8] sm:$0xff]
    %v2418 = vld [vmem:[#allocation7 + $0xd0] sm:$0xff]
    %v2419 = vld [vmem:[#allocation7 + $0xd8] sm:$0xff]
    %v2420 = vld [vmem:[#allocation7 + $0xe0] sm:$0xff]
    %v2421 = vld [vmem:[#allocation7 + $0xe8] sm:$0xff]
    %v2422 = vld [vmem:[#allocation7 + $0xf0] sm:$0xff]
    %v2423 = vld [vmem:[#allocation7 + $0xf8] sm:$0xff]
    %v2424 = vld [vmem:[#allocation7 + $0x100] sm:$0xff]
    %v2425 = vld [vmem:[#allocation7 + $0x108] sm:$0xff]
    %v2426 = vld [vmem:[#allocation7 + $0x110] sm:$0xff]
    %v2427 = vld [vmem:[#allocation7 + $0x118] sm:$0xff]
    %v2428 = vld [vmem:[#allocation7 + $0x120] sm:$0xff]
    %v2429 = vld [vmem:[#allocation7 + $0x128] sm:$0xff]
    %v2430 = vld [vmem:[#allocation7 + $0x130] sm:$0xff]
    %v2431 = vld [vmem:[#allocation7 + $0x138] sm:$0xff]
    %v2432 = vld [vmem:[#allocation7 + $0x140] sm:$0xff]
    %v2433 = vld [vmem:[#allocation7 + $0x148] sm:$0xff]
    %v2434 = vld [vmem:[#allocation7 + $0x150] sm:$0xff]
    %v2435 = vld [vmem:[#allocation7 + $0x158] sm:$0xff]
    %v2436 = vld [vmem:[#allocation7 + $0x160] sm:$0xff]
    %v2437 = vld [vmem:[#allocation7 + $0x168] sm:$0xff]
    %v2438 = vld [vmem:[#allocation7 + $0x170] sm:$0xff]
    %v2439 = vld [vmem:[#allocation7 + $0x178] sm:$0xff]
    %v2440 = vld [vmem:[#allocation7 + $0x180] sm:$0xff]
    %v2441 = vld [vmem:[#allocation7 + $0x188] sm:$0xff]
    %v2442 = vld [vmem:[#allocation7 + $0x190] sm:$0xff]
    %v2443 = vld [vmem:[#allocation7 + $0x198] sm:$0xff]
    %v2444 = vld [vmem:[#allocation7 + $0x1a0] sm:$0xff]
    %v2445 = vld [vmem:[#allocation7 + $0x1a8] sm:$0xff]
    %v2446 = vld [vmem:[#allocation7 + $0x1b0] sm:$0xff]
    %v2447 = vld [vmem:[#allocation7 + $0x1b8] sm:$0xff]
    %v2448 = vld [vmem:[#allocation7 + $0x1c0] sm:$0xff]
    %v2449 = vld [vmem:[#allocation7 + $0x1c8] sm:$0xff]
    %v2450 = vld [vmem:[#allocation7 + $0x1d0] sm:$0xff]
    %v2451 = vld [vmem:[#allocation7 + $0x1d8] sm:$0xff]
    %v2452 = vld [vmem:[#allocation7 + $0x1e0] sm:$0xff]
    %v2453 = vld [vmem:[#allocation7 + $0x1e8] sm:$0xff]
    %v2454 = vld [vmem:[#allocation7 + $0x1f0] sm:$0xff]
    %v2455 = vld [vmem:[#allocation7 + $0x1f8] sm:$0xff]
    %v2456 = vld [vmem:[#allocation7 + $0x200] sm:$0xff]
    %v2457 = vld [vmem:[#allocation7 + $0x208] sm:$0xff]
    %v2458 = vld [vmem:[#allocation7 + $0x210] sm:$0xff]
    %v2459 = vld [vmem:[#allocation7 + $0x218] sm:$0xff]
    %v2460 = vld [vmem:[#allocation7 + $0x220] sm:$0xff]
    %v2461 = vld [vmem:[#allocation7 + $0x228] sm:$0xff]
    %v2462 = vld [vmem:[#allocation7 + $0x230] sm:$0xff]
    %v2463 = vld [vmem:[#allocation7 + $0x238] sm:$0xff]
    %v2464 = vld [vmem:[#allocation7 + $0x240] sm:$0xff]
    %v2465 = vld [vmem:[#allocation7 + $0x248] sm:$0xff]
    %v2466 = vld [vmem:[#allocation7 + $0x250] sm:$0xff]
    %v2467 = vld [vmem:[#allocation7 + $0x258] sm:$0xff]
    %v2468 = vld [vmem:[#allocation7 + $0x260] sm:$0xff]
    %v2469 = vld [vmem:[#allocation7 + $0x268] sm:$0xff]
    %v2470 = vld [vmem:[#allocation7 + $0x270] sm:$0xff]
    %v2471 = vld [vmem:[#allocation7 + $0x278] sm:$0xff]
    %v2472 = vld [vmem:[#allocation7 + $0x280] sm:$0xff]
    %v2473 = vld [vmem:[#allocation7 + $0x288] sm:$0xff]
    %v2474 = vld [vmem:[#allocation7 + $0x290] sm:$0xff]
    %v2475 = vld [vmem:[#allocation7 + $0x298] sm:$0xff]
    %v2476 = vld [vmem:[#allocation7 + $0x2a0] sm:$0xff]
    %v2477 = vld [vmem:[#allocation7 + $0x2a8] sm:$0xff]
    %v2478 = vld [vmem:[#allocation7 + $0x2b0] sm:$0xff]
    %v2479 = vld [vmem:[#allocation7 + $0x2b8] sm:$0xff]
    %v2480 = vld [vmem:[#allocation7 + $0x2c0] sm:$0xff]
    %v2481 = vld [vmem:[#allocation7 + $0x2c8] sm:$0xff]
    %v2482 = vld [vmem:[#allocation7 + $0x2d0] sm:$0xff]
    %v2483 = vld [vmem:[#allocation7 + $0x2d8] sm:$0xff]
    %v2484 = vld [vmem:[#allocation7 + $0x2e0] sm:$0xff]
    %v2485 = vld [vmem:[#allocation7 + $0x2e8] sm:$0xff]
    %v2486 = vld [vmem:[#allocation7 + $0x2f0] sm:$0xff]
    %v2487 = vld [vmem:[#allocation7 + $0x2f8] sm:$0xff]
    %v2488 = vld [vmem:[#allocation7 + $0x300] sm:$0xff]
    %v2489 = vld [vmem:[#allocation7 + $0x308] sm:$0xff]
    %v2490 = vld [vmem:[#allocation7 + $0x310] sm:$0xff]
    %v2491 = vld [vmem:[#allocation7 + $0x318] sm:$0xff]
    %v2492 = vld [vmem:[#allocation7 + $0x320] sm:$0xff]
    %v2493 = vld [vmem:[#allocation7 + $0x328] sm:$0xff]
    %v2494 = vld [vmem:[#allocation7 + $0x330] sm:$0xff]
    %v2495 = vld [vmem:[#allocation7 + $0x338] sm:$0xff]
    %v2496 = vld [vmem:[#allocation7 + $0x340] sm:$0xff]
    %v2497 = vld [vmem:[#allocation7 + $0x348] sm:$0xff]
    %v2498 = vld [vmem:[#allocation7 + $0x350] sm:$0xff]
    %v2499 = vld [vmem:[#allocation7 + $0x358] sm:$0xff]
    %v2500 = vld [vmem:[#allocation7 + $0x360] sm:$0xff]
    %v2501 = vld [vmem:[#allocation7 + $0x368] sm:$0xff]
    %v2502 = vld [vmem:[#allocation7 + $0x370] sm:$0xff]
    %v2503 = vld [vmem:[#allocation7 + $0x378] sm:$0xff]
    %v2504 = vld [vmem:[#allocation7 + $0x380] sm:$0xff]
    %v2505 = vld [vmem:[#allocation7 + $0x388] sm:$0xff]
    %v2506 = vld [vmem:[#allocation7 + $0x390] sm:$0xff]
    %v2507 = vld [vmem:[#allocation7 + $0x398] sm:$0xff]
    %v2508 = vld [vmem:[#allocation7 + $0x3a0] sm:$0xff]
    %v2509 = vld [vmem:[#allocation7 + $0x3a8] sm:$0xff]
    %v2510 = vld [vmem:[#allocation7 + $0x3b0] sm:$0xff]
    %v2511 = vld [vmem:[#allocation7 + $0x3b8] sm:$0xff]
    %v2512 = vld [vmem:[#allocation7 + $0x3c0] sm:$0xff]
    %v2513 = vld [vmem:[#allocation7 + $0x3c8] sm:$0xff]
    %v2514 = vld [vmem:[#allocation7 + $0x3d0] sm:$0xff]
    %v2515 = vld [vmem:[#allocation7 + $0x3d8] sm:$0xff]
    %v2516 = vld [vmem:[#allocation7 + $0x3e0] sm:$0xff]
    %v2517 = vld [vmem:[#allocation7 + $0x3e8] sm:$0xff]
    %v2518 = vld [vmem:[#allocation7 + $0x3f0] sm:$0xff]
    %v2519 = vld [vmem:[#allocation7 + $0x3f8] sm:$0xff]
    %v2520 = vld [vmem:[#allocation7 + $0x400] sm:$0xff]
    %v2521 = vld [vmem:[#allocation7 + $0x408] sm:$0xff]
    %v2522 = vld [vmem:[#allocation7 + $0x410] sm:$0xff]
    %v2523 = vld [vmem:[#allocation7 + $0x418] sm:$0xff]
    %v2524 = vld [vmem:[#allocation7 + $0x420] sm:$0xff]
    %v2525 = vld [vmem:[#allocation7 + $0x428] sm:$0xff]
    %v2526 = vld [vmem:[#allocation7 + $0x430] sm:$0xff]
    %v2527 = vld [vmem:[#allocation7 + $0x438] sm:$0xff]
    %v2528 = vld [vmem:[#allocation7 + $0x440] sm:$0xff]
    %v2529 = vld [vmem:[#allocation7 + $0x448] sm:$0xff]
    %v2530 = vld [vmem:[#allocation7 + $0x450] sm:$0xff]
    %v2531 = vld [vmem:[#allocation7 + $0x458] sm:$0xff]
    %v2532 = vld [vmem:[#allocation7 + $0x460] sm:$0xff]
    %v2533 = vld [vmem:[#allocation7 + $0x468] sm:$0xff]
    %v2534 = vld [vmem:[#allocation7 + $0x470] sm:$0xff]
    %v2535 = vld [vmem:[#allocation7 + $0x478] sm:$0xff]
    %v2536 = vld [vmem:[#allocation7 + $0x480] sm:$0xff]
    %v2537 = vld [vmem:[#allocation7 + $0x488] sm:$0xff]
    %v2538 = vld [vmem:[#allocation7 + $0x490] sm:$0xff]
    %v2539 = vld [vmem:[#allocation7 + $0x498] sm:$0xff]
    %v2540 = vld [vmem:[#allocation7 + $0x4a0] sm:$0xff]
    %v2541 = vld [vmem:[#allocation7 + $0x4a8] sm:$0xff]
    %v2542 = vld [vmem:[#allocation7 + $0x4b0] sm:$0xff]
    %v2543 = vld [vmem:[#allocation7 + $0x4b8] sm:$0xff]
    %v2544 = vld [vmem:[#allocation7 + $0x4c0] sm:$0xff]
    %v2545 = vld [vmem:[#allocation7 + $0x4c8] sm:$0xff]
    %v2546 = vld [vmem:[#allocation7 + $0x4d0] sm:$0xff]
    %v2547 = vld [vmem:[#allocation7 + $0x4d8] sm:$0xff]
    %v2548 = vld [vmem:[#allocation7 + $0x4e0] sm:$0xff]
    %v2549 = vld [vmem:[#allocation7 + $0x4e8] sm:$0xff]
    %v2550 = vld [vmem:[#allocation7 + $0x4f0] sm:$0xff]
    %v2551 = vld [vmem:[#allocation7 + $0x4f8] sm:$0xff]
    %v2552 = vld [vmem:[#allocation7 + $0x500] sm:$0xff]
    %v2553 = vld [vmem:[#allocation7 + $0x508] sm:$0xff]
    %v2554 = vld [vmem:[#allocation7 + $0x510] sm:$0xff]
    %v2555 = vld [vmem:[#allocation7 + $0x518] sm:$0xff]
    %v2556 = vld [vmem:[#allocation7 + $0x520] sm:$0xff]
    %v2557 = vld [vmem:[#allocation7 + $0x528] sm:$0xff]
    %v2558 = vld [vmem:[#allocation7 + $0x530] sm:$0xff]
    %v2559 = vld [vmem:[#allocation7 + $0x538] sm:$0xff]
    %v2560 = vld [vmem:[#allocation7 + $0x540] sm:$0xff]
    %v2561 = vld [vmem:[#allocation7 + $0x548] sm:$0xff]
    %v2562 = vld [vmem:[#allocation7 + $0x550] sm:$0xff]
    %v2563 = vld [vmem:[#allocation7 + $0x558] sm:$0xff]
    %v2564 = vld [vmem:[#allocation7 + $0x560] sm:$0xff]
    %v2565 = vld [vmem:[#allocation7 + $0x568] sm:$0xff]
    %v2566 = vld [vmem:[#allocation7 + $0x570] sm:$0xff]
    %v2567 = vld [vmem:[#allocation7 + $0x578] sm:$0xff]
    %v2568 = vld [vmem:[#allocation7 + $0x580] sm:$0xff]
    %v2569 = vld [vmem:[#allocation7 + $0x588] sm:$0xff]
    %v2570 = vld [vmem:[#allocation7 + $0x590] sm:$0xff]
    %v2571 = vld [vmem:[#allocation7 + $0x598] sm:$0xff]
    %v2572 = vld [vmem:[#allocation7 + $0x5a0] sm:$0xff]
    %v2573 = vld [vmem:[#allocation7 + $0x5a8] sm:$0xff]
    %v2574 = vld [vmem:[#allocation7 + $0x5b0] sm:$0xff]
    %v2575 = vld [vmem:[#allocation7 + $0x5b8] sm:$0xff]
    %v2576 = vld [vmem:[#allocation7 + $0x5c0] sm:$0xff]
    %v2577 = vld [vmem:[#allocation7 + $0x5c8] sm:$0xff]
    %v2578 = vld [vmem:[#allocation7 + $0x5d0] sm:$0xff]
    %v2579 = vld [vmem:[#allocation7 + $0x5d8] sm:$0xff]
    %v2580 = vld [vmem:[#allocation7 + $0x5e0] sm:$0xff]
    %v2581 = vld [vmem:[#allocation7 + $0x5e8] sm:$0xff]
    %v2582 = vld [vmem:[#allocation7 + $0x5f0] sm:$0xff]
    %v2583 = vld [vmem:[#allocation7 + $0x5f8] sm:$0xff]
    %v2584 = vld [vmem:[#allocation7 + $0x600] sm:$0xff]
    %v2585 = vld [vmem:[#allocation7 + $0x608] sm:$0xff]
    %v2586 = vld [vmem:[#allocation7 + $0x610] sm:$0xff]
    %v2587 = vld [vmem:[#allocation7 + $0x618] sm:$0xff]
    %v2588 = vld [vmem:[#allocation7 + $0x620] sm:$0xff]
    %v2589 = vld [vmem:[#allocation7 + $0x628] sm:$0xff]
    %v2590 = vld [vmem:[#allocation7 + $0x630] sm:$0xff]
    %v2591 = vld [vmem:[#allocation7 + $0x638] sm:$0xff]
    %v2592 = vld [vmem:[#allocation7 + $0x640] sm:$0xff]
    %v2593 = vld [vmem:[#allocation7 + $0x648] sm:$0xff]
    %v2594 = vld [vmem:[#allocation7 + $0x650] sm:$0xff]
    %v2595 = vld [vmem:[#allocation7 + $0x658] sm:$0xff]
    %v2596 = vld [vmem:[#allocation7 + $0x660] sm:$0xff]
    %v2597 = vld [vmem:[#allocation7 + $0x668] sm:$0xff]
    %v2598 = vld [vmem:[#allocation7 + $0x670] sm:$0xff]
    %v2599 = vld [vmem:[#allocation7 + $0x678] sm:$0xff]
    %v2600 = vld [vmem:[#allocation7 + $0x680] sm:$0xff]
    %v2601 = vld [vmem:[#allocation7 + $0x688] sm:$0xff]
    %v2602 = vld [vmem:[#allocation7 + $0x690] sm:$0xff]
    %v2603 = vld [vmem:[#allocation7 + $0x698] sm:$0xff]
    %v2604 = vld [vmem:[#allocation7 + $0x6a0] sm:$0xff]
    %v2605 = vld [vmem:[#allocation7 + $0x6a8] sm:$0xff]
    %v2606 = vld [vmem:[#allocation7 + $0x6b0] sm:$0xff]
    %v2607 = vld [vmem:[#allocation7 + $0x6b8] sm:$0xff]
    %v2608 = vld [vmem:[#allocation7 + $0x6c0] sm:$0xff]
    %v2609 = vld [vmem:[#allocation7 + $0x6c8] sm:$0xff]
    %v2610 = vld [vmem:[#allocation7 + $0x6d0] sm:$0xff]
    %v2611 = vld [vmem:[#allocation7 + $0x6d8] sm:$0xff]
    %v2612 = vld [vmem:[#allocation7 + $0x6e0] sm:$0xff]
    %v2613 = vld [vmem:[#allocation7 + $0x6e8] sm:$0xff]
    %v2614 = vld [vmem:[#allocation7 + $0x6f0] sm:$0xff]
    %v2615 = vld [vmem:[#allocation7 + $0x6f8] sm:$0xff]
    %v2616 = vld [vmem:[#allocation7 + $0x700] sm:$0xff]
    %v2617 = vld [vmem:[#allocation7 + $0x708] sm:$0xff]
    %v2618 = vld [vmem:[#allocation7 + $0x710] sm:$0xff]
    %v2619 = vld [vmem:[#allocation7 + $0x718] sm:$0xff]
    %v2620 = vld [vmem:[#allocation7 + $0x720] sm:$0xff]
    %v2621 = vld [vmem:[#allocation7 + $0x728] sm:$0xff]
    %v2622 = vld [vmem:[#allocation7 + $0x730] sm:$0xff]
    %v2623 = vld [vmem:[#allocation7 + $0x738] sm:$0xff]
    %v2624 = vld [vmem:[#allocation7 + $0x740] sm:$0xff]
    %v2625 = vld [vmem:[#allocation7 + $0x748] sm:$0xff]
    %v2626 = vld [vmem:[#allocation7 + $0x750] sm:$0xff]
    %v2627 = vld [vmem:[#allocation7 + $0x758] sm:$0xff]
    %v2628 = vld [vmem:[#allocation7 + $0x760] sm:$0xff]
    %v2629 = vld [vmem:[#allocation7 + $0x768] sm:$0xff]
    %v2630 = vld [vmem:[#allocation7 + $0x770] sm:$0xff]
    %v2631 = vld [vmem:[#allocation7 + $0x778] sm:$0xff]
    %v2632 = vld [vmem:[#allocation7 + $0x780] sm:$0xff]
    %v2633 = vld [vmem:[#allocation7 + $0x788] sm:$0xff]
    %v2634 = vld [vmem:[#allocation7 + $0x790] sm:$0xff]
    %v2635 = vld [vmem:[#allocation7 + $0x798] sm:$0xff]
    %v2636 = vld [vmem:[#allocation7 + $0x7a0] sm:$0xff]
    %v2637 = vld [vmem:[#allocation7 + $0x7a8] sm:$0xff]
    %v2638 = vld [vmem:[#allocation7 + $0x7b0] sm:$0xff]
    %v2639 = vld [vmem:[#allocation7 + $0x7b8] sm:$0xff]
    %v2640 = vld [vmem:[#allocation7 + $0x7c0] sm:$0xff]
    %v2641 = vld [vmem:[#allocation7 + $0x7c8] sm:$0xff]
    %v2642 = vld [vmem:[#allocation7 + $0x7d0] sm:$0xff]
    %v2643 = vld [vmem:[#allocation7 + $0x7d8] sm:$0xff]
    %v2644 = vld [vmem:[#allocation7 + $0x7e0] sm:$0xff]
    %v2645 = vld [vmem:[#allocation7 + $0x7e8] sm:$0xff]
    %v2646 = vld [vmem:[#allocation7 + $0x7f0] sm:$0xff]
    %v2647 = vld [vmem:[#allocation7 + $0x7f8] sm:$0xff]
    %v2648 = vld [vmem:[#allocation7 + $0x800] sm:$0xff]
    %v2649 = vld [vmem:[#allocation7 + $0x808] sm:$0xff]
    %v2650 = vld [vmem:[#allocation7 + $0x810] sm:$0xff]
    %v2651 = vld [vmem:[#allocation7 + $0x818] sm:$0xff]
    %v2652 = vld [vmem:[#allocation7 + $0x820] sm:$0xff]
    %v2653 = vld [vmem:[#allocation7 + $0x828] sm:$0xff]
    %v2654 = vld [vmem:[#allocation7 + $0x830] sm:$0xff]
    %v2655 = vld [vmem:[#allocation7 + $0x838] sm:$0xff]
    %v2656 = vld [vmem:[#allocation7 + $0x840] sm:$0xff]
    %v2657 = vld [vmem:[#allocation7 + $0x848] sm:$0xff]
    %v2658 = vld [vmem:[#allocation7 + $0x850] sm:$0xff]
    %v2659 = vld [vmem:[#allocation7 + $0x858] sm:$0xff]
    %v2660 = vld [vmem:[#allocation7 + $0x860] sm:$0xff]
    %v2661 = vld [vmem:[#allocation7 + $0x868] sm:$0xff]
    %v2662 = vld [vmem:[#allocation7 + $0x870] sm:$0xff]
    %v2663 = vld [vmem:[#allocation7 + $0x878] sm:$0xff]
    %v2664 = vld [vmem:[#allocation7 + $0x880] sm:$0xff]
    %v2665 = vld [vmem:[#allocation7 + $0x888] sm:$0xff]
    %v2666 = vld [vmem:[#allocation7 + $0x890] sm:$0xff]
    %v2667 = vld [vmem:[#allocation7 + $0x898] sm:$0xff]
    %v2668 = vld [vmem:[#allocation7 + $0x8a0] sm:$0xff]
    %v2669 = vld [vmem:[#allocation7 + $0x8a8] sm:$0xff]
    %v2670 = vld [vmem:[#allocation7 + $0x8b0] sm:$0xff]
    %v2671 = vld [vmem:[#allocation7 + $0x8b8] sm:$0xff]
    %v2672 = vld [vmem:[#allocation7 + $0x8c0] sm:$0xff]
    %v2673 = vld [vmem:[#allocation7 + $0x8c8] sm:$0xff]
    %v2674 = vld [vmem:[#allocation7 + $0x8d0] sm:$0xff]
    %v2675 = vld [vmem:[#allocation7 + $0x8d8] sm:$0xff]
    %v2676 = vld [vmem:[#allocation7 + $0x8e0] sm:$0xff]
    %v2677 = vld [vmem:[#allocation7 + $0x8e8] sm:$0xff]
    %v2678 = vld [vmem:[#allocation7 + $0x8f0] sm:$0xff]
    %v2679 = vld [vmem:[#allocation7 + $0x8f8] sm:$0xff]
    %v2680 = vld [vmem:[#allocation7 + $0x900] sm:$0xff]
    %v2681 = vld [vmem:[#allocation7 + $0x908] sm:$0xff]
    %v2682 = vld [vmem:[#allocation7 + $0x910] sm:$0xff]
    %v2683 = vld [vmem:[#allocation7 + $0x918] sm:$0xff]
    %v2684 = vld [vmem:[#allocation7 + $0x920] sm:$0xff]
    %v2685 = vld [vmem:[#allocation7 + $0x928] sm:$0xff]
    %v2686 = vld [vmem:[#allocation7 + $0x930] sm:$0xff]
    %v2687 = vld [vmem:[#allocation7 + $0x938] sm:$0xff]
    %v2688 = vld [vmem:[#allocation7 + $0x940] sm:$0xff]
    %v2689 = vld [vmem:[#allocation7 + $0x948] sm:$0xff]
    %v2690 = vld [vmem:[#allocation7 + $0x950] sm:$0xff]
    %v2691 = vld [vmem:[#allocation7 + $0x958] sm:$0xff]
    %v2692 = vld [vmem:[#allocation7 + $0x960] sm:$0xff]
    %v2693 = vld [vmem:[#allocation7 + $0x968] sm:$0xff]
    %v2694 = vld [vmem:[#allocation7 + $0x970] sm:$0xff]
    %v2695 = vld [vmem:[#allocation7 + $0x978] sm:$0xff]
    %v2696 = vld [vmem:[#allocation7 + $0x980] sm:$0xff]
    %v2697 = vld [vmem:[#allocation7 + $0x988] sm:$0xff]
    %v2698 = vld [vmem:[#allocation7 + $0x990] sm:$0xff]
    %v2699 = vld [vmem:[#allocation7 + $0x998] sm:$0xff]
    %v2700 = vld [vmem:[#allocation7 + $0x9a0] sm:$0xff]
    %v2701 = vld [vmem:[#allocation7 + $0x9a8] sm:$0xff]
    %v2702 = vld [vmem:[#allocation7 + $0x9b0] sm:$0xff]
    %v2703 = vld [vmem:[#allocation7 + $0x9b8] sm:$0xff]
    %v2704 = vld [vmem:[#allocation7 + $0x9c0] sm:$0xff]
    %v2705 = vld [vmem:[#allocation7 + $0x9c8] sm:$0xff]
    %v2706 = vld [vmem:[#allocation7 + $0x9d0] sm:$0xff]
    %v2707 = vld [vmem:[#allocation7 + $0x9d8] sm:$0xff]
    %v2708 = vld [vmem:[#allocation7 + $0x9e0] sm:$0xff]
    %v2709 = vld [vmem:[#allocation7 + $0x9e8] sm:$0xff]
    %v2710 = vld [vmem:[#allocation7 + $0x9f0] sm:$0xff]
    %v2711 = vld [vmem:[#allocation7 + $0x9f8] sm:$0xff]
    %v2712 = vld [vmem:[#allocation7 + $0xa00] sm:$0xff]
    %v2713 = vld [vmem:[#allocation7 + $0xa08] sm:$0xff]
    %v2714 = vld [vmem:[#allocation7 + $0xa10] sm:$0xff]
    %v2715 = vld [vmem:[#allocation7 + $0xa18] sm:$0xff]
    %v2716 = vld [vmem:[#allocation7 + $0xa20] sm:$0xff]
    %v2717 = vld [vmem:[#allocation7 + $0xa28] sm:$0xff]
    %v2718 = vld [vmem:[#allocation7 + $0xa30] sm:$0xff]
    %v2719 = vld [vmem:[#allocation7 + $0xa38] sm:$0xff]
    %v2720 = vld [vmem:[#allocation7 + $0xa40] sm:$0xff]
    %v2721 = vld [vmem:[#allocation7 + $0xa48] sm:$0xff]
    %v2722 = vld [vmem:[#allocation7 + $0xa50] sm:$0xff]
    %v2723 = vld [vmem:[#allocation7 + $0xa58] sm:$0xff]
    %v2724 = vld [vmem:[#allocation7 + $0xa60] sm:$0xff]
    %v2725 = vld [vmem:[#allocation7 + $0xa68] sm:$0xff]
    %v2726 = vld [vmem:[#allocation7 + $0xa70] sm:$0xff]
    %v2727 = vld [vmem:[#allocation7 + $0xa78] sm:$0xff]
    %v2728 = vld [vmem:[#allocation7 + $0xa80] sm:$0xff]
    %v2729 = vld [vmem:[#allocation7 + $0xa88] sm:$0xff]
    %v2730 = vld [vmem:[#allocation7 + $0xa90] sm:$0xff]
    %v2731 = vld [vmem:[#allocation7 + $0xa98] sm:$0xff]
    %v2732 = vld [vmem:[#allocation7 + $0xaa0] sm:$0xff]
    %v2733 = vld [vmem:[#allocation7 + $0xaa8] sm:$0xff]
    %v2734 = vld [vmem:[#allocation7 + $0xab0] sm:$0xff]
    %v2735 = vld [vmem:[#allocation7 + $0xab8] sm:$0xff]
    %v2736 = vld [vmem:[#allocation7 + $0xac0] sm:$0xff]
    %v2737 = vld [vmem:[#allocation7 + $0xac8] sm:$0xff]
    %v2738 = vld [vmem:[#allocation7 + $0xad0] sm:$0xff]
    %v2739 = vld [vmem:[#allocation7 + $0xad8] sm:$0xff]
    %v2740 = vld [vmem:[#allocation7 + $0xae0] sm:$0xff]
    %v2741 = vld [vmem:[#allocation7 + $0xae8] sm:$0xff]
    %v2742 = vld [vmem:[#allocation7 + $0xaf0] sm:$0xff]
    %v2743 = vld [vmem:[#allocation7 + $0xaf8] sm:$0xff]
    %v2744 = vld [vmem:[#allocation7 + $0xb00] sm:$0xff]
    %v2745 = vld [vmem:[#allocation7 + $0xb08] sm:$0xff]
    %v2746 = vld [vmem:[#allocation7 + $0xb10] sm:$0xff]
    %v2747 = vld [vmem:[#allocation7 + $0xb18] sm:$0xff]
    %v2748 = vld [vmem:[#allocation7 + $0xb20] sm:$0xff]
    %v2749 = vld [vmem:[#allocation7 + $0xb28] sm:$0xff]
    %v2750 = vld [vmem:[#allocation7 + $0xb30] sm:$0xff]
    %v2751 = vld [vmem:[#allocation7 + $0xb38] sm:$0xff]
    %v2752 = vld [vmem:[#allocation7 + $0xb40] sm:$0xff]
    %v2753 = vld [vmem:[#allocation7 + $0xb48] sm:$0xff]
    %v2754 = vld [vmem:[#allocation7 + $0xb50] sm:$0xff]
    %v2755 = vld [vmem:[#allocation7 + $0xb58] sm:$0xff]
    %v2756 = vld [vmem:[#allocation7 + $0xb60] sm:$0xff]
    %v2757 = vld [vmem:[#allocation7 + $0xb68] sm:$0xff]
    %v2758 = vld [vmem:[#allocation7 + $0xb70] sm:$0xff]
    %v2759 = vld [vmem:[#allocation7 + $0xb78] sm:$0xff]
    %v2760 = vld [vmem:[#allocation7 + $0xb80] sm:$0xff]
    %v2761 = vld [vmem:[#allocation7 + $0xb88] sm:$0xff]
    %v2762 = vld [vmem:[#allocation7 + $0xb90] sm:$0xff]
    %v2763 = vld [vmem:[#allocation7 + $0xb98] sm:$0xff]
    %v2764 = vld [vmem:[#allocation7 + $0xba0] sm:$0xff]
    %v2765 = vld [vmem:[#allocation7 + $0xba8] sm:$0xff]
    %v2766 = vld [vmem:[#allocation7 + $0xbb0] sm:$0xff]
    %v2767 = vld [vmem:[#allocation7 + $0xbb8] sm:$0xff]
    %v2768 = vld [vmem:[#allocation7 + $0xbc0] sm:$0xff]
    %v2769 = vld [vmem:[#allocation7 + $0xbc8] sm:$0xff]
    %v2770 = vld [vmem:[#allocation7 + $0xbd0] sm:$0xff]
    %v2771 = vld [vmem:[#allocation7 + $0xbd8] sm:$0xff]
    %v2772 = vld [vmem:[#allocation7 + $0xbe0] sm:$0xff]
    %v2773 = vld [vmem:[#allocation7 + $0xbe8] sm:$0xff]
    %v2774 = vld [vmem:[#allocation7 + $0xbf0] sm:$0xff]
    %v2775 = vld [vmem:[#allocation7 + $0xbf8] sm:$0xff]
    %v2776 = vld [vmem:[#allocation7 + $0xc00] sm:$0xff]
    %v2777 = vld [vmem:[#allocation7 + $0xc08] sm:$0xff]
    %v2778 = vld [vmem:[#allocation7 + $0xc10] sm:$0xff]
    %v2779 = vld [vmem:[#allocation7 + $0xc18] sm:$0xff]
    %v2780 = vld [vmem:[#allocation7 + $0xc20] sm:$0xff]
    %v2781 = vld [vmem:[#allocation7 + $0xc28] sm:$0xff]
    %v2782 = vld [vmem:[#allocation7 + $0xc30] sm:$0xff]
    %v2783 = vld [vmem:[#allocation7 + $0xc38] sm:$0xff]
    %v2784 = vld [vmem:[#allocation7 + $0xc40] sm:$0xff]
    %v2785 = vld [vmem:[#allocation7 + $0xc48] sm:$0xff]
    %v2786 = vld [vmem:[#allocation7 + $0xc50] sm:$0xff]
    %v2787 = vld [vmem:[#allocation7 + $0xc58] sm:$0xff]
    %v2788 = vld [vmem:[#allocation7 + $0xc60] sm:$0xff]
    %v2789 = vld [vmem:[#allocation7 + $0xc68] sm:$0xff]
    %v2790 = vld [vmem:[#allocation7 + $0xc70] sm:$0xff]
    %v2791 = vld [vmem:[#allocation7 + $0xc78] sm:$0xff]
    %v2792 = vld [vmem:[#allocation7 + $0xc80] sm:$0xff]
    %v2793 = vld [vmem:[#allocation7 + $0xc88] sm:$0xff]
    %v2794 = vld [vmem:[#allocation7 + $0xc90] sm:$0xff]
    %v2795 = vld [vmem:[#allocation7 + $0xc98] sm:$0xff]
    %v2796 = vld [vmem:[#allocation7 + $0xca0] sm:$0xff]
    %v2797 = vld [vmem:[#allocation7 + $0xca8] sm:$0xff]
    %v2798 = vld [vmem:[#allocation7 + $0xcb0] sm:$0xff]
    %v2799 = vld [vmem:[#allocation7 + $0xcb8] sm:$0xff]
    %v2800 = vld [vmem:[#allocation7 + $0xcc0] sm:$0xff]
    %v2801 = vld [vmem:[#allocation7 + $0xcc8] sm:$0xff]
    %v2802 = vld [vmem:[#allocation7 + $0xcd0] sm:$0xff]
    %v2803 = vld [vmem:[#allocation7 + $0xcd8] sm:$0xff]
    %v2804 = vld [vmem:[#allocation7 + $0xce0] sm:$0xff]
    %v2805 = vld [vmem:[#allocation7 + $0xce8] sm:$0xff]
    %v2806 = vld [vmem:[#allocation7 + $0xcf0] sm:$0xff]
    %v2807 = vld [vmem:[#allocation7 + $0xcf8] sm:$0xff]
    %v2808 = vld [vmem:[#allocation7 + $0xd00] sm:$0xff]
    %v2809 = vld [vmem:[#allocation7 + $0xd08] sm:$0xff]
    %v2810 = vld [vmem:[#allocation7 + $0xd10] sm:$0xff]
    %v2811 = vld [vmem:[#allocation7 + $0xd18] sm:$0xff]
    %v2812 = vld [vmem:[#allocation7 + $0xd20] sm:$0xff]
    %v2813 = vld [vmem:[#allocation7 + $0xd28] sm:$0xff]
    %v2814 = vld [vmem:[#allocation7 + $0xd30] sm:$0xf]
    %v2815 = vld [vmem:[#allocation8] sm:$0x1]
    %v2817 = vlaneseq
    %v2818 = vshrl.u32 %v2817, 7
    %v2819 = vsub.s32 0, %v2818
    %v2820 = vrot.slane %v2815, %v2819
    %vm2822 = vcmask 424960
    %v2824 = vsel %vm2822, %v2391, 0
    %vm2826 = vcmask 1043456
    %v2828 = vsel %vm2826, %v2814, 0
    %2830 = vmatprep.subr.mxu0 0.0
    %2831 = vmatpush1.msra.mxu0 %v2392
    %2832 = vmatprep.subr.mxu0 0.0
    %2833 = vmatpush1.msra.mxu0 %v2393
    %2834 = vmatprep.subr.mxu0 0.0
    %2835 = vmatpush1.msra.mxu0 %v2394
    %2836 = vmatprep.subr.mxu0 0.0
    %2837 = vmatpush1.msra.mxu0 %v2395
    %2838 = vmatprep.subr.mxu0 0.0
    %2839 = vmatpush1.msra.mxu0 %v2396
    %2840 = vmatprep.subr.mxu0 0.0
    %2841 = vmatpush1.msra.mxu0 %v2397
    %2842 = vmatprep.subr.mxu0 0.0
    %2843 = vmatpush1.msra.mxu0 %v2398
    %2844 = vmatprep.subr.mxu0 0.0
    %2845 = vmatpush1.msra.mxu0 %v2399
    %2846 = vmatprep.subr.mxu0 0.0
    %2847 = vmatpush1.msra.mxu0 %v2400
    %2848 = vmatprep.subr.mxu0 0.0
    %2849 = vmatpush1.msra.mxu0 %v2401
    %2850 = vmatprep.subr.mxu0 0.0
    %2851 = vmatpush1.msra.mxu0 %v2402
    %2852 = vmatprep.subr.mxu0 0.0
    %2853 = vmatpush1.msra.mxu0 %v2403
    %2854 = vmatprep.subr.mxu0 0.0
    %2855 = vmatpush1.msra.mxu0 %v2404
    %2856 = vmatprep.subr.mxu0 0.0
    %2857 = vmatpush1.msra.mxu0 %v2405
    %2858 = vmatprep.subr.mxu0 0.0
    %2859 = vmatpush1.msra.mxu0 %v2406
    %2860 = vmatprep.subr.mxu0 0.0
    %2861 = vmatpush1.msra.mxu0 %v2407
    %2862 = vmatprep.subr.mxu0 0.0
    %2863 = vmatpush1.msra.mxu0 %v2408
    %2864 = vmatprep.subr.mxu0 0.0
    %2865 = vmatpush1.msra.mxu0 %v2409
    %2866 = vmatprep.subr.mxu0 0.0
    %2867 = vmatpush1.msra.mxu0 %v2410
    %2868 = vmatprep.subr.mxu0 0.0
    %2869 = vmatpush1.msra.mxu0 %v2411
    %2870 = vmatprep.subr.mxu0 0.0
    %2871 = vmatpush1.msra.mxu0 %v2412
    %2872 = vmatprep.subr.mxu0 0.0
    %2873 = vmatpush1.msra.mxu0 %v2413
    %2874 = vmatprep.subr.mxu0 0.0
    %2875 = vmatpush1.msra.mxu0 %v2414
    %2876 = vmatprep.subr.mxu0 0.0
    %2877 = vmatpush1.msra.mxu0 %v2415
    %2878 = vmatprep.subr.mxu0 0.0
    %2879 = vmatpush1.msra.mxu0 %v2416
    %2880 = vmatprep.subr.mxu0 0.0
    %2881 = vmatpush1.msra.mxu0 %v2417
    %2882 = vmatprep.subr.mxu0 0.0
    %2883 = vmatpush1.msra.mxu0 %v2418
    %2884 = vmatprep.subr.mxu0 0.0
    %2885 = vmatpush1.msra.mxu0 %v2419
    %2886 = vmatprep.subr.mxu0 0.0
    %2887 = vmatpush1.msra.mxu0 %v2420
    %2888 = vmatprep.subr.mxu0 0.0
    %2889 = vmatpush1.msra.mxu0 %v2421
    %2890 = vmatprep.subr.mxu0 0.0
    %2891 = vmatpush1.msra.mxu0 %v2422
    %2892 = vmatprep.subr.mxu0 0.0
    %2893 = vmatpush1.msra.mxu0 %v2423
    %2894 = vmatprep.mubr.f32.mxu0 %v2366
    %2895 = vmatmul.mubr.f32.gmra.mrb[0].mxu0 %v2365
    %v2896 = vpop.f32.mrb[0].mxu0
    %v2897 = vadd.f32 %v2820, %v2896
    %v2898 = vpop.f32.mrb[0].mxu0
    %2899 = vdwg.mxu0
    %2900 = vmatprep.subr.mxu0 0.0
    %2901 = vmatpush1.msra.mxu0 %v2424
    %2902 = vmatprep.subr.mxu0 0.0
    %2903 = vmatpush1.msra.mxu0 %v2425
    %2904 = vmatprep.subr.mxu0 0.0
    %2905 = vmatpush1.msra.mxu0 %v2426
    %2906 = vmatprep.subr.mxu0 0.0
    %2907 = vmatpush1.msra.mxu0 %v2427
    %2908 = vmatprep.subr.mxu0 0.0
    %2909 = vmatpush1.msra.mxu0 %v2428
    %2910 = vmatprep.subr.mxu0 0.0
    %2911 = vmatpush1.msra.mxu0 %v2429
    %2912 = vmatprep.subr.mxu0 0.0
    %2913 = vmatpush1.msra.mxu0 %v2430
    %2914 = vmatprep.subr.mxu0 0.0
    %2915 = vmatpush1.msra.mxu0 %v2431
    %2916 = vmatprep.subr.mxu0 0.0
    %2917 = vmatpush1.msra.mxu0 %v2432
    %2918 = vmatprep.subr.mxu0 0.0
    %2919 = vmatpush1.msra.mxu0 %v2433
    %2920 = vmatprep.subr.mxu0 0.0
    %2921 = vmatpush1.msra.mxu0 %v2434
    %2922 = vmatprep.subr.mxu0 0.0
    %2923 = vmatpush1.msra.mxu0 %v2435
    %2924 = vmatprep.subr.mxu0 0.0
    %2925 = vmatpush1.msra.mxu0 %v2436
    %2926 = vmatprep.subr.mxu0 0.0
    %2927 = vmatpush1.msra.mxu0 %v2437
    %2928 = vmatprep.subr.mxu0 0.0
    %2929 = vmatpush1.msra.mxu0 %v2438
    %2930 = vmatprep.subr.mxu0 0.0
    %2931 = vmatpush1.msra.mxu0 %v2439
    %2932 = vmatprep.subr.mxu0 0.0
    %2933 = vmatpush1.msra.mxu0 %v2440
    %2934 = vmatprep.subr.mxu0 0.0
    %2935 = vmatpush1.msra.mxu0 %v2441
    %2936 = vmatprep.subr.mxu0 0.0
    %2937 = vmatpush1.msra.mxu0 %v2442
    %2938 = vmatprep.subr.mxu0 0.0
    %2939 = vmatpush1.msra.mxu0 %v2443
    %2940 = vmatprep.subr.mxu0 0.0
    %2941 = vmatpush1.msra.mxu0 %v2444
    %2942 = vmatprep.subr.mxu0 0.0
    %2943 = vmatpush1.msra.mxu0 %v2445
    %2944 = vmatprep.subr.mxu0 0.0
    %2945 = vmatpush1.msra.mxu0 %v2446
    %2946 = vmatprep.subr.mxu0 0.0
    %2947 = vmatpush1.msra.mxu0 %v2447
    %2948 = vmatprep.subr.mxu0 0.0
    %2949 = vmatpush1.msra.mxu0 %v2448
    %2950 = vmatprep.subr.mxu0 0.0
    %2951 = vmatpush1.msra.mxu0 %v2449
    %2952 = vmatprep.subr.mxu0 0.0
    %2953 = vmatpush1.msra.mxu0 %v2450
    %2954 = vmatprep.subr.mxu0 0.0
    %2955 = vmatpush1.msra.mxu0 %v2451
    %2956 = vmatprep.subr.mxu0 0.0
    %2957 = vmatpush1.msra.mxu0 %v2452
    %2958 = vmatprep.subr.mxu0 0.0
    %2959 = vmatpush1.msra.mxu0 %v2453
    %2960 = vmatprep.subr.mxu0 0.0
    %2961 = vmatpush1.msra.mxu0 %v2454
    %2962 = vmatprep.subr.mxu0 0.0
    %2963 = vmatpush1.msra.mxu0 %v2455
    %2964 = vmatprep.mubr.f32.mxu0 %v2368
    %2965 = vmatmul.mubr.f32.gmra.mrb[0].mxu0 %v2367
    %v2966 = vpop.f32.mrb[0].mxu0
    %v2967 = vadd.f32 %v2897, %v2966
    %v2968 = vpop.f32.mrb[0].mxu0
    %2969 = vdwg.mxu0
    %2970 = vmatprep.subr.mxu0 0.0
    %2971 = vmatpush1.msra.mxu0 %v2456
    %2972 = vmatprep.subr.mxu0 0.0
    %2973 = vmatpush1.msra.mxu0 %v2457
    %2974 = vmatprep.subr.mxu0 0.0
    %2975 = vmatpush1.msra.mxu0 %v2458
    %2976 = vmatprep.subr.mxu0 0.0
    %2977 = vmatpush1.msra.mxu0 %v2459
    %2978 = vmatprep.subr.mxu0 0.0
    %2979 = vmatpush1.msra.mxu0 %v2460
    %2980 = vmatprep.subr.mxu0 0.0
    %2981 = vmatpush1.msra.mxu0 %v2461
    %2982 = vmatprep.subr.mxu0 0.0
    %2983 = vmatpush1.msra.mxu0 %v2462
    %2984 = vmatprep.subr.mxu0 0.0
    %2985 = vmatpush1.msra.mxu0 %v2463
    %2986 = vmatprep.subr.mxu0 0.0
    %2987 = vmatpush1.msra.mxu0 %v2464
    %2988 = vmatprep.subr.mxu0 0.0
    %2989 = vmatpush1.msra.mxu0 %v2465
    %2990 = vmatprep.subr.mxu0 0.0
    %2991 = vmatpush1.msra.mxu0 %v2466
    %2992 = vmatprep.subr.mxu0 0.0
    %2993 = vmatpush1.msra.mxu0 %v2467
    %2994 = vmatprep.subr.mxu0 0.0
    %2995 = vmatpush1.msra.mxu0 %v2468
    %2996 = vmatprep.subr.mxu0 0.0
    %2997 = vmatpush1.msra.mxu0 %v2469
    %2998 = vmatprep.subr.mxu0 0.0
    %2999 = vmatpush1.msra.mxu0 %v2470
    %3000 = vmatprep.subr.mxu0 0.0
    %3001 = vmatpush1.msra.mxu0 %v2471
    %3002 = vmatprep.subr.mxu0 0.0
    %3003 = vmatpush1.msra.mxu0 %v2472
    %3004 = vmatprep.subr.mxu0 0.0
    %3005 = vmatpush1.msra.mxu0 %v2473
    %3006 = vmatprep.subr.mxu0 0.0
    %3007 = vmatpush1.msra.mxu0 %v2474
    %3008 = vmatprep.subr.mxu0 0.0
    %3009 = vmatpush1.msra.mxu0 %v2475
    %3010 = vmatprep.subr.mxu0 0.0
    %3011 = vmatpush1.msra.mxu0 %v2476
    %3012 = vmatprep.subr.mxu0 0.0
    %3013 = vmatpush1.msra.mxu0 %v2477
    %3014 = vmatprep.subr.mxu0 0.0
    %3015 = vmatpush1.msra.mxu0 %v2478
    %3016 = vmatprep.subr.mxu0 0.0
    %3017 = vmatpush1.msra.mxu0 %v2479
    %3018 = vmatprep.subr.mxu0 0.0
    %3019 = vmatpush1.msra.mxu0 %v2480
    %3020 = vmatprep.subr.mxu0 0.0
    %3021 = vmatpush1.msra.mxu0 %v2481
    %3022 = vmatprep.subr.mxu0 0.0
    %3023 = vmatpush1.msra.mxu0 %v2482
    %3024 = vmatprep.subr.mxu0 0.0
    %3025 = vmatpush1.msra.mxu0 %v2483
    %3026 = vmatprep.subr.mxu0 0.0
    %3027 = vmatpush1.msra.mxu0 %v2484
    %3028 = vmatprep.subr.mxu0 0.0
    %3029 = vmatpush1.msra.mxu0 %v2485
    %3030 = vmatprep.subr.mxu0 0.0
    %3031 = vmatpush1.msra.mxu0 %v2486
    %3032 = vmatprep.subr.mxu0 0.0
    %3033 = vmatpush1.msra.mxu0 %v2487
    %3034 = vmatprep.mubr.f32.mxu0 %v2370
    %3035 = vmatmul.mubr.f32.gmra.mrb[0].mxu0 %v2369
    %v3036 = vpop.f32.mrb[0].mxu0
    %v3037 = vadd.f32 %v2967, %v3036
    %v3038 = vpop.f32.mrb[0].mxu0
    %3039 = vdwg.mxu0
    %3040 = vmatprep.subr.mxu0 0.0
    %3041 = vmatpush1.msra.mxu0 %v2488
    %3042 = vmatprep.subr.mxu0 0.0
    %3043 = vmatpush1.msra.mxu0 %v2489
    %3044 = vmatprep.subr.mxu0 0.0
    %3045 = vmatpush1.msra.mxu0 %v2490
    %3046 = vmatprep.subr.mxu0 0.0
    %3047 = vmatpush1.msra.mxu0 %v2491
    %3048 = vmatprep.subr.mxu0 0.0
    %3049 = vmatpush1.msra.mxu0 %v2492
    %3050 = vmatprep.subr.mxu0 0.0
    %3051 = vmatpush1.msra.mxu0 %v2493
    %3052 = vmatprep.subr.mxu0 0.0
    %3053 = vmatpush1.msra.mxu0 %v2494
    %3054 = vmatprep.subr.mxu0 0.0
    %3055 = vmatpush1.msra.mxu0 %v2495
    %3056 = vmatprep.subr.mxu0 0.0
    %3057 = vmatpush1.msra.mxu0 %v2496
    %3058 = vmatprep.subr.mxu0 0.0
    %3059 = vmatpush1.msra.mxu0 %v2497
    %3060 = vmatprep.subr.mxu0 0.0
    %3061 = vmatpush1.msra.mxu0 %v2498
    %3062 = vmatprep.subr.mxu0 0.0
    %3063 = vmatpush1.msra.mxu0 %v2499
    %3064 = vmatprep.subr.mxu0 0.0
    %3065 = vmatpush1.msra.mxu0 %v2500
    %3066 = vmatprep.subr.mxu0 0.0
    %3067 = vmatpush1.msra.mxu0 %v2501
    %3068 = vmatprep.subr.mxu0 0.0
    %3069 = vmatpush1.msra.mxu0 %v2502
    %3070 = vmatprep.subr.mxu0 0.0
    %3071 = vmatpush1.msra.mxu0 %v2503
    %3072 = vmatprep.subr.mxu0 0.0
    %3073 = vmatpush1.msra.mxu0 %v2504
    %3074 = vmatprep.subr.mxu0 0.0
    %3075 = vmatpush1.msra.mxu0 %v2505
    %3076 = vmatprep.subr.mxu0 0.0
    %3077 = vmatpush1.msra.mxu0 %v2506
    %3078 = vmatprep.subr.mxu0 0.0
    %3079 = vmatpush1.msra.mxu0 %v2507
    %3080 = vmatprep.subr.mxu0 0.0
    %3081 = vmatpush1.msra.mxu0 %v2508
    %3082 = vmatprep.subr.mxu0 0.0
    %3083 = vmatpush1.msra.mxu0 %v2509
    %3084 = vmatprep.subr.mxu0 0.0
    %3085 = vmatpush1.msra.mxu0 %v2510
    %3086 = vmatprep.subr.mxu0 0.0
    %3087 = vmatpush1.msra.mxu0 %v2511
    %3088 = vmatprep.subr.mxu0 0.0
    %3089 = vmatpush1.msra.mxu0 %v2512
    %3090 = vmatprep.subr.mxu0 0.0
    %3091 = vmatpush1.msra.mxu0 %v2513
    %3092 = vmatprep.subr.mxu0 0.0
    %3093 = vmatpush1.msra.mxu0 %v2514
    %3094 = vmatprep.subr.mxu0 0.0
    %3095 = vmatpush1.msra.mxu0 %v2515
    %3096 = vmatprep.subr.mxu0 0.0
    %3097 = vmatpush1.msra.mxu0 %v2516
    %3098 = vmatprep.subr.mxu0 0.0
    %3099 = vmatpush1.msra.mxu0 %v2517
    %3100 = vmatprep.subr.mxu0 0.0
    %3101 = vmatpush1.msra.mxu0 %v2518
    %3102 = vmatprep.subr.mxu0 0.0
    %3103 = vmatpush1.msra.mxu0 %v2519
    %3104 = vmatprep.mubr.f32.mxu0 %v2372
    %3105 = vmatmul.mubr.f32.gmra.mrb[0].mxu0 %v2371
    %v3106 = vpop.f32.mrb[0].mxu0
    %v3107 = vadd.f32 %v3037, %v3106
    %v3108 = vpop.f32.mrb[0].mxu0
    %3109 = vdwg.mxu0
    %3110 = vmatprep.subr.mxu0 0.0
    %3111 = vmatpush1.msra.mxu0 %v2520
    %3112 = vmatprep.subr.mxu0 0.0
    %3113 = vmatpush1.msra.mxu0 %v2521
    %3114 = vmatprep.subr.mxu0 0.0
    %3115 = vmatpush1.msra.mxu0 %v2522
    %3116 = vmatprep.subr.mxu0 0.0
    %3117 = vmatpush1.msra.mxu0 %v2523
    %3118 = vmatprep.subr.mxu0 0.0
    %3119 = vmatpush1.msra.mxu0 %v2524
    %3120 = vmatprep.subr.mxu0 0.0
    %3121 = vmatpush1.msra.mxu0 %v2525
    %3122 = vmatprep.subr.mxu0 0.0
    %3123 = vmatpush1.msra.mxu0 %v2526
    %3124 = vmatprep.subr.mxu0 0.0
    %3125 = vmatpush1.msra.mxu0 %v2527
    %3126 = vmatprep.subr.mxu0 0.0
    %3127 = vmatpush1.msra.mxu0 %v2528
    %3128 = vmatprep.subr.mxu0 0.0
    %3129 = vmatpush1.msra.mxu0 %v2529
    %3130 = vmatprep.subr.mxu0 0.0
    %3131 = vmatpush1.msra.mxu0 %v2530
    %3132 = vmatprep.subr.mxu0 0.0
    %3133 = vmatpush1.msra.mxu0 %v2531
    %3134 = vmatprep.subr.mxu0 0.0
    %3135 = vmatpush1.msra.mxu0 %v2532
    %3136 = vmatprep.subr.mxu0 0.0
    %3137 = vmatpush1.msra.mxu0 %v2533
    %3138 = vmatprep.subr.mxu0 0.0
    %3139 = vmatpush1.msra.mxu0 %v2534
    %3140 = vmatprep.subr.mxu0 0.0
    %3141 = vmatpush1.msra.mxu0 %v2535
    %3142 = vmatprep.subr.mxu0 0.0
    %3143 = vmatpush1.msra.mxu0 %v2536
    %3144 = vmatprep.subr.mxu0 0.0
    %3145 = vmatpush1.msra.mxu0 %v2537
    %3146 = vmatprep.subr.mxu0 0.0
    %3147 = vmatpush1.msra.mxu0 %v2538
    %3148 = vmatprep.subr.mxu0 0.0
    %3149 = vmatpush1.msra.mxu0 %v2539
    %3150 = vmatprep.subr.mxu0 0.0
    %3151 = vmatpush1.msra.mxu0 %v2540
    %3152 = vmatprep.subr.mxu0 0.0
    %3153 = vmatpush1.msra.mxu0 %v2541
    %3154 = vmatprep.subr.mxu0 0.0
    %3155 = vmatpush1.msra.mxu0 %v2542
    %3156 = vmatprep.subr.mxu0 0.0
    %3157 = vmatpush1.msra.mxu0 %v2543
    %3158 = vmatprep.subr.mxu0 0.0
    %3159 = vmatpush1.msra.mxu0 %v2544
    %3160 = vmatprep.subr.mxu0 0.0
    %3161 = vmatpush1.msra.mxu0 %v2545
    %3162 = vmatprep.subr.mxu0 0.0
    %3163 = vmatpush1.msra.mxu0 %v2546
    %3164 = vmatprep.subr.mxu0 0.0
    %3165 = vmatpush1.msra.mxu0 %v2547
    %3166 = vmatprep.subr.mxu0 0.0
    %3167 = vmatpush1.msra.mxu0 %v2548
    %3168 = vmatprep.subr.mxu0 0.0
    %3169 = vmatpush1.msra.mxu0 %v2549
    %3170 = vmatprep.subr.mxu0 0.0
    %3171 = vmatpush1.msra.mxu0 %v2550
    %3172 = vmatprep.subr.mxu0 0.0
    %3173 = vmatpush1.msra.mxu0 %v2551
    %3174 = vmatprep.mubr.f32.mxu0 %v2374
    %3175 = vmatmul.mubr.f32.gmra.mrb[0].mxu0 %v2373
    %v3176 = vpop.f32.mrb[0].mxu0
    %v3177 = vadd.f32 %v3107, %v3176
    %v3178 = vpop.f32.mrb[0].mxu0
    %3179 = vdwg.mxu0
    %3180 = vmatprep.subr.mxu0 0.0
    %3181 = vmatpush1.msra.mxu0 %v2552
    %3182 = vmatprep.subr.mxu0 0.0
    %3183 = vmatpush1.msra.mxu0 %v2553
    %3184 = vmatprep.subr.mxu0 0.0
    %3185 = vmatpush1.msra.mxu0 %v2554
    %3186 = vmatprep.subr.mxu0 0.0
    %3187 = vmatpush1.msra.mxu0 %v2555
    %3188 = vmatprep.subr.mxu0 0.0
    %3189 = vmatpush1.msra.mxu0 %v2556
    %3190 = vmatprep.subr.mxu0 0.0
    %3191 = vmatpush1.msra.mxu0 %v2557
    %3192 = vmatprep.subr.mxu0 0.0
    %3193 = vmatpush1.msra.mxu0 %v2558
    %3194 = vmatprep.subr.mxu0 0.0
    %3195 = vmatpush1.msra.mxu0 %v2559
    %3196 = vmatprep.subr.mxu0 0.0
    %3197 = vmatpush1.msra.mxu0 %v2560
    %3198 = vmatprep.subr.mxu0 0.0
    %3199 = vmatpush1.msra.mxu0 %v2561
    %3200 = vmatprep.subr.mxu0 0.0
    %3201 = vmatpush1.msra.mxu0 %v2562
    %3202 = vmatprep.subr.mxu0 0.0
    %3203 = vmatpush1.msra.mxu0 %v2563
    %3204 = vmatprep.subr.mxu0 0.0
    %3205 = vmatpush1.msra.mxu0 %v2564
    %3206 = vmatprep.subr.mxu0 0.0
    %3207 = vmatpush1.msra.mxu0 %v2565
    %3208 = vmatprep.subr.mxu0 0.0
    %3209 = vmatpush1.msra.mxu0 %v2566
    %3210 = vmatprep.subr.mxu0 0.0
    %3211 = vmatpush1.msra.mxu0 %v2567
    %3212 = vmatprep.subr.mxu0 0.0
    %3213 = vmatpush1.msra.mxu0 %v2568
    %3214 = vmatprep.subr.mxu0 0.0
    %3215 = vmatpush1.msra.mxu0 %v2569
    %3216 = vmatprep.subr.mxu0 0.0
    %3217 = vmatpush1.msra.mxu0 %v2570
    %3218 = vmatprep.subr.mxu0 0.0
    %3219 = vmatpush1.msra.mxu0 %v2571
    %3220 = vmatprep.subr.mxu0 0.0
    %3221 = vmatpush1.msra.mxu0 %v2572
    %3222 = vmatprep.subr.mxu0 0.0
    %3223 = vmatpush1.msra.mxu0 %v2573
    %3224 = vmatprep.subr.mxu0 0.0
    %3225 = vmatpush1.msra.mxu0 %v2574
    %3226 = vmatprep.subr.mxu0 0.0
    %3227 = vmatpush1.msra.mxu0 %v2575
    %3228 = vmatprep.subr.mxu0 0.0
    %3229 = vmatpush1.msra.mxu0 %v2576
    %3230 = vmatprep.subr.mxu0 0.0
    %3231 = vmatpush1.msra.mxu0 %v2577
    %3232 = vmatprep.subr.mxu0 0.0
    %3233 = vmatpush1.msra.mxu0 %v2578
    %3234 = vmatprep.subr.mxu0 0.0
    %3235 = vmatpush1.msra.mxu0 %v2579
    %3236 = vmatprep.subr.mxu0 0.0
    %3237 = vmatpush1.msra.mxu0 %v2580
    %3238 = vmatprep.subr.mxu0 0.0
    %3239 = vmatpush1.msra.mxu0 %v2581
    %3240 = vmatprep.subr.mxu0 0.0
    %3241 = vmatpush1.msra.mxu0 %v2582
    %3242 = vmatprep.subr.mxu0 0.0
    %3243 = vmatpush1.msra.mxu0 %v2583
    %3244 = vmatprep.mubr.f32.mxu0 %v2376
    %3245 = vmatmul.mubr.f32.gmra.mrb[0].mxu0 %v2375
    %v3246 = vpop.f32.mrb[0].mxu0
    %v3247 = vadd.f32 %v3177, %v3246
    %v3248 = vpop.f32.mrb[0].mxu0
    %3249 = vdwg.mxu0
    %3250 = vmatprep.subr.mxu0 0.0
    %3251 = vmatpush1.msra.mxu0 %v2584
    %3252 = vmatprep.subr.mxu0 0.0
    %3253 = vmatpush1.msra.mxu0 %v2585
    %3254 = vmatprep.subr.mxu0 0.0
    %3255 = vmatpush1.msra.mxu0 %v2586
    %3256 = vmatprep.subr.mxu0 0.0
    %3257 = vmatpush1.msra.mxu0 %v2587
    %3258 = vmatprep.subr.mxu0 0.0
    %3259 = vmatpush1.msra.mxu0 %v2588
    %3260 = vmatprep.subr.mxu0 0.0
    %3261 = vmatpush1.msra.mxu0 %v2589
    %3262 = vmatprep.subr.mxu0 0.0
    %3263 = vmatpush1.msra.mxu0 %v2590
    %3264 = vmatprep.subr.mxu0 0.0
    %3265 = vmatpush1.msra.mxu0 %v2591
    %3266 = vmatprep.subr.mxu0 0.0
    %3267 = vmatpush1.msra.mxu0 %v2592
    %3268 = vmatprep.subr.mxu0 0.0
    %3269 = vmatpush1.msra.mxu0 %v2593
    %3270 = vmatprep.subr.mxu0 0.0
    %3271 = vmatpush1.msra.mxu0 %v2594
    %3272 = vmatprep.subr.mxu0 0.0
    %3273 = vmatpush1.msra.mxu0 %v2595
    %3274 = vmatprep.subr.mxu0 0.0
    %3275 = vmatpush1.msra.mxu0 %v2596
    %3276 = vmatprep.subr.mxu0 0.0
    %3277 = vmatpush1.msra.mxu0 %v2597
    %3278 = vmatprep.subr.mxu0 0.0
    %3279 = vmatpush1.msra.mxu0 %v2598
    %3280 = vmatprep.subr.mxu0 0.0
    %3281 = vmatpush1.msra.mxu0 %v2599
    %3282 = vmatprep.subr.mxu0 0.0
    %3283 = vmatpush1.msra.mxu0 %v2600
    %3284 = vmatprep.subr.mxu0 0.0
    %3285 = vmatpush1.msra.mxu0 %v2601
    %3286 = vmatprep.subr.mxu0 0.0
    %3287 = vmatpush1.msra.mxu0 %v2602
    %3288 = vmatprep.subr.mxu0 0.0
    %3289 = vmatpush1.msra.mxu0 %v2603
    %3290 = vmatprep.subr.mxu0 0.0
    %3291 = vmatpush1.msra.mxu0 %v2604
    %3292 = vmatprep.subr.mxu0 0.0
    %3293 = vmatpush1.msra.mxu0 %v2605
    %3294 = vmatprep.subr.mxu0 0.0
    %3295 = vmatpush1.msra.mxu0 %v2606
    %3296 = vmatprep.subr.mxu0 0.0
    %3297 = vmatpush1.msra.mxu0 %v2607
    %3298 = vmatprep.subr.mxu0 0.0
    %3299 = vmatpush1.msra.mxu0 %v2608
    %3300 = vmatprep.subr.mxu0 0.0
    %3301 = vmatpush1.msra.mxu0 %v2609
    %3302 = vmatprep.subr.mxu0 0.0
    %3303 = vmatpush1.msra.mxu0 %v2610
    %3304 = vmatprep.subr.mxu0 0.0
    %3305 = vmatpush1.msra.mxu0 %v2611
    %3306 = vmatprep.subr.mxu0 0.0
    %3307 = vmatpush1.msra.mxu0 %v2612
    %3308 = vmatprep.subr.mxu0 0.0
    %3309 = vmatpush1.msra.mxu0 %v2613
    %3310 = vmatprep.subr.mxu0 0.0
    %3311 = vmatpush1.msra.mxu0 %v2614
    %3312 = vmatprep.subr.mxu0 0.0
    %3313 = vmatpush1.msra.mxu0 %v2615
    %3314 = vmatprep.mubr.f32.mxu0 %v2378
    %3315 = vmatmul.mubr.f32.gmra.mrb[0].mxu0 %v2377
    %v3316 = vpop.f32.mrb[0].mxu0
    %v3317 = vadd.f32 %v3247, %v3316
    %v3318 = vpop.f32.mrb[0].mxu0
    %3319 = vdwg.mxu0
    %3320 = vmatprep.subr.mxu0 0.0
    %3321 = vmatpush1.msra.mxu0 %v2616
    %3322 = vmatprep.subr.mxu0 0.0
    %3323 = vmatpush1.msra.mxu0 %v2617
    %3324 = vmatprep.subr.mxu0 0.0
    %3325 = vmatpush1.msra.mxu0 %v2618
    %3326 = vmatprep.subr.mxu0 0.0
    %3327 = vmatpush1.msra.mxu0 %v2619
    %3328 = vmatprep.subr.mxu0 0.0
    %3329 = vmatpush1.msra.mxu0 %v2620
    %3330 = vmatprep.subr.mxu0 0.0
    %3331 = vmatpush1.msra.mxu0 %v2621
    %3332 = vmatprep.subr.mxu0 0.0
    %3333 = vmatpush1.msra.mxu0 %v2622
    %3334 = vmatprep.subr.mxu0 0.0
    %3335 = vmatpush1.msra.mxu0 %v2623
    %3336 = vmatprep.subr.mxu0 0.0
    %3337 = vmatpush1.msra.mxu0 %v2624
    %3338 = vmatprep.subr.mxu0 0.0
    %3339 = vmatpush1.msra.mxu0 %v2625
    %3340 = vmatprep.subr.mxu0 0.0
    %3341 = vmatpush1.msra.mxu0 %v2626
    %3342 = vmatprep.subr.mxu0 0.0
    %3343 = vmatpush1.msra.mxu0 %v2627
    %3344 = vmatprep.subr.mxu0 0.0
    %3345 = vmatpush1.msra.mxu0 %v2628
    %3346 = vmatprep.subr.mxu0 0.0
    %3347 = vmatpush1.msra.mxu0 %v2629
    %3348 = vmatprep.subr.mxu0 0.0
    %3349 = vmatpush1.msra.mxu0 %v2630
    %3350 = vmatprep.subr.mxu0 0.0
    %3351 = vmatpush1.msra.mxu0 %v2631
    %3352 = vmatprep.subr.mxu0 0.0
    %3353 = vmatpush1.msra.mxu0 %v2632
    %3354 = vmatprep.subr.mxu0 0.0
    %3355 = vmatpush1.msra.mxu0 %v2633
    %3356 = vmatprep.subr.mxu0 0.0
    %3357 = vmatpush1.msra.mxu0 %v2634
    %3358 = vmatprep.subr.mxu0 0.0
    %3359 = vmatpush1.msra.mxu0 %v2635
    %3360 = vmatprep.subr.mxu0 0.0
    %3361 = vmatpush1.msra.mxu0 %v2636
    %3362 = vmatprep.subr.mxu0 0.0
    %3363 = vmatpush1.msra.mxu0 %v2637
    %3364 = vmatprep.subr.mxu0 0.0
    %3365 = vmatpush1.msra.mxu0 %v2638
    %3366 = vmatprep.subr.mxu0 0.0
    %3367 = vmatpush1.msra.mxu0 %v2639
    %3368 = vmatprep.subr.mxu0 0.0
    %3369 = vmatpush1.msra.mxu0 %v2640
    %3370 = vmatprep.subr.mxu0 0.0
    %3371 = vmatpush1.msra.mxu0 %v2641
    %3372 = vmatprep.subr.mxu0 0.0
    %3373 = vmatpush1.msra.mxu0 %v2642
    %3374 = vmatprep.subr.mxu0 0.0
    %3375 = vmatpush1.msra.mxu0 %v2643
    %3376 = vmatprep.subr.mxu0 0.0
    %3377 = vmatpush1.msra.mxu0 %v2644
    %3378 = vmatprep.subr.mxu0 0.0
    %3379 = vmatpush1.msra.mxu0 %v2645
    %3380 = vmatprep.subr.mxu0 0.0
    %3381 = vmatpush1.msra.mxu0 %v2646
    %3382 = vmatprep.subr.mxu0 0.0
    %3383 = vmatpush1.msra.mxu0 %v2647
    %3384 = vmatprep.mubr.f32.mxu0 %v2380
    %3385 = vmatmul.mubr.f32.gmra.mrb[0].mxu0 %v2379
    %v3386 = vpop.f32.mrb[0].mxu0
    %v3387 = vadd.f32 %v3317, %v3386
    %v3388 = vpop.f32.mrb[0].mxu0
    %3389 = vdwg.mxu0
    %3390 = vmatprep.subr.mxu0 0.0
    %3391 = vmatpush1.msra.mxu0 %v2648
    %3392 = vmatprep.subr.mxu0 0.0
    %3393 = vmatpush1.msra.mxu0 %v2649
    %3394 = vmatprep.subr.mxu0 0.0
    %3395 = vmatpush1.msra.mxu0 %v2650
    %3396 = vmatprep.subr.mxu0 0.0
    %3397 = vmatpush1.msra.mxu0 %v2651
    %3398 = vmatprep.subr.mxu0 0.0
    %3399 = vmatpush1.msra.mxu0 %v2652
    %3400 = vmatprep.subr.mxu0 0.0
    %3401 = vmatpush1.msra.mxu0 %v2653
    %3402 = vmatprep.subr.mxu0 0.0
    %3403 = vmatpush1.msra.mxu0 %v2654
    %3404 = vmatprep.subr.mxu0 0.0
    %3405 = vmatpush1.msra.mxu0 %v2655
    %3406 = vmatprep.subr.mxu0 0.0
    %3407 = vmatpush1.msra.mxu0 %v2656
    %3408 = vmatprep.subr.mxu0 0.0
    %3409 = vmatpush1.msra.mxu0 %v2657
    %3410 = vmatprep.subr.mxu0 0.0
    %3411 = vmatpush1.msra.mxu0 %v2658
    %3412 = vmatprep.subr.mxu0 0.0
    %3413 = vmatpush1.msra.mxu0 %v2659
    %3414 = vmatprep.subr.mxu0 0.0
    %3415 = vmatpush1.msra.mxu0 %v2660
    %3416 = vmatprep.subr.mxu0 0.0
    %3417 = vmatpush1.msra.mxu0 %v2661
    %3418 = vmatprep.subr.mxu0 0.0
    %3419 = vmatpush1.msra.mxu0 %v2662
    %3420 = vmatprep.subr.mxu0 0.0
    %3421 = vmatpush1.msra.mxu0 %v2663
    %3422 = vmatprep.subr.mxu0 0.0
    %3423 = vmatpush1.msra.mxu0 %v2664
    %3424 = vmatprep.subr.mxu0 0.0
    %3425 = vmatpush1.msra.mxu0 %v2665
    %3426 = vmatprep.subr.mxu0 0.0
    %3427 = vmatpush1.msra.mxu0 %v2666
    %3428 = vmatprep.subr.mxu0 0.0
    %3429 = vmatpush1.msra.mxu0 %v2667
    %3430 = vmatprep.subr.mxu0 0.0
    %3431 = vmatpush1.msra.mxu0 %v2668
    %3432 = vmatprep.subr.mxu0 0.0
    %3433 = vmatpush1.msra.mxu0 %v2669
    %3434 = vmatprep.subr.mxu0 0.0
    %3435 = vmatpush1.msra.mxu0 %v2670
    %3436 = vmatprep.subr.mxu0 0.0
    %3437 = vmatpush1.msra.mxu0 %v2671
    %3438 = vmatprep.subr.mxu0 0.0
    %3439 = vmatpush1.msra.mxu0 %v2672
    %3440 = vmatprep.subr.mxu0 0.0
    %3441 = vmatpush1.msra.mxu0 %v2673
    %3442 = vmatprep.subr.mxu0 0.0
    %3443 = vmatpush1.msra.mxu0 %v2674
    %3444 = vmatprep.subr.mxu0 0.0
    %3445 = vmatpush1.msra.mxu0 %v2675
    %3446 = vmatprep.subr.mxu0 0.0
    %3447 = vmatpush1.msra.mxu0 %v2676
    %3448 = vmatprep.subr.mxu0 0.0
    %3449 = vmatpush1.msra.mxu0 %v2677
    %3450 = vmatprep.subr.mxu0 0.0
    %3451 = vmatpush1.msra.mxu0 %v2678
    %3452 = vmatprep.subr.mxu0 0.0
    %3453 = vmatpush1.msra.mxu0 %v2679
    %3454 = vmatprep.mubr.f32.mxu0 %v2382
    %3455 = vmatmul.mubr.f32.gmra.mrb[0].mxu0 %v2381
    %v3456 = vpop.f32.mrb[0].mxu0
    %v3457 = vadd.f32 %v3387, %v3456
    %v3458 = vpop.f32.mrb[0].mxu0
    %3459 = vdwg.mxu0
    %3460 = vmatprep.subr.mxu0 0.0
    %3461 = vmatpush1.msra.mxu0 %v2680
    %3462 = vmatprep.subr.mxu0 0.0
    %3463 = vmatpush1.msra.mxu0 %v2681
    %3464 = vmatprep.subr.mxu0 0.0
    %3465 = vmatpush1.msra.mxu0 %v2682
    %3466 = vmatprep.subr.mxu0 0.0
    %3467 = vmatpush1.msra.mxu0 %v2683
    %3468 = vmatprep.subr.mxu0 0.0
    %3469 = vmatpush1.msra.mxu0 %v2684
    %3470 = vmatprep.subr.mxu0 0.0
    %3471 = vmatpush1.msra.mxu0 %v2685
    %3472 = vmatprep.subr.mxu0 0.0
    %3473 = vmatpush1.msra.mxu0 %v2686
    %3474 = vmatprep.subr.mxu0 0.0
    %3475 = vmatpush1.msra.mxu0 %v2687
    %3476 = vmatprep.subr.mxu0 0.0
    %3477 = vmatpush1.msra.mxu0 %v2688
    %3478 = vmatprep.subr.mxu0 0.0
    %3479 = vmatpush1.msra.mxu0 %v2689
    %3480 = vmatprep.subr.mxu0 0.0
    %3481 = vmatpush1.msra.mxu0 %v2690
    %3482 = vmatprep.subr.mxu0 0.0
    %3483 = vmatpush1.msra.mxu0 %v2691
    %3484 = vmatprep.subr.mxu0 0.0
    %3485 = vmatpush1.msra.mxu0 %v2692
    %3486 = vmatprep.subr.mxu0 0.0
    %3487 = vmatpush1.msra.mxu0 %v2693
    %3488 = vmatprep.subr.mxu0 0.0
    %3489 = vmatpush1.msra.mxu0 %v2694
    %3490 = vmatprep.subr.mxu0 0.0
    %3491 = vmatpush1.msra.mxu0 %v2695
    %3492 = vmatprep.subr.mxu0 0.0
    %3493 = vmatpush1.msra.mxu0 %v2696
    %3494 = vmatprep.subr.mxu0 0.0
    %3495 = vmatpush1.msra.mxu0 %v2697
    %3496 = vmatprep.subr.mxu0 0.0
    %3497 = vmatpush1.msra.mxu0 %v2698
    %3498 = vmatprep.subr.mxu0 0.0
    %3499 = vmatpush1.msra.mxu0 %v2699
    %3500 = vmatprep.subr.mxu0 0.0
    %3501 = vmatpush1.msra.mxu0 %v2700
    %3502 = vmatprep.subr.mxu0 0.0
    %3503 = vmatpush1.msra.mxu0 %v2701
    %3504 = vmatprep.subr.mxu0 0.0
    %3505 = vmatpush1.msra.mxu0 %v2702
    %3506 = vmatprep.subr.mxu0 0.0
    %3507 = vmatpush1.msra.mxu0 %v2703
    %3508 = vmatprep.subr.mxu0 0.0
    %3509 = vmatpush1.msra.mxu0 %v2704
    %3510 = vmatprep.subr.mxu0 0.0
    %3511 = vmatpush1.msra.mxu0 %v2705
    %3512 = vmatprep.subr.mxu0 0.0
    %3513 = vmatpush1.msra.mxu0 %v2706
    %3514 = vmatprep.subr.mxu0 0.0
    %3515 = vmatpush1.msra.mxu0 %v2707
    %3516 = vmatprep.subr.mxu0 0.0
    %3517 = vmatpush1.msra.mxu0 %v2708
    %3518 = vmatprep.subr.mxu0 0.0
    %3519 = vmatpush1.msra.mxu0 %v2709
    %3520 = vmatprep.subr.mxu0 0.0
    %3521 = vmatpush1.msra.mxu0 %v2710
    %3522 = vmatprep.subr.mxu0 0.0
    %3523 = vmatpush1.msra.mxu0 %v2711
    %3524 = vmatprep.mubr.f32.mxu0 %v2384
    %3525 = vmatmul.mubr.f32.gmra.mrb[0].mxu0 %v2383
    %v3526 = vpop.f32.mrb[0].mxu0
    %v3527 = vadd.f32 %v3457, %v3526
    %v3528 = vpop.f32.mrb[0].mxu0
    %3529 = vdwg.mxu0
    %3530 = vmatprep.subr.mxu0 0.0
    %3531 = vmatpush1.msra.mxu0 %v2712
    %3532 = vmatprep.subr.mxu0 0.0
    %3533 = vmatpush1.msra.mxu0 %v2713
    %3534 = vmatprep.subr.mxu0 0.0
    %3535 = vmatpush1.msra.mxu0 %v2714
    %3536 = vmatprep.subr.mxu0 0.0
    %3537 = vmatpush1.msra.mxu0 %v2715
    %3538 = vmatprep.subr.mxu0 0.0
    %3539 = vmatpush1.msra.mxu0 %v2716
    %3540 = vmatprep.subr.mxu0 0.0
    %3541 = vmatpush1.msra.mxu0 %v2717
    %3542 = vmatprep.subr.mxu0 0.0
    %3543 = vmatpush1.msra.mxu0 %v2718
    %3544 = vmatprep.subr.mxu0 0.0
    %3545 = vmatpush1.msra.mxu0 %v2719
    %3546 = vmatprep.subr.mxu0 0.0
    %3547 = vmatpush1.msra.mxu0 %v2720
    %3548 = vmatprep.subr.mxu0 0.0
    %3549 = vmatpush1.msra.mxu0 %v2721
    %3550 = vmatprep.subr.mxu0 0.0
    %3551 = vmatpush1.msra.mxu0 %v2722
    %3552 = vmatprep.subr.mxu0 0.0
    %3553 = vmatpush1.msra.mxu0 %v2723
    %3554 = vmatprep.subr.mxu0 0.0
    %3555 = vmatpush1.msra.mxu0 %v2724
    %3556 = vmatprep.subr.mxu0 0.0
    %3557 = vmatpush1.msra.mxu0 %v2725
    %3558 = vmatprep.subr.mxu0 0.0
    %3559 = vmatpush1.msra.mxu0 %v2726
    %3560 = vmatprep.subr.mxu0 0.0
    %3561 = vmatpush1.msra.mxu0 %v2727
    %3562 = vmatprep.subr.mxu0 0.0
    %3563 = vmatpush1.msra.mxu0 %v2728
    %3564 = vmatprep.subr.mxu0 0.0
    %3565 = vmatpush1.msra.mxu0 %v2729
    %3566 = vmatprep.subr.mxu0 0.0
    %3567 = vmatpush1.msra.mxu0 %v2730
    %3568 = vmatprep.subr.mxu0 0.0
    %3569 = vmatpush1.msra.mxu0 %v2731
    %3570 = vmatprep.subr.mxu0 0.0
    %3571 = vmatpush1.msra.mxu0 %v2732
    %3572 = vmatprep.subr.mxu0 0.0
    %3573 = vmatpush1.msra.mxu0 %v2733
    %3574 = vmatprep.subr.mxu0 0.0
    %3575 = vmatpush1.msra.mxu0 %v2734
    %3576 = vmatprep.subr.mxu0 0.0
    %3577 = vmatpush1.msra.mxu0 %v2735
    %3578 = vmatprep.subr.mxu0 0.0
    %3579 = vmatpush1.msra.mxu0 %v2736
    %3580 = vmatprep.subr.mxu0 0.0
    %3581 = vmatpush1.msra.mxu0 %v2737
    %3582 = vmatprep.subr.mxu0 0.0
    %3583 = vmatpush1.msra.mxu0 %v2738
    %3584 = vmatprep.subr.mxu0 0.0
    %3585 = vmatpush1.msra.mxu0 %v2739
    %3586 = vmatprep.subr.mxu0 0.0
    %3587 = vmatpush1.msra.mxu0 %v2740
    %3588 = vmatprep.subr.mxu0 0.0
    %3589 = vmatpush1.msra.mxu0 %v2741
    %3590 = vmatprep.subr.mxu0 0.0
    %3591 = vmatpush1.msra.mxu0 %v2742
    %3592 = vmatprep.subr.mxu0 0.0
    %3593 = vmatpush1.msra.mxu0 %v2743
    %3594 = vmatprep.mubr.f32.mxu0 %v2386
    %3595 = vmatmul.mubr.f32.gmra.mrb[0].mxu0 %v2385
    %v3596 = vpop.f32.mrb[0].mxu0
    %v3597 = vadd.f32 %v3527, %v3596
    %v3598 = vpop.f32.mrb[0].mxu0
    %3599 = vdwg.mxu0
    %3600 = vmatprep.subr.mxu0 0.0
    %3601 = vmatpush1.msra.mxu0 %v2744
    %3602 = vmatprep.subr.mxu0 0.0
    %3603 = vmatpush1.msra.mxu0 %v2745
    %3604 = vmatprep.subr.mxu0 0.0
    %3605 = vmatpush1.msra.mxu0 %v2746
    %3606 = vmatprep.subr.mxu0 0.0
    %3607 = vmatpush1.msra.mxu0 %v2747
    %3608 = vmatprep.subr.mxu0 0.0
    %3609 = vmatpush1.msra.mxu0 %v2748
    %3610 = vmatprep.subr.mxu0 0.0
    %3611 = vmatpush1.msra.mxu0 %v2749
    %3612 = vmatprep.subr.mxu0 0.0
    %3613 = vmatpush1.msra.mxu0 %v2750
    %3614 = vmatprep.subr.mxu0 0.0
    %3615 = vmatpush1.msra.mxu0 %v2751
    %3616 = vmatprep.subr.mxu0 0.0
    %3617 = vmatpush1.msra.mxu0 %v2752
    %3618 = vmatprep.subr.mxu0 0.0
    %3619 = vmatpush1.msra.mxu0 %v2753
    %3620 = vmatprep.subr.mxu0 0.0
    %3621 = vmatpush1.msra.mxu0 %v2754
    %3622 = vmatprep.subr.mxu0 0.0
    %3623 = vmatpush1.msra.mxu0 %v2755
    %3624 = vmatprep.subr.mxu0 0.0
    %3625 = vmatpush1.msra.mxu0 %v2756
    %3626 = vmatprep.subr.mxu0 0.0
    %3627 = vmatpush1.msra.mxu0 %v2757
    %3628 = vmatprep.subr.mxu0 0.0
    %3629 = vmatpush1.msra.mxu0 %v2758
    %3630 = vmatprep.subr.mxu0 0.0
    %3631 = vmatpush1.msra.mxu0 %v2759
    %3632 = vmatprep.subr.mxu0 0.0
    %3633 = vmatpush1.msra.mxu0 %v2760
    %3634 = vmatprep.subr.mxu0 0.0
    %3635 = vmatpush1.msra.mxu0 %v2761
    %3636 = vmatprep.subr.mxu0 0.0
    %3637 = vmatpush1.msra.mxu0 %v2762
    %3638 = vmatprep.subr.mxu0 0.0
    %3639 = vmatpush1.msra.mxu0 %v2763
    %3640 = vmatprep.subr.mxu0 0.0
    %3641 = vmatpush1.msra.mxu0 %v2764
    %3642 = vmatprep.subr.mxu0 0.0
    %3643 = vmatpush1.msra.mxu0 %v2765
    %3644 = vmatprep.subr.mxu0 0.0
    %3645 = vmatpush1.msra.mxu0 %v2766
    %3646 = vmatprep.subr.mxu0 0.0
    %3647 = vmatpush1.msra.mxu0 %v2767
    %3648 = vmatprep.subr.mxu0 0.0
    %3649 = vmatpush1.msra.mxu0 %v2768
    %3650 = vmatprep.subr.mxu0 0.0
    %3651 = vmatpush1.msra.mxu0 %v2769
    %3652 = vmatprep.subr.mxu0 0.0
    %3653 = vmatpush1.msra.mxu0 %v2770
    %3654 = vmatprep.subr.mxu0 0.0
    %3655 = vmatpush1.msra.mxu0 %v2771
    %3656 = vmatprep.subr.mxu0 0.0
    %3657 = vmatpush1.msra.mxu0 %v2772
    %3658 = vmatprep.subr.mxu0 0.0
    %3659 = vmatpush1.msra.mxu0 %v2773
    %3660 = vmatprep.subr.mxu0 0.0
    %3661 = vmatpush1.msra.mxu0 %v2774
    %3662 = vmatprep.subr.mxu0 0.0
    %3663 = vmatpush1.msra.mxu0 %v2775
    %3664 = vmatprep.mubr.f32.mxu0 %v2388
    %3665 = vmatmul.mubr.f32.gmra.mrb[0].mxu0 %v2387
    %v3666 = vpop.f32.mrb[0].mxu0
    %v3667 = vadd.f32 %v3597, %v3666
    %v3668 = vpop.f32.mrb[0].mxu0
    %3669 = vdwg.mxu0
    %3670 = vmatprep.subr.mxu0 0.0
    %3671 = vmatpush1.msra.mxu0 %v2776
    %3672 = vmatprep.subr.mxu0 0.0
    %3673 = vmatpush1.msra.mxu0 %v2777
    %3674 = vmatprep.subr.mxu0 0.0
    %3675 = vmatpush1.msra.mxu0 %v2778
    %3676 = vmatprep.subr.mxu0 0.0
    %3677 = vmatpush1.msra.mxu0 %v2779
    %3678 = vmatprep.subr.mxu0 0.0
    %3679 = vmatpush1.msra.mxu0 %v2780
    %3680 = vmatprep.subr.mxu0 0.0
    %3681 = vmatpush1.msra.mxu0 %v2781
    %3682 = vmatprep.subr.mxu0 0.0
    %3683 = vmatpush1.msra.mxu0 %v2782
    %3684 = vmatprep.subr.mxu0 0.0
    %3685 = vmatpush1.msra.mxu0 %v2783
    %3686 = vmatprep.subr.mxu0 0.0
    %3687 = vmatpush1.msra.mxu0 %v2784
    %3688 = vmatprep.subr.mxu0 0.0
    %3689 = vmatpush1.msra.mxu0 %v2785
    %3690 = vmatprep.subr.mxu0 0.0
    %3691 = vmatpush1.msra.mxu0 %v2786
    %3692 = vmatprep.subr.mxu0 0.0
    %3693 = vmatpush1.msra.mxu0 %v2787
    %3694 = vmatprep.subr.mxu0 0.0
    %3695 = vmatpush1.msra.mxu0 %v2788
    %3696 = vmatprep.subr.mxu0 0.0
    %3697 = vmatpush1.msra.mxu0 %v2789
    %3698 = vmatprep.subr.mxu0 0.0
    %3699 = vmatpush1.msra.mxu0 %v2790
    %3700 = vmatprep.subr.mxu0 0.0
    %3701 = vmatpush1.msra.mxu0 %v2791
    %3702 = vmatprep.subr.mxu0 0.0
    %3703 = vmatpush1.msra.mxu0 %v2792
    %3704 = vmatprep.subr.mxu0 0.0
    %3705 = vmatpush1.msra.mxu0 %v2793
    %3706 = vmatprep.subr.mxu0 0.0
    %3707 = vmatpush1.msra.mxu0 %v2794
    %3708 = vmatprep.subr.mxu0 0.0
    %3709 = vmatpush1.msra.mxu0 %v2795
    %3710 = vmatprep.subr.mxu0 0.0
    %3711 = vmatpush1.msra.mxu0 %v2796
    %3712 = vmatprep.subr.mxu0 0.0
    %3713 = vmatpush1.msra.mxu0 %v2797
    %3714 = vmatprep.subr.mxu0 0.0
    %3715 = vmatpush1.msra.mxu0 %v2798
    %3716 = vmatprep.subr.mxu0 0.0
    %3717 = vmatpush1.msra.mxu0 %v2799
    %3718 = vmatprep.subr.mxu0 0.0
    %3719 = vmatpush1.msra.mxu0 %v2800
    %3720 = vmatprep.subr.mxu0 0.0
    %3721 = vmatpush1.msra.mxu0 %v2801
    %3722 = vmatprep.subr.mxu0 0.0
    %3723 = vmatpush1.msra.mxu0 %v2802
    %3724 = vmatprep.subr.mxu0 0.0
    %3725 = vmatpush1.msra.mxu0 %v2803
    %3726 = vmatprep.subr.mxu0 0.0
    %3727 = vmatpush1.msra.mxu0 %v2804
    %3728 = vmatprep.subr.mxu0 0.0
    %3729 = vmatpush1.msra.mxu0 %v2805
    %3730 = vmatprep.subr.mxu0 0.0
    %3731 = vmatpush1.msra.mxu0 %v2806
    %3732 = vmatprep.subr.mxu0 0.0
    %3733 = vmatpush1.msra.mxu0 %v2807
    %3734 = vmatprep.mubr.f32.mxu0 %v2390
    %3735 = vmatmul.mubr.f32.gmra.mrb[0].mxu0 %v2389
    %v3736 = vpop.f32.mrb[0].mxu0
    %v3737 = vadd.f32 %v3667, %v3736
    %v3738 = vpop.f32.mrb[0].mxu0
    %3739 = vdwg.mxu0
    %3740 = vmatprep.subr.mxu0 0.0
    %3741 = vmatpush1.msra.mxu0 %v2808
    %3742 = vmatprep.subr.mxu0 0.0
    %3743 = vmatpush1.msra.mxu0 %v2809
    %3744 = vmatprep.subr.mxu0 0.0
    %3745 = vmatpush1.msra.mxu0 %v2810
    %3746 = vmatprep.subr.mxu0 0.0
    %3747 = vmatpush1.msra.mxu0 %v2811
    %3748 = vmatprep.subr.mxu0 0.0
    %3749 = vmatpush1.msra.mxu0 %v2812
    %3750 = vmatprep.subr.mxu0 0.0
    %3751 = vmatpush1.msra.mxu0 %v2813
    %3752 = vmatprep.subr.mxu0 0.0
    %3753 = vmatpush1.msra.mxu0 %v2828
    %3754 = vmatprep.subr.mxu0 0.0
    %3755 = vmatpush1.msra.mxu0 0.0
    %3756 = vmatprep.subr.mxu0 0.0
    %3757 = vmatpush1.msra.mxu0 0.0
    %3758 = vmatprep.subr.mxu0 0.0
    %3759 = vmatpush1.msra.mxu0 0.0
    %3760 = vmatprep.subr.mxu0 0.0
    %3761 = vmatpush1.msra.mxu0 0.0
    %3762 = vmatprep.subr.mxu0 0.0
    %3763 = vmatpush1.msra.mxu0 0.0
    %3764 = vmatprep.subr.mxu0 0.0
    %3765 = vmatpush1.msra.mxu0 0.0
    %3766 = vmatprep.subr.mxu0 0.0
    %3767 = vmatpush1.msra.mxu0 0.0
    %3768 = vmatprep.subr.mxu0 0.0
    %3769 = vmatpush1.msra.mxu0 0.0
    %3770 = vmatprep.subr.mxu0 0.0
    %3771 = vmatpush1.msra.mxu0 0.0
    %3772 = vmatprep.subr.mxu0 0.0
    %3773 = vmatpush1.msra.mxu0 0.0
    %3774 = vmatprep.subr.mxu0 0.0
    %3775 = vmatpush1.msra.mxu0 0.0
    %3776 = vmatprep.subr.mxu0 0.0
    %3777 = vmatpush1.msra.mxu0 0.0
    %3778 = vmatprep.subr.mxu0 0.0
    %3779 = vmatpush1.msra.mxu0 0.0
    %3780 = vmatprep.subr.mxu0 0.0
    %3781 = vmatpush1.msra.mxu0 0.0
    %3782 = vmatprep.subr.mxu0 0.0
    %3783 = vmatpush1.msra.mxu0 0.0
    %3784 = vmatprep.subr.mxu0 0.0
    %3785 = vmatpush1.msra.mxu0 0.0
    %3786 = vmatprep.subr.mxu0 0.0
    %3787 = vmatpush1.msra.mxu0 0.0
    %3788 = vmatprep.subr.mxu0 0.0
    %3789 = vmatpush1.msra.mxu0 0.0
    %3790 = vmatprep.subr.mxu0 0.0
    %3791 = vmatpush1.msra.mxu0 0.0
    %3792 = vmatprep.subr.mxu0 0.0
    %3793 = vmatpush1.msra.mxu0 0.0
    %3794 = vmatprep.subr.mxu0 0.0
    %3795 = vmatpush1.msra.mxu0 0.0
    %3796 = vmatprep.subr.mxu0 0.0
    %3797 = vmatpush1.msra.mxu0 0.0
    %3798 = vmatprep.subr.mxu0 0.0
    %3799 = vmatpush1.msra.mxu0 0.0
    %3800 = vmatprep.subr.mxu0 0.0
    %3801 = vmatpush1.msra.mxu0 0.0
    %3802 = vmatprep.subr.mxu0 0.0
    %3803 = vmatpush1.msra.mxu0 0.0
    %3804 = vmatprep.mubr.f32.mxu0 0.0
    %3805 = vmatmul.mubr.f32.gmra.mrb[0].mxu0 %v2824
    %v3806 = vpop.f32.mrb[0].mxu0
    %v3807 = vadd.f32 %v3737, %v3806
    %v3808 = vpop.f32.mrb[0].mxu0
    %3809 = vdwg.mxu0
    %v3810 = vmax.f32 %v3807, 0.0
    %v3811 = vld [vmem:[%s5] sm:$0xff]
    %v3812 = vld [vmem:[%s5 + $0x8] sm:$0xff]
    %v3813 = vld [vmem:[%s5 + $0x10] sm:$0xff]
    %v3814 = vld [vmem:[%s5 + $0x18] sm:$0xff]
    %v3815 = vld [vmem:[%s5 + $0x20] sm:$0xff]
    %v3816 = vld [vmem:[%s5 + $0x28] sm:$0xff]
    %v3817 = vld [vmem:[%s5 + $0x30] sm:$0xff]
    %v3818 = vld [vmem:[%s5 + $0x38] sm:$0xff]
    %v3819 = vld [vmem:[%s5 + $0x40] sm:$0xff]
    %v3820 = vld [vmem:[%s5 + $0x48] sm:$0xff]
    %v3821 = vld [vmem:[%s5 + $0x50] sm:$0xff]
    %v3822 = vld [vmem:[%s5 + $0x58] sm:$0xff]
    %v3823 = vld [vmem:[%s5 + $0x60] sm:$0xff]
    %v3824 = vld [vmem:[%s5 + $0x68] sm:$0xff]
    %v3825 = vld [vmem:[%s5 + $0x70] sm:$0xff]
    %v3826 = vld [vmem:[%s5 + $0x78] sm:$0xff]
    %v3827 = vld [vmem:[#allocation10] sm:$0x1]
    %v3829 = vlaneseq
    %v3830 = vshrl.u32 %v3829, 7
    %v3831 = vsub.s32 0, %v3830
    %v3832 = vrot.slane %v3827, %v3831
    %3834 = vmatprep.subr.mxu0 0.0
    %3835 = vmatpush1.msra.mxu0 %v3811
    %3836 = vmatprep.subr.mxu0 0.0
    %3837 = vmatpush1.msra.mxu0 %v3812
    %3838 = vmatprep.subr.mxu0 0.0
    %3839 = vmatpush1.msra.mxu0 %v3813
    %3840 = vmatprep.subr.mxu0 0.0
    %3841 = vmatpush1.msra.mxu0 %v3814
    %3842 = vmatprep.subr.mxu0 0.0
    %3843 = vmatpush1.msra.mxu0 %v3815
    %3844 = vmatprep.subr.mxu0 0.0
    %3845 = vmatpush1.msra.mxu0 %v3816
    %3846 = vmatprep.subr.mxu0 0.0
    %3847 = vmatpush1.msra.mxu0 %v3817
    %3848 = vmatprep.subr.mxu0 0.0
    %3849 = vmatpush1.msra.mxu0 %v3818
    %3850 = vmatprep.subr.mxu0 0.0
    %3851 = vmatpush1.msra.mxu0 %v3819
    %3852 = vmatprep.subr.mxu0 0.0
    %3853 = vmatpush1.msra.mxu0 %v3820
    %3854 = vmatprep.subr.mxu0 0.0
    %3855 = vmatpush1.msra.mxu0 %v3821
    %3856 = vmatprep.subr.mxu0 0.0
    %3857 = vmatpush1.msra.mxu0 %v3822
    %3858 = vmatprep.subr.mxu0 0.0
    %3859 = vmatpush1.msra.mxu0 %v3823
    %3860 = vmatprep.subr.mxu0 0.0
    %3861 = vmatpush1.msra.mxu0 %v3824
    %3862 = vmatprep.subr.mxu0 0.0
    %3863 = vmatpush1.msra.mxu0 %v3825
    %3864 = vmatprep.subr.mxu0 0.0
    %3865 = vmatpush1.msra.mxu0 %v3826
    %3866 = vmatprep.subr.mxu0 0.0
    %3867 = vmatpush1.msra.mxu0 0.0
    %3868 = vmatprep.subr.mxu0 0.0
    %3869 = vmatpush1.msra.mxu0 0.0
    %3870 = vmatprep.subr.mxu0 0.0
    %3871 = vmatpush1.msra.mxu0 0.0
    %3872 = vmatprep.subr.mxu0 0.0
    %3873 = vmatpush1.msra.mxu0 0.0
    %3874 = vmatprep.subr.mxu0 0.0
    %3875 = vmatpush1.msra.mxu0 0.0
    %3876 = vmatprep.subr.mxu0 0.0
    %3877 = vmatpush1.msra.mxu0 0.0
    %3878 = vmatprep.subr.mxu0 0.0
    %3879 = vmatpush1.msra.mxu0 0.0
    %3880 = vmatprep.subr.mxu0 0.0
    %3881 = vmatpush1.msra.mxu0 0.0
    %3882 = vmatprep.subr.mxu0 0.0
    %3883 = vmatpush1.msra.mxu0 0.0
    %3884 = vmatprep.subr.mxu0 0.0
    %3885 = vmatpush1.msra.mxu0 0.0
    %3886 = vmatprep.subr.mxu0 0.0
    %3887 = vmatpush1.msra.mxu0 0.0
    %3888 = vmatprep.subr.mxu0 0.0
    %3889 = vmatpush1.msra.mxu0 0.0
    %3890 = vmatprep.subr.mxu0 0.0
    %3891 = vmatpush1.msra.mxu0 0.0
    %3892 = vmatprep.subr.mxu0 0.0
    %3893 = vmatpush1.msra.mxu0 0.0
    %3894 = vmatprep.subr.mxu0 0.0
    %3895 = vmatpush1.msra.mxu0 0.0
    %3896 = vmatprep.subr.mxu0 0.0
    %3897 = vmatpush1.msra.mxu0 0.0
    %3898 = vmatprep.mubr.f32.mxu0 0.0
    %3899 = vmatmul.mubr.f32.gmra.mrb[0].mxu0 %v3810
    %v3900 = vpop.f32.mrb[0].mxu0
    %v3901 = vadd.f32 %v3832, %v3900
    %v3902 = vpop.f32.mrb[0].mxu0
    %3903 = vdwg.mxu0
    %vm3904 = vcmask 50176
    %v3905 = vsel %vm3904, %v3901, -inf
    %3906 = vmax.xlane.f32.xlu0 %v3905
    %v3907 = vpop.xlane.xlu0 %3906
    %v3908 = vsub.f32 %v3901, %v3907
    %v3909 = vmul.f32 %v3908, 1.442695
    %v3910 = vpow.pop %v3909
    %v3911 = vsel %vm3904, %v3910, 0.0
    %3912 = vadd.xlane.f32.xlu0 %v3911
    %v3913 = vpop.xlane.xlu0 %3912
    %v3914 = vrcp.pop %v3913
    %v3915 = vmul.f32 %v3910, %v3914
    %3916 = vst.msk [vmem:[#allocation11] sm:$0x3] %vm3904, %v3915
    // Predicated region
    $region50: #{model_forward.1} parent=1 // pred_check
      _
    $region51: #{model_forward.1} parent=1 // pred_check_branch
      %3918 = sbr.rel (0) target = $region53
    $region52: #{model_forward.1} parent=1 // pred_region
      %s3920 = ssub.s32 32, 32
      %3921 = vsyncadd [#allocation4], %s3920
      %s3923 = sshll.u32 [#allocation11], 4
      %s3924 = int_to_ptr.vmem [resolvable:$true] %s3923
      %3926 = dma.vmem_to_hbm [thread:$0]  %s3924, 32, %s7, [#allocation4]
    $region53: #{model_forward.1} parent=1 // pred_fallthru
      _
    // Predicated region
    $region54: #{model_forward.1} parent=1 // pred_check
      _
    $region55: #{model_forward.1} parent=1 // pred_check_branch
      %3928 = sbr.rel (0) target = $region57
    $region56: #{model_forward.1} parent=1 // pred_region
      %3929 = dma.done [#allocation4], 32
    $region57: #{model_forward.1} parent=1 // pred_fallthru
      _
    %3930 = vsyncpa [#allocation3], 1
    %3931 = vsyncpa [#allocation6], 1
    %3932 = vsyncpa [#allocation9], 1
    %3933 = vsyncpa [#allocation4], 1

</llo_original>
